<compile_context>
chip_gen: v6e
topology: v6e:2x2x1
jax: 0.10.0
libtpu: 0.0.40
codegen_flags: <defaults>
</compile_context>

<pallas_src>
import jax
import jax.numpy as jnp
import numpy as np
from jax.experimental import pallas as pl
from jax.experimental.pallas import tpu as pltpu

# Small, shape-consistent config (d_model divisible by nhead, post-norm encoder).
D_MODEL = 32
N_HEAD = 4
HEAD_DIM = D_MODEL // N_HEAD
DIM_FF = 64
NUM_LAYERS = 2
EPS = 1e-5


def _layernorm(x, gamma, beta):
    mean = jnp.mean(x, axis=-1, keepdims=True)
    var = jnp.mean((x - mean) ** 2, axis=-1, keepdims=True)
    return (x - mean) * jax.lax.rsqrt(var + EPS) * gamma + beta


# --------------------------- fused encoder kernel ---------------------------
# One program per batch element; both layers run inside the program so
# activations never leave VMEM between layers.
def encoder_kernel(x_ref, pos_ref,
                   wq_ref, bq_ref, wk_ref, bk_ref, wv_ref, bv_ref,
                   wo_ref, bo_ref, w1_ref, b1_ref, w2_ref, b2_ref,
                   g1_ref, be1_ref, g2_ref, be2_ref,
                   o_ref):
    x = x_ref[...].astype(jnp.float32)       # (S, D)
    pos = pos_ref[...].astype(jnp.float32)   # (S, D)
    seq_len = x.shape[0]

    for l in range(NUM_LAYERS):              # static unroll over layers
        # ---- self-attention (q = k = x + pos, value = x) --------------------
        qk_in = x + pos
        # Separate Q / K projections (no fused-output lane split). Wq/bq carry
        # the 1/sqrt(head_dim) scale folded in on the host.
        q = jnp.dot(qk_in, wq_ref[l], preferred_element_type=jnp.float32) + bq_ref[l]
        k = jnp.dot(qk_in, wk_ref[l], preferred_element_type=jnp.float32) + bk_ref[l]
        v = jnp.dot(x, wv_ref[l], preferred_element_type=jnp.float32) + bv_ref[l]

        # Head-batched attention: stack heads into a leading batch axis so the
        # score and PV contractions are single batched dot_generals instead of
        # 2*H tiny matmul pushes.
        qh = jnp.stack([q[:, h * HEAD_DIM:(h + 1) * HEAD_DIM]
                        for h in range(N_HEAD)], axis=0)          # (H, S, hd)
        kh = jnp.stack([k[:, h * HEAD_DIM:(h + 1) * HEAD_DIM]
                        for h in range(N_HEAD)], axis=0)          # (H, S, hd)
        vh = jnp.stack([v[:, h * HEAD_DIM:(h + 1) * HEAD_DIM]
                        for h in range(N_HEAD)], axis=0)          # (H, S, hd)

        s = jnp.einsum('hsd,htd->hst', qh, kh,
                       preferred_element_type=jnp.float32)        # (H, S, S)
        s = s - jnp.max(s, axis=-1, keepdims=True)
        p = jnp.exp(s)
        p = p / jnp.sum(p, axis=-1, keepdims=True)                # exact softmax
        ctx = jnp.einsum('hst,htd->hsd', p, vh,
                         preferred_element_type=jnp.float32)      # (H, S, hd)

        # Concatenate heads back along lanes and apply the output projection as
        # ONE (S,D)x(D,D) matmul.
        ctx_cat = jnp.concatenate([ctx[h] for h in range(N_HEAD)], axis=-1)  # (S, D)
        attn = jnp.dot(ctx_cat, wo_ref[l],
                       preferred_element_type=jnp.float32) + bo_ref[l]       # (S, D)

        # ---- residual + norm1 (post-norm) -----------------------------------
        x = _layernorm(x + attn, g1_ref[l], be1_ref[l])

        # ---- FFN: linear2(relu(linear1(x))) ----------------------------------
        h1 = jnp.maximum(
            jnp.dot(x, w1_ref[l], preferred_element_type=jnp.float32) + b1_ref[l], 0.0)
        ff = jnp.dot(h1, w2_ref[l], preferred_element_type=jnp.float32) + b2_ref[l]

        # ---- residual + norm2 -------------------------------------------------
        x = _layernorm(x + ff, g2_ref[l], be2_ref[l])

    o_ref[...] = x.astype(o_ref.dtype)

    del seq_len  # (shape is implicit in the refs; kept for readability)


def _zero_index_map(ndim):
    return lambda b: (0,) * ndim


def transformer_encoder(src_sbd, pos_sbd, kparams):
    """src/pos: (S, B, D) seq-first (PyTorch layout). Returns (S, B, D)."""
    S, B, D = src_sbd.shape
    # One-time layout change for the whole fused encoder (not per layer).
    x2d = jnp.transpose(src_sbd, (1, 0, 2)).reshape(B * S, D)
    pos2d = jnp.transpose(pos_sbd, (1, 0, 2)).reshape(B * S, D)

    weight_names = ('wq_t', 'bq', 'wk_t', 'bk', 'wv_t', 'bv', 'wo_t', 'bo',
                    'w1_t', 'b1', 'w2_t', 'b2', 'g1', 'be1', 'g2', 'be2')
    weights = tuple(kparams[n] for n in weight_names)

    # Activations: one (S, D) row-block per batch element, selected by the
    # (parallel) batch program id.  Weights: full stacked arrays, broadcast to
    # every program (index_map -> 0).
    act_spec = pl.BlockSpec((S, D), lambda b: (b, 0))
    w_specs = [pl.BlockSpec(w.shape, _zero_index_map(w.ndim)) for w in weights]

    out2d = pl.pallas_call(
        encoder_kernel,
        out_shape=jax.ShapeDtypeStruct((B * S, D), src_sbd.dtype),
        grid=(B,),
        in_specs=[act_spec, act_spec] + w_specs,
        out_specs=pl.BlockSpec((S, D), lambda b: (b, 0)),
        compiler_params=pltpu.CompilerParams(
            dimension_semantics=("parallel",),        # batch -> both TCs on v7x
            vmem_limit_bytes=32 * 1024 * 1024),
    )(x2d, pos2d, *weights)

    # encoder_norm is None when normalize_before=False (DETRhead uses pre_norm=False)
    return out2d.reshape(B, S, D).transpose(1, 0, 2)


# --------------- host-side weight packing (pre-transpose / pre-split) --------
def prepare_params(layer_params):
    scale = 1.0 / (HEAD_DIM ** 0.5)

    def per_layer(p):
        wq = p['wqkv'][0:D_MODEL] * scale            # fold 1/sqrt(hd) into Wq, bq
        wk = p['wqkv'][D_MODEL:2 * D_MODEL]
        wv = p['wqkv'][2 * D_MODEL:3 * D_MODEL]
        bq = p['bqkv'][0:D_MODEL] * scale
        bk = p['bqkv'][D_MODEL:2 * D_MODEL]
        bv = p['bqkv'][2 * D_MODEL:3 * D_MODEL]
        return dict(
            wq_t=wq.T, bq=bq[None, :],
            wk_t=wk.T, bk=bk[None, :],
            wv_t=wv.T, bv=bv[None, :],
            wo_t=p['wo'].T, bo=p['bo'][None, :],
            w1_t=p['w1'].T, b1=p['b1'][None, :],
            w2_t=p['w2'].T, b2=p['b2'][None, :],
            g1=p['g1'][None, :], be1=p['be1'][None, :],
            g2=p['g2'][None, :], be2=p['be2'][None, :],
        )

    per = [per_layer(p) for p in layer_params]
    return {k: jnp.stack([d[k] for d in per], axis=0) for k in per[0]}


# ---------------- pure-JAX reference (correctness check only) ----------------
def _encoder_layer_ref(x, pos, p):
    B, S, D = x.shape
    qk_in = x + pos
    wqkv, bqkv = p['wqkv'], p['bqkv']
    wq, wk, wv = wqkv[:D_MODEL], wqkv[D_MODEL:2 * D_MODEL], wqkv[2 * D_MODEL:]
    bq, bk, bv = bqkv[:D_MODEL], bqkv[D_MODEL:2 * D_MODEL], bqkv[2 * D_MODEL:]
    q = qk_in @ wq.T + bq
    k = qk_in @ wk.T + bk
    v = x @ wv.T + bv
    qh = q.reshape(B, S, N_HEAD, HEAD_DIM) / (HEAD_DIM ** 0.5)
    kh = k.reshape(B, S, N_HEAD, HEAD_DIM)
    vh = v.reshape(B, S, N_HEAD, HEAD_DIM)
    s = jnp.einsum('bshd,bthd->bhst', qh, kh)
    pmat = jax.nn.softmax(s, axis=-1)
    attn = jnp.einsum('bhst,bthd->bshd', pmat, vh).reshape(B, S, D)
    attn = attn @ p['wo'].T + p['bo']
    x1 = _layernorm(x + attn, p['g1'], p['be1'])
    ff = jnp.maximum(x1 @ p['w1'].T + p['b1'], 0.0) @ p['w2'].T + p['b2']
    return _layernorm(x1 + ff, p['g2'], p['be2'])


def transformer_encoder_ref(src_sbd, pos_sbd, layer_params):
    x = jnp.transpose(src_sbd, (1, 0, 2))
    pos = jnp.transpose(pos_sbd, (1, 0, 2))
    for lp in layer_params:
        x = _encoder_layer_ref(x, pos, lp)
    return jnp.transpose(x, (1, 0, 2))


# ---------------- deterministic parameter init ----------------
def _xavier(key, shape):
    fan_out, fan_in = shape
    lim = (6.0 / (fan_in + fan_out)) ** 0.5
    return jax.random.uniform(key, shape, jnp.float32, -lim, lim)


def init_params(key, num_layers):
    layers = []
    for _ in range(num_layers):
        key, k0, k1, k2, k3, k4, k5, k6, k7 = jax.random.split(key, 9)
        lp = dict(
            wqkv=_xavier(k0, (3 * D_MODEL, D_MODEL)),
            bqkv=0.02 * jax.random.normal(k1, (3 * D_MODEL,), jnp.float32),
            wo=_xavier(k2, (D_MODEL, D_MODEL)),
            bo=0.02 * jax.random.normal(k3, (D_MODEL,), jnp.float32),
            w1=_xavier(k4, (DIM_FF, D_MODEL)),
            b1=0.02 * jax.random.normal(k5, (DIM_FF,), jnp.float32),
            w2=_xavier(k6, (D_MODEL, DIM_FF)),
            b2=0.02 * jax.random.normal(k7, (D_MODEL,), jnp.float32),
            g1=jnp.ones((D_MODEL,), jnp.float32),
            be1=jnp.zeros((D_MODEL,), jnp.float32),
            g2=jnp.ones((D_MODEL,), jnp.float32),
            be2=jnp.zeros((D_MODEL,), jnp.float32),
        )
        layers.append(lp)
    return layers


if __name__ == "__main__":
    key = jax.random.PRNGKey(0)
    kx, kp, kw = jax.random.split(key, 3)
    S, B = 8, 2                     # seq-first like PyTorch: src is (S, B, D)
    src = jax.random.normal(kx, (S, B, D_MODEL), jnp.float32)
    pos = jax.random.normal(kp, (S, B, D_MODEL), jnp.float32)

    torch_layout_params = init_params(kw, NUM_LAYERS)
    kernel_params = prepare_params(torch_layout_params)

    out = transformer_encoder(src, pos, kernel_params)
    out = jax.block_until_ready(out)
    assert out.shape == (S, B, D_MODEL)

    ref = transformer_encoder_ref(src, pos, torch_layout_params)
    # Exact-softmax, all-f32 kernel: tight tolerance (only accumulation-order noise).
    np.testing.assert_allclose(np.asarray(out), np.asarray(ref), atol=1e-4, rtol=1e-4)
    print("KERNEL_OK")
</pallas_src>

<mosaic_0001>
module attributes {stable_mosaic.version = 11 : i64} {
  func.func @encoder_kernel(%arg0: i32, %arg1: memref<8x32xf32, #tpu.memory_space<vmem>>, %arg2: memref<8x32xf32, #tpu.memory_space<vmem>>, %arg3: memref<2x32x32xf32, #tpu.memory_space<vmem>>, %arg4: memref<2x1x32xf32, #tpu.memory_space<vmem>>, %arg5: memref<2x32x32xf32, #tpu.memory_space<vmem>>, %arg6: memref<2x1x32xf32, #tpu.memory_space<vmem>>, %arg7: memref<2x32x32xf32, #tpu.memory_space<vmem>>, %arg8: memref<2x1x32xf32, #tpu.memory_space<vmem>>, %arg9: memref<2x32x32xf32, #tpu.memory_space<vmem>>, %arg10: memref<2x1x32xf32, #tpu.memory_space<vmem>>, %arg11: memref<2x32x64xf32, #tpu.memory_space<vmem>>, %arg12: memref<2x1x64xf32, #tpu.memory_space<vmem>>, %arg13: memref<2x64x32xf32, #tpu.memory_space<vmem>>, %arg14: memref<2x1x32xf32, #tpu.memory_space<vmem>>, %arg15: memref<2x1x32xf32, #tpu.memory_space<vmem>>, %arg16: memref<2x1x32xf32, #tpu.memory_space<vmem>>, %arg17: memref<2x1x32xf32, #tpu.memory_space<vmem>>, %arg18: memref<2x1x32xf32, #tpu.memory_space<vmem>>, %arg19: memref<8x32xf32, #tpu.memory_space<vmem>>) attributes {dimension_semantics = [#tpu.dimension_semantics<parallel>], iteration_bounds = array<i64: 2>, scalar_prefetch = 0 : i64, scratch_operands = 0 : i64, tpu.core_type = #tpu.core_type<tc>, window_params = [{transform_indices = @transform_0, window_bounds = array<i64: 8, 32>}, {transform_indices = @transform_1, window_bounds = array<i64: 8, 32>}, {pipeline_mode = #tpu.pipeline_mode<synchronous>, transform_indices = @transform_2, window_bounds = array<i64: 2, 32, 32>}, {pipeline_mode = #tpu.pipeline_mode<synchronous>, transform_indices = @transform_3, window_bounds = array<i64: 2, 1, 32>}, {pipeline_mode = #tpu.pipeline_mode<synchronous>, transform_indices = @transform_4, window_bounds = array<i64: 2, 32, 32>}, {pipeline_mode = #tpu.pipeline_mode<synchronous>, transform_indices = @transform_5, window_bounds = array<i64: 2, 1, 32>}, {pipeline_mode = #tpu.pipeline_mode<synchronous>, transform_indices = @transform_6, window_bounds = array<i64: 2, 32, 32>}, {pipeline_mode = #tpu.pipeline_mode<synchronous>, transform_indices = @transform_7, window_bounds = array<i64: 2, 1, 32>}, {pipeline_mode = #tpu.pipeline_mode<synchronous>, transform_indices = @transform_8, window_bounds = array<i64: 2, 32, 32>}, {pipeline_mode = #tpu.pipeline_mode<synchronous>, transform_indices = @transform_9, window_bounds = array<i64: 2, 1, 32>}, {pipeline_mode = #tpu.pipeline_mode<synchronous>, transform_indices = @transform_10, window_bounds = array<i64: 2, 32, 64>}, {pipeline_mode = #tpu.pipeline_mode<synchronous>, transform_indices = @transform_11, window_bounds = array<i64: 2, 1, 64>}, {pipeline_mode = #tpu.pipeline_mode<synchronous>, transform_indices = @transform_12, window_bounds = array<i64: 2, 64, 32>}, {pipeline_mode = #tpu.pipeline_mode<synchronous>, transform_indices = @transform_13, window_bounds = array<i64: 2, 1, 32>}, {pipeline_mode = #tpu.pipeline_mode<synchronous>, transform_indices = @transform_14, window_bounds = array<i64: 2, 1, 32>}, {pipeline_mode = #tpu.pipeline_mode<synchronous>, transform_indices = @transform_15, window_bounds = array<i64: 2, 1, 32>}, {pipeline_mode = #tpu.pipeline_mode<synchronous>, transform_indices = @transform_16, window_bounds = array<i64: 2, 1, 32>}, {pipeline_mode = #tpu.pipeline_mode<synchronous>, transform_indices = @transform_17, window_bounds = array<i64: 2, 1, 32>}, {transform_indices = @transform_18, window_bounds = array<i64: 8, 32>}]} {
    %c0 = arith.constant 0 : index
    %c0_0 = arith.constant 0 : index
    %0 = vector.load %arg1[%c0, %c0_0] : memref<8x32xf32, #tpu.memory_space<vmem>>, vector<8x32xf32>
    %c0_1 = arith.constant 0 : index
    %c0_2 = arith.constant 0 : index
    %1 = vector.load %arg2[%c0_1, %c0_2] : memref<8x32xf32, #tpu.memory_space<vmem>>, vector<8x32xf32>
    %2 = arith.addf %0, %1 : vector<8x32xf32>
    %c0_3 = arith.constant 0 : index
    %c0_4 = arith.constant 0 : index
    %c0_5 = arith.constant 0 : index
    %3 = vector.load %arg3[%c0_3, %c0_4, %c0_5] : memref<2x32x32xf32, #tpu.memory_space<vmem>>, vector<1x32x32xf32>
    %4 = vector.shape_cast %3 : vector<1x32x32xf32> to vector<32x32xf32>
    %cst = arith.constant dense<0.000000e+00> : vector<8x32xf32>
    %5 = tpu.matmul %2, %4, %cst {dimension_numbers = #tpu.dot_dimension_numbers<[1], [0], [0], [1], [0, 0, 1, 1], [], []>} : vector<8x32xf32>, vector<32x32xf32>, vector<8x32xf32> -> vector<8x32xf32>
    %c0_6 = arith.constant 0 : index
    %c0_7 = arith.constant 0 : index
    %c0_8 = arith.constant 0 : index
    %6 = vector.load %arg4[%c0_6, %c0_7, %c0_8] : memref<2x1x32xf32, #tpu.memory_space<vmem>>, vector<1x1x32xf32>
    %7 = vector.shape_cast %6 : vector<1x1x32xf32> to vector<1x32xf32>
    %8 = vector.broadcast %7 : vector<1x32xf32> to vector<8x32xf32>
    %9 = arith.addf %5, %8 : vector<8x32xf32>
    %c0_9 = arith.constant 0 : index
    %c0_10 = arith.constant 0 : index
    %c0_11 = arith.constant 0 : index
    %10 = vector.load %arg5[%c0_9, %c0_10, %c0_11] : memref<2x32x32xf32, #tpu.memory_space<vmem>>, vector<1x32x32xf32>
    %11 = vector.shape_cast %10 : vector<1x32x32xf32> to vector<32x32xf32>
    %cst_12 = arith.constant dense<0.000000e+00> : vector<8x32xf32>
    %12 = tpu.matmul %2, %11, %cst_12 {dimension_numbers = #tpu.dot_dimension_numbers<[1], [0], [0], [1], [0, 0, 1, 1], [], []>} : vector<8x32xf32>, vector<32x32xf32>, vector<8x32xf32> -> vector<8x32xf32>
    %c0_13 = arith.constant 0 : index
    %c0_14 = arith.constant 0 : index
    %c0_15 = arith.constant 0 : index
    %13 = vector.load %arg6[%c0_13, %c0_14, %c0_15] : memref<2x1x32xf32, #tpu.memory_space<vmem>>, vector<1x1x32xf32>
    %14 = vector.shape_cast %13 : vector<1x1x32xf32> to vector<1x32xf32>
    %15 = vector.broadcast %14 : vector<1x32xf32> to vector<8x32xf32>
    %16 = arith.addf %12, %15 : vector<8x32xf32>
    %c0_16 = arith.constant 0 : index
    %c0_17 = arith.constant 0 : index
    %c0_18 = arith.constant 0 : index
    %17 = vector.load %arg7[%c0_16, %c0_17, %c0_18] : memref<2x32x32xf32, #tpu.memory_space<vmem>>, vector<1x32x32xf32>
    %18 = vector.shape_cast %17 : vector<1x32x32xf32> to vector<32x32xf32>
    %cst_19 = arith.constant dense<0.000000e+00> : vector<8x32xf32>
    %19 = tpu.matmul %0, %18, %cst_19 {dimension_numbers = #tpu.dot_dimension_numbers<[1], [0], [0], [1], [0, 0, 1, 1], [], []>} : vector<8x32xf32>, vector<32x32xf32>, vector<8x32xf32> -> vector<8x32xf32>
    %c0_20 = arith.constant 0 : index
    %c0_21 = arith.constant 0 : index
    %c0_22 = arith.constant 0 : index
    %20 = vector.load %arg8[%c0_20, %c0_21, %c0_22] : memref<2x1x32xf32, #tpu.memory_space<vmem>>, vector<1x1x32xf32>
    %21 = vector.shape_cast %20 : vector<1x1x32xf32> to vector<1x32xf32>
    %22 = vector.broadcast %21 : vector<1x32xf32> to vector<8x32xf32>
    %23 = arith.addf %19, %22 : vector<8x32xf32>
    %24 = vector.extract_strided_slice %9 {offsets = [0, 0], sizes = [8, 8], strides = [1, 1]} : vector<8x32xf32> to vector<8x8xf32>
    %25 = vector.extract_strided_slice %9 {offsets = [0, 8], sizes = [8, 8], strides = [1, 1]} : vector<8x32xf32> to vector<8x8xf32>
    %26 = vector.extract_strided_slice %9 {offsets = [0, 16], sizes = [8, 8], strides = [1, 1]} : vector<8x32xf32> to vector<8x8xf32>
    %27 = vector.extract_strided_slice %9 {offsets = [0, 24], sizes = [8, 8], strides = [1, 1]} : vector<8x32xf32> to vector<8x8xf32>
    %28 = vector.shape_cast %24 : vector<8x8xf32> to vector<1x8x8xf32>
    %29 = vector.shape_cast %25 : vector<8x8xf32> to vector<1x8x8xf32>
    %30 = vector.shape_cast %26 : vector<8x8xf32> to vector<1x8x8xf32>
    %31 = vector.shape_cast %27 : vector<8x8xf32> to vector<1x8x8xf32>
    %32 = tpu.concatenate %28, %29, %30, %31 in 0 : vector<1x8x8xf32>, vector<1x8x8xf32>, vector<1x8x8xf32>, vector<1x8x8xf32> -> vector<4x8x8xf32>
    %33 = vector.extract_strided_slice %16 {offsets = [0, 0], sizes = [8, 8], strides = [1, 1]} : vector<8x32xf32> to vector<8x8xf32>
    %34 = vector.extract_strided_slice %16 {offsets = [0, 8], sizes = [8, 8], strides = [1, 1]} : vector<8x32xf32> to vector<8x8xf32>
    %35 = vector.extract_strided_slice %16 {offsets = [0, 16], sizes = [8, 8], strides = [1, 1]} : vector<8x32xf32> to vector<8x8xf32>
    %36 = vector.extract_strided_slice %16 {offsets = [0, 24], sizes = [8, 8], strides = [1, 1]} : vector<8x32xf32> to vector<8x8xf32>
    %37 = vector.shape_cast %33 : vector<8x8xf32> to vector<1x8x8xf32>
    %38 = vector.shape_cast %34 : vector<8x8xf32> to vector<1x8x8xf32>
    %39 = vector.shape_cast %35 : vector<8x8xf32> to vector<1x8x8xf32>
    %40 = vector.shape_cast %36 : vector<8x8xf32> to vector<1x8x8xf32>
    %41 = tpu.concatenate %37, %38, %39, %40 in 0 : vector<1x8x8xf32>, vector<1x8x8xf32>, vector<1x8x8xf32>, vector<1x8x8xf32> -> vector<4x8x8xf32>
    %42 = vector.extract_strided_slice %23 {offsets = [0, 0], sizes = [8, 8], strides = [1, 1]} : vector<8x32xf32> to vector<8x8xf32>
    %43 = vector.extract_strided_slice %23 {offsets = [0, 8], sizes = [8, 8], strides = [1, 1]} : vector<8x32xf32> to vector<8x8xf32>
    %44 = vector.extract_strided_slice %23 {offsets = [0, 16], sizes = [8, 8], strides = [1, 1]} : vector<8x32xf32> to vector<8x8xf32>
    %45 = vector.extract_strided_slice %23 {offsets = [0, 24], sizes = [8, 8], strides = [1, 1]} : vector<8x32xf32> to vector<8x8xf32>
    %46 = vector.shape_cast %42 : vector<8x8xf32> to vector<1x8x8xf32>
    %47 = vector.shape_cast %43 : vector<8x8xf32> to vector<1x8x8xf32>
    %48 = vector.shape_cast %44 : vector<8x8xf32> to vector<1x8x8xf32>
    %49 = vector.shape_cast %45 : vector<8x8xf32> to vector<1x8x8xf32>
    %50 = tpu.concatenate %46, %47, %48, %49 in 0 : vector<1x8x8xf32>, vector<1x8x8xf32>, vector<1x8x8xf32>, vector<1x8x8xf32> -> vector<4x8x8xf32>
    "tpu.trace_start"() <{level = 10 : i32, message = "hsd,htd->hst"}> : () -> ()
    %cst_23 = arith.constant dense<0.000000e+00> : vector<4x8x8xf32>
    %51 = tpu.matmul %32, %41, %cst_23 {dimension_numbers = #tpu.dot_dimension_numbers<[2], [2], [1], [1], [0, 0, 0, 1, 1, 1], [0], [0]>} : vector<4x8x8xf32>, vector<4x8x8xf32>, vector<4x8x8xf32> -> vector<4x8x8xf32>
    "tpu.trace_stop"() : () -> ()
    %cst_24 = arith.constant dense<0xFF800000> : vector<4x8xf32>
    %52 = vector.multi_reduction <maximumf>, %51, %cst_24 [2] : vector<4x8x8xf32> to vector<4x8xf32>
    %53 = vector.shape_cast %52 : vector<4x8xf32> to vector<4x8x1xf32>
    %54 = vector.broadcast %53 : vector<4x8x1xf32> to vector<4x8x8xf32>
    %55 = arith.subf %51, %54 : vector<4x8x8xf32>
    %56 = math.exp %55 : vector<4x8x8xf32>
    %cst_25 = arith.constant dense<0.000000e+00> : vector<4x8xf32>
    %57 = vector.multi_reduction <add>, %56, %cst_25 [2] : vector<4x8x8xf32> to vector<4x8xf32>
    %58 = vector.shape_cast %57 : vector<4x8xf32> to vector<4x8x1xf32>
    %59 = vector.broadcast %58 : vector<4x8x1xf32> to vector<4x8x8xf32>
    %60 = arith.divf %56, %59 : vector<4x8x8xf32>
    "tpu.trace_start"() <{level = 10 : i32, message = "hst,htd->hsd"}> : () -> ()
    %cst_26 = arith.constant dense<0.000000e+00> : vector<4x8x8xf32>
    %61 = tpu.matmul %60, %50, %cst_26 {dimension_numbers = #tpu.dot_dimension_numbers<[2], [1], [1], [2], [0, 0, 0, 1, 1, 2], [0], [0]>} : vector<4x8x8xf32>, vector<4x8x8xf32>, vector<4x8x8xf32> -> vector<4x8x8xf32>
    "tpu.trace_stop"() : () -> ()
    %62 = vector.extract_strided_slice %61 {offsets = [0, 0, 0], sizes = [1, 8, 8], strides = [1, 1, 1]} : vector<4x8x8xf32> to vector<1x8x8xf32>
    %63 = vector.shape_cast %62 : vector<1x8x8xf32> to vector<8x8xf32>
    %64 = vector.extract_strided_slice %61 {offsets = [1, 0, 0], sizes = [1, 8, 8], strides = [1, 1, 1]} : vector<4x8x8xf32> to vector<1x8x8xf32>
    %65 = vector.shape_cast %64 : vector<1x8x8xf32> to vector<8x8xf32>
    %66 = vector.extract_strided_slice %61 {offsets = [2, 0, 0], sizes = [1, 8, 8], strides = [1, 1, 1]} : vector<4x8x8xf32> to vector<1x8x8xf32>
    %67 = vector.shape_cast %66 : vector<1x8x8xf32> to vector<8x8xf32>
    %68 = vector.extract_strided_slice %61 {offsets = [3, 0, 0], sizes = [1, 8, 8], strides = [1, 1, 1]} : vector<4x8x8xf32> to vector<1x8x8xf32>
    %69 = vector.shape_cast %68 : vector<1x8x8xf32> to vector<8x8xf32>
    %70 = tpu.concatenate %63, %65, %67, %69 in 1 : vector<8x8xf32>, vector<8x8xf32>, vector<8x8xf32>, vector<8x8xf32> -> vector<8x32xf32>
    %c0_27 = arith.constant 0 : index
    %c0_28 = arith.constant 0 : index
    %c0_29 = arith.constant 0 : index
    %71 = vector.load %arg9[%c0_27, %c0_28, %c0_29] : memref<2x32x32xf32, #tpu.memory_space<vmem>>, vector<1x32x32xf32>
    %72 = vector.shape_cast %71 : vector<1x32x32xf32> to vector<32x32xf32>
    %cst_30 = arith.constant dense<0.000000e+00> : vector<8x32xf32>
    %73 = tpu.matmul %70, %72, %cst_30 {dimension_numbers = #tpu.dot_dimension_numbers<[1], [0], [0], [1], [0, 0, 1, 1], [], []>} : vector<8x32xf32>, vector<32x32xf32>, vector<8x32xf32> -> vector<8x32xf32>
    %c0_31 = arith.constant 0 : index
    %c0_32 = arith.constant 0 : index
    %c0_33 = arith.constant 0 : index
    %74 = vector.load %arg10[%c0_31, %c0_32, %c0_33] : memref<2x1x32xf32, #tpu.memory_space<vmem>>, vector<1x1x32xf32>
    %75 = vector.shape_cast %74 : vector<1x1x32xf32> to vector<1x32xf32>
    %76 = vector.broadcast %75 : vector<1x32xf32> to vector<8x32xf32>
    %77 = arith.addf %73, %76 : vector<8x32xf32>
    %78 = arith.addf %0, %77 : vector<8x32xf32>
    %c0_34 = arith.constant 0 : index
    %c0_35 = arith.constant 0 : index
    %c0_36 = arith.constant 0 : index
    %79 = vector.load %arg15[%c0_34, %c0_35, %c0_36] : memref<2x1x32xf32, #tpu.memory_space<vmem>>, vector<1x1x32xf32>
    %80 = vector.shape_cast %79 : vector<1x1x32xf32> to vector<1x32xf32>
    %c0_37 = arith.constant 0 : index
    %c0_38 = arith.constant 0 : index
    %c0_39 = arith.constant 0 : index
    %81 = vector.load %arg16[%c0_37, %c0_38, %c0_39] : memref<2x1x32xf32, #tpu.memory_space<vmem>>, vector<1x1x32xf32>
    %82 = vector.shape_cast %81 : vector<1x1x32xf32> to vector<1x32xf32>
    %cst_40 = arith.constant dense<0.000000e+00> : vector<8xf32>
    %83 = vector.multi_reduction <add>, %78, %cst_40 [1] : vector<8x32xf32> to vector<8xf32>
    %84 = vector.shape_cast %83 : vector<8xf32> to vector<8x1xf32>
    %cst_41 = arith.constant 3.200000e+01 : f32
    %85 = vector.broadcast %cst_41 : f32 to vector<8x1xf32>
    %86 = arith.divf %84, %85 : vector<8x1xf32>
    %87 = vector.broadcast %86 : vector<8x1xf32> to vector<8x32xf32>
    %88 = arith.subf %78, %87 : vector<8x32xf32>
    %89 = arith.mulf %88, %88 : vector<8x32xf32>
    %cst_42 = arith.constant dense<0.000000e+00> : vector<8xf32>
    %90 = vector.multi_reduction <add>, %89, %cst_42 [1] : vector<8x32xf32> to vector<8xf32>
    %91 = vector.shape_cast %90 : vector<8xf32> to vector<8x1xf32>
    %cst_43 = arith.constant 3.200000e+01 : f32
    %92 = vector.broadcast %cst_43 : f32 to vector<8x1xf32>
    %93 = arith.divf %91, %92 : vector<8x1xf32>
    %94 = vector.broadcast %86 : vector<8x1xf32> to vector<8x32xf32>
    %95 = arith.subf %78, %94 : vector<8x32xf32>
    %cst_44 = arith.constant 9.99999974E-6 : f32
    %96 = vector.broadcast %cst_44 : f32 to vector<8x1xf32>
    %97 = arith.addf %93, %96 : vector<8x1xf32>
    %98 = math.rsqrt %97 : vector<8x1xf32>
    %99 = vector.broadcast %98 : vector<8x1xf32> to vector<8x32xf32>
    %100 = arith.mulf %95, %99 : vector<8x32xf32>
    %101 = vector.broadcast %80 : vector<1x32xf32> to vector<8x32xf32>
    %102 = arith.mulf %100, %101 : vector<8x32xf32>
    %103 = vector.broadcast %82 : vector<1x32xf32> to vector<8x32xf32>
    %104 = arith.addf %102, %103 : vector<8x32xf32>
    %c0_45 = arith.constant 0 : index
    %c0_46 = arith.constant 0 : index
    %c0_47 = arith.constant 0 : index
    %105 = vector.load %arg11[%c0_45, %c0_46, %c0_47] : memref<2x32x64xf32, #tpu.memory_space<vmem>>, vector<1x32x64xf32>
    %106 = vector.shape_cast %105 : vector<1x32x64xf32> to vector<32x64xf32>
    %cst_48 = arith.constant dense<0.000000e+00> : vector<8x64xf32>
    %107 = tpu.matmul %104, %106, %cst_48 {dimension_numbers = #tpu.dot_dimension_numbers<[1], [0], [0], [1], [0, 0, 1, 1], [], []>} : vector<8x32xf32>, vector<32x64xf32>, vector<8x64xf32> -> vector<8x64xf32>
    %c0_49 = arith.constant 0 : index
    %c0_50 = arith.constant 0 : index
    %c0_51 = arith.constant 0 : index
    %108 = vector.load %arg12[%c0_49, %c0_50, %c0_51] : memref<2x1x64xf32, #tpu.memory_space<vmem>>, vector<1x1x64xf32>
    %109 = vector.shape_cast %108 : vector<1x1x64xf32> to vector<1x64xf32>
    %110 = vector.broadcast %109 : vector<1x64xf32> to vector<8x64xf32>
    %111 = arith.addf %107, %110 : vector<8x64xf32>
    %cst_52 = arith.constant 0.000000e+00 : f32
    %112 = vector.broadcast %cst_52 : f32 to vector<8x64xf32>
    %113 = arith.maximumf %111, %112 : vector<8x64xf32>
    %c0_53 = arith.constant 0 : index
    %c0_54 = arith.constant 0 : index
    %c0_55 = arith.constant 0 : index
    %114 = vector.load %arg13[%c0_53, %c0_54, %c0_55] : memref<2x64x32xf32, #tpu.memory_space<vmem>>, vector<1x64x32xf32>
    %115 = vector.shape_cast %114 : vector<1x64x32xf32> to vector<64x32xf32>
    %cst_56 = arith.constant dense<0.000000e+00> : vector<8x32xf32>
    %116 = tpu.matmul %113, %115, %cst_56 {dimension_numbers = #tpu.dot_dimension_numbers<[1], [0], [0], [1], [0, 0, 1, 1], [], []>} : vector<8x64xf32>, vector<64x32xf32>, vector<8x32xf32> -> vector<8x32xf32>
    %c0_57 = arith.constant 0 : index
    %c0_58 = arith.constant 0 : index
    %c0_59 = arith.constant 0 : index
    %117 = vector.load %arg14[%c0_57, %c0_58, %c0_59] : memref<2x1x32xf32, #tpu.memory_space<vmem>>, vector<1x1x32xf32>
    %118 = vector.shape_cast %117 : vector<1x1x32xf32> to vector<1x32xf32>
    %119 = vector.broadcast %118 : vector<1x32xf32> to vector<8x32xf32>
    %120 = arith.addf %116, %119 : vector<8x32xf32>
    %121 = arith.addf %104, %120 : vector<8x32xf32>
    %c0_60 = arith.constant 0 : index
    %c0_61 = arith.constant 0 : index
    %c0_62 = arith.constant 0 : index
    %122 = vector.load %arg17[%c0_60, %c0_61, %c0_62] : memref<2x1x32xf32, #tpu.memory_space<vmem>>, vector<1x1x32xf32>
    %123 = vector.shape_cast %122 : vector<1x1x32xf32> to vector<1x32xf32>
    %c0_63 = arith.constant 0 : index
    %c0_64 = arith.constant 0 : index
    %c0_65 = arith.constant 0 : index
    %124 = vector.load %arg18[%c0_63, %c0_64, %c0_65] : memref<2x1x32xf32, #tpu.memory_space<vmem>>, vector<1x1x32xf32>
    %125 = vector.shape_cast %124 : vector<1x1x32xf32> to vector<1x32xf32>
    %cst_66 = arith.constant dense<0.000000e+00> : vector<8xf32>
    %126 = vector.multi_reduction <add>, %121, %cst_66 [1] : vector<8x32xf32> to vector<8xf32>
    %127 = vector.shape_cast %126 : vector<8xf32> to vector<8x1xf32>
    %cst_67 = arith.constant 3.200000e+01 : f32
    %128 = vector.broadcast %cst_67 : f32 to vector<8x1xf32>
    %129 = arith.divf %127, %128 : vector<8x1xf32>
    %130 = vector.broadcast %129 : vector<8x1xf32> to vector<8x32xf32>
    %131 = arith.subf %121, %130 : vector<8x32xf32>
    %132 = arith.mulf %131, %131 : vector<8x32xf32>
    %cst_68 = arith.constant dense<0.000000e+00> : vector<8xf32>
    %133 = vector.multi_reduction <add>, %132, %cst_68 [1] : vector<8x32xf32> to vector<8xf32>
    %134 = vector.shape_cast %133 : vector<8xf32> to vector<8x1xf32>
    %cst_69 = arith.constant 3.200000e+01 : f32
    %135 = vector.broadcast %cst_69 : f32 to vector<8x1xf32>
    %136 = arith.divf %134, %135 : vector<8x1xf32>
    %137 = vector.broadcast %129 : vector<8x1xf32> to vector<8x32xf32>
    %138 = arith.subf %121, %137 : vector<8x32xf32>
    %cst_70 = arith.constant 9.99999974E-6 : f32
    %139 = vector.broadcast %cst_70 : f32 to vector<8x1xf32>
    %140 = arith.addf %136, %139 : vector<8x1xf32>
    %141 = math.rsqrt %140 : vector<8x1xf32>
    %142 = vector.broadcast %141 : vector<8x1xf32> to vector<8x32xf32>
    %143 = arith.mulf %138, %142 : vector<8x32xf32>
    %144 = vector.broadcast %123 : vector<1x32xf32> to vector<8x32xf32>
    %145 = arith.mulf %143, %144 : vector<8x32xf32>
    %146 = vector.broadcast %125 : vector<1x32xf32> to vector<8x32xf32>
    %147 = arith.addf %145, %146 : vector<8x32xf32>
    %148 = arith.addf %147, %1 : vector<8x32xf32>
    %c1 = arith.constant 1 : index
    %c0_71 = arith.constant 0 : index
    %c0_72 = arith.constant 0 : index
    %149 = vector.load %arg3[%c1, %c0_71, %c0_72] : memref<2x32x32xf32, #tpu.memory_space<vmem>>, vector<1x32x32xf32>
    %150 = vector.shape_cast %149 : vector<1x32x32xf32> to vector<32x32xf32>
    %cst_73 = arith.constant dense<0.000000e+00> : vector<8x32xf32>
    %151 = tpu.matmul %148, %150, %cst_73 {dimension_numbers = #tpu.dot_dimension_numbers<[1], [0], [0], [1], [0, 0, 1, 1], [], []>} : vector<8x32xf32>, vector<32x32xf32>, vector<8x32xf32> -> vector<8x32xf32>
    %c1_74 = arith.constant 1 : index
    %c0_75 = arith.constant 0 : index
    %c0_76 = arith.constant 0 : index
    %152 = vector.load %arg4[%c1_74, %c0_75, %c0_76] : memref<2x1x32xf32, #tpu.memory_space<vmem>>, vector<1x1x32xf32>
    %153 = vector.shape_cast %152 : vector<1x1x32xf32> to vector<1x32xf32>
    %154 = vector.broadcast %153 : vector<1x32xf32> to vector<8x32xf32>
    %155 = arith.addf %151, %154 : vector<8x32xf32>
    %c1_77 = arith.constant 1 : index
    %c0_78 = arith.constant 0 : index
    %c0_79 = arith.constant 0 : index
    %156 = vector.load %arg5[%c1_77, %c0_78, %c0_79] : memref<2x32x32xf32, #tpu.memory_space<vmem>>, vector<1x32x32xf32>
    %157 = vector.shape_cast %156 : vector<1x32x32xf32> to vector<32x32xf32>
    %cst_80 = arith.constant dense<0.000000e+00> : vector<8x32xf32>
    %158 = tpu.matmul %148, %157, %cst_80 {dimension_numbers = #tpu.dot_dimension_numbers<[1], [0], [0], [1], [0, 0, 1, 1], [], []>} : vector<8x32xf32>, vector<32x32xf32>, vector<8x32xf32> -> vector<8x32xf32>
    %c1_81 = arith.constant 1 : index
    %c0_82 = arith.constant 0 : index
    %c0_83 = arith.constant 0 : index
    %159 = vector.load %arg6[%c1_81, %c0_82, %c0_83] : memref<2x1x32xf32, #tpu.memory_space<vmem>>, vector<1x1x32xf32>
    %160 = vector.shape_cast %159 : vector<1x1x32xf32> to vector<1x32xf32>
    %161 = vector.broadcast %160 : vector<1x32xf32> to vector<8x32xf32>
    %162 = arith.addf %158, %161 : vector<8x32xf32>
    %c1_84 = arith.constant 1 : index
    %c0_85 = arith.constant 0 : index
    %c0_86 = arith.constant 0 : index
    %163 = vector.load %arg7[%c1_84, %c0_85, %c0_86] : memref<2x32x32xf32, #tpu.memory_space<vmem>>, vector<1x32x32xf32>
    %164 = vector.shape_cast %163 : vector<1x32x32xf32> to vector<32x32xf32>
    %cst_87 = arith.constant dense<0.000000e+00> : vector<8x32xf32>
    %165 = tpu.matmul %147, %164, %cst_87 {dimension_numbers = #tpu.dot_dimension_numbers<[1], [0], [0], [1], [0, 0, 1, 1], [], []>} : vector<8x32xf32>, vector<32x32xf32>, vector<8x32xf32> -> vector<8x32xf32>
    %c1_88 = arith.constant 1 : index
    %c0_89 = arith.constant 0 : index
    %c0_90 = arith.constant 0 : index
    %166 = vector.load %arg8[%c1_88, %c0_89, %c0_90] : memref<2x1x32xf32, #tpu.memory_space<vmem>>, vector<1x1x32xf32>
    %167 = vector.shape_cast %166 : vector<1x1x32xf32> to vector<1x32xf32>
    %168 = vector.broadcast %167 : vector<1x32xf32> to vector<8x32xf32>
    %169 = arith.addf %165, %168 : vector<8x32xf32>
    %170 = vector.extract_strided_slice %155 {offsets = [0, 0], sizes = [8, 8], strides = [1, 1]} : vector<8x32xf32> to vector<8x8xf32>
    %171 = vector.extract_strided_slice %155 {offsets = [0, 8], sizes = [8, 8], strides = [1, 1]} : vector<8x32xf32> to vector<8x8xf32>
    %172 = vector.extract_strided_slice %155 {offsets = [0, 16], sizes = [8, 8], strides = [1, 1]} : vector<8x32xf32> to vector<8x8xf32>
    %173 = vector.extract_strided_slice %155 {offsets = [0, 24], sizes = [8, 8], strides = [1, 1]} : vector<8x32xf32> to vector<8x8xf32>
    %174 = vector.shape_cast %170 : vector<8x8xf32> to vector<1x8x8xf32>
    %175 = vector.shape_cast %171 : vector<8x8xf32> to vector<1x8x8xf32>
    %176 = vector.shape_cast %172 : vector<8x8xf32> to vector<1x8x8xf32>
    %177 = vector.shape_cast %173 : vector<8x8xf32> to vector<1x8x8xf32>
    %178 = tpu.concatenate %174, %175, %176, %177 in 0 : vector<1x8x8xf32>, vector<1x8x8xf32>, vector<1x8x8xf32>, vector<1x8x8xf32> -> vector<4x8x8xf32>
    %179 = vector.extract_strided_slice %162 {offsets = [0, 0], sizes = [8, 8], strides = [1, 1]} : vector<8x32xf32> to vector<8x8xf32>
    %180 = vector.extract_strided_slice %162 {offsets = [0, 8], sizes = [8, 8], strides = [1, 1]} : vector<8x32xf32> to vector<8x8xf32>
    %181 = vector.extract_strided_slice %162 {offsets = [0, 16], sizes = [8, 8], strides = [1, 1]} : vector<8x32xf32> to vector<8x8xf32>
    %182 = vector.extract_strided_slice %162 {offsets = [0, 24], sizes = [8, 8], strides = [1, 1]} : vector<8x32xf32> to vector<8x8xf32>
    %183 = vector.shape_cast %179 : vector<8x8xf32> to vector<1x8x8xf32>
    %184 = vector.shape_cast %180 : vector<8x8xf32> to vector<1x8x8xf32>
    %185 = vector.shape_cast %181 : vector<8x8xf32> to vector<1x8x8xf32>
    %186 = vector.shape_cast %182 : vector<8x8xf32> to vector<1x8x8xf32>
    %187 = tpu.concatenate %183, %184, %185, %186 in 0 : vector<1x8x8xf32>, vector<1x8x8xf32>, vector<1x8x8xf32>, vector<1x8x8xf32> -> vector<4x8x8xf32>
    %188 = vector.extract_strided_slice %169 {offsets = [0, 0], sizes = [8, 8], strides = [1, 1]} : vector<8x32xf32> to vector<8x8xf32>
    %189 = vector.extract_strided_slice %169 {offsets = [0, 8], sizes = [8, 8], strides = [1, 1]} : vector<8x32xf32> to vector<8x8xf32>
    %190 = vector.extract_strided_slice %169 {offsets = [0, 16], sizes = [8, 8], strides = [1, 1]} : vector<8x32xf32> to vector<8x8xf32>
    %191 = vector.extract_strided_slice %169 {offsets = [0, 24], sizes = [8, 8], strides = [1, 1]} : vector<8x32xf32> to vector<8x8xf32>
    %192 = vector.shape_cast %188 : vector<8x8xf32> to vector<1x8x8xf32>
    %193 = vector.shape_cast %189 : vector<8x8xf32> to vector<1x8x8xf32>
    %194 = vector.shape_cast %190 : vector<8x8xf32> to vector<1x8x8xf32>
    %195 = vector.shape_cast %191 : vector<8x8xf32> to vector<1x8x8xf32>
    %196 = tpu.concatenate %192, %193, %194, %195 in 0 : vector<1x8x8xf32>, vector<1x8x8xf32>, vector<1x8x8xf32>, vector<1x8x8xf32> -> vector<4x8x8xf32>
    "tpu.trace_start"() <{level = 10 : i32, message = "hsd,htd->hst"}> : () -> ()
    %cst_91 = arith.constant dense<0.000000e+00> : vector<4x8x8xf32>
    %197 = tpu.matmul %178, %187, %cst_91 {dimension_numbers = #tpu.dot_dimension_numbers<[2], [2], [1], [1], [0, 0, 0, 1, 1, 1], [0], [0]>} : vector<4x8x8xf32>, vector<4x8x8xf32>, vector<4x8x8xf32> -> vector<4x8x8xf32>
    "tpu.trace_stop"() : () -> ()
    %cst_92 = arith.constant dense<0xFF800000> : vector<4x8xf32>
    %198 = vector.multi_reduction <maximumf>, %197, %cst_92 [2] : vector<4x8x8xf32> to vector<4x8xf32>
    %199 = vector.shape_cast %198 : vector<4x8xf32> to vector<4x8x1xf32>
    %200 = vector.broadcast %199 : vector<4x8x1xf32> to vector<4x8x8xf32>
    %201 = arith.subf %197, %200 : vector<4x8x8xf32>
    %202 = math.exp %201 : vector<4x8x8xf32>
    %cst_93 = arith.constant dense<0.000000e+00> : vector<4x8xf32>
    %203 = vector.multi_reduction <add>, %202, %cst_93 [2] : vector<4x8x8xf32> to vector<4x8xf32>
    %204 = vector.shape_cast %203 : vector<4x8xf32> to vector<4x8x1xf32>
    %205 = vector.broadcast %204 : vector<4x8x1xf32> to vector<4x8x8xf32>
    %206 = arith.divf %202, %205 : vector<4x8x8xf32>
    "tpu.trace_start"() <{level = 10 : i32, message = "hst,htd->hsd"}> : () -> ()
    %cst_94 = arith.constant dense<0.000000e+00> : vector<4x8x8xf32>
    %207 = tpu.matmul %206, %196, %cst_94 {dimension_numbers = #tpu.dot_dimension_numbers<[2], [1], [1], [2], [0, 0, 0, 1, 1, 2], [0], [0]>} : vector<4x8x8xf32>, vector<4x8x8xf32>, vector<4x8x8xf32> -> vector<4x8x8xf32>
    "tpu.trace_stop"() : () -> ()
    %208 = vector.extract_strided_slice %207 {offsets = [0, 0, 0], sizes = [1, 8, 8], strides = [1, 1, 1]} : vector<4x8x8xf32> to vector<1x8x8xf32>
    %209 = vector.shape_cast %208 : vector<1x8x8xf32> to vector<8x8xf32>
    %210 = vector.extract_strided_slice %207 {offsets = [1, 0, 0], sizes = [1, 8, 8], strides = [1, 1, 1]} : vector<4x8x8xf32> to vector<1x8x8xf32>
    %211 = vector.shape_cast %210 : vector<1x8x8xf32> to vector<8x8xf32>
    %212 = vector.extract_strided_slice %207 {offsets = [2, 0, 0], sizes = [1, 8, 8], strides = [1, 1, 1]} : vector<4x8x8xf32> to vector<1x8x8xf32>
    %213 = vector.shape_cast %212 : vector<1x8x8xf32> to vector<8x8xf32>
    %214 = vector.extract_strided_slice %207 {offsets = [3, 0, 0], sizes = [1, 8, 8], strides = [1, 1, 1]} : vector<4x8x8xf32> to vector<1x8x8xf32>
    %215 = vector.shape_cast %214 : vector<1x8x8xf32> to vector<8x8xf32>
    %216 = tpu.concatenate %209, %211, %213, %215 in 1 : vector<8x8xf32>, vector<8x8xf32>, vector<8x8xf32>, vector<8x8xf32> -> vector<8x32xf32>
    %c1_95 = arith.constant 1 : index
    %c0_96 = arith.constant 0 : index
    %c0_97 = arith.constant 0 : index
    %217 = vector.load %arg9[%c1_95, %c0_96, %c0_97] : memref<2x32x32xf32, #tpu.memory_space<vmem>>, vector<1x32x32xf32>
    %218 = vector.shape_cast %217 : vector<1x32x32xf32> to vector<32x32xf32>
    %cst_98 = arith.constant dense<0.000000e+00> : vector<8x32xf32>
    %219 = tpu.matmul %216, %218, %cst_98 {dimension_numbers = #tpu.dot_dimension_numbers<[1], [0], [0], [1], [0, 0, 1, 1], [], []>} : vector<8x32xf32>, vector<32x32xf32>, vector<8x32xf32> -> vector<8x32xf32>
    %c1_99 = arith.constant 1 : index
    %c0_100 = arith.constant 0 : index
    %c0_101 = arith.constant 0 : index
    %220 = vector.load %arg10[%c1_99, %c0_100, %c0_101] : memref<2x1x32xf32, #tpu.memory_space<vmem>>, vector<1x1x32xf32>
    %221 = vector.shape_cast %220 : vector<1x1x32xf32> to vector<1x32xf32>
    %222 = vector.broadcast %221 : vector<1x32xf32> to vector<8x32xf32>
    %223 = arith.addf %219, %222 : vector<8x32xf32>
    %224 = arith.addf %147, %223 : vector<8x32xf32>
    %c1_102 = arith.constant 1 : index
    %c0_103 = arith.constant 0 : index
    %c0_104 = arith.constant 0 : index
    %225 = vector.load %arg15[%c1_102, %c0_103, %c0_104] : memref<2x1x32xf32, #tpu.memory_space<vmem>>, vector<1x1x32xf32>
    %226 = vector.shape_cast %225 : vector<1x1x32xf32> to vector<1x32xf32>
    %c1_105 = arith.constant 1 : index
    %c0_106 = arith.constant 0 : index
    %c0_107 = arith.constant 0 : index
    %227 = vector.load %arg16[%c1_105, %c0_106, %c0_107] : memref<2x1x32xf32, #tpu.memory_space<vmem>>, vector<1x1x32xf32>
    %228 = vector.shape_cast %227 : vector<1x1x32xf32> to vector<1x32xf32>
    %cst_108 = arith.constant dense<0.000000e+00> : vector<8xf32>
    %229 = vector.multi_reduction <add>, %224, %cst_108 [1] : vector<8x32xf32> to vector<8xf32>
    %230 = vector.shape_cast %229 : vector<8xf32> to vector<8x1xf32>
    %cst_109 = arith.constant 3.200000e+01 : f32
    %231 = vector.broadcast %cst_109 : f32 to vector<8x1xf32>
    %232 = arith.divf %230, %231 : vector<8x1xf32>
    %233 = vector.broadcast %232 : vector<8x1xf32> to vector<8x32xf32>
    %234 = arith.subf %224, %233 : vector<8x32xf32>
    %235 = arith.mulf %234, %234 : vector<8x32xf32>
    %cst_110 = arith.constant dense<0.000000e+00> : vector<8xf32>
    %236 = vector.multi_reduction <add>, %235, %cst_110 [1] : vector<8x32xf32> to vector<8xf32>
    %237 = vector.shape_cast %236 : vector<8xf32> to vector<8x1xf32>
    %cst_111 = arith.constant 3.200000e+01 : f32
    %238 = vector.broadcast %cst_111 : f32 to vector<8x1xf32>
    %239 = arith.divf %237, %238 : vector<8x1xf32>
    %240 = vector.broadcast %232 : vector<8x1xf32> to vector<8x32xf32>
    %241 = arith.subf %224, %240 : vector<8x32xf32>
    %cst_112 = arith.constant 9.99999974E-6 : f32
    %242 = vector.broadcast %cst_112 : f32 to vector<8x1xf32>
    %243 = arith.addf %239, %242 : vector<8x1xf32>
    %244 = math.rsqrt %243 : vector<8x1xf32>
    %245 = vector.broadcast %244 : vector<8x1xf32> to vector<8x32xf32>
    %246 = arith.mulf %241, %245 : vector<8x32xf32>
    %247 = vector.broadcast %226 : vector<1x32xf32> to vector<8x32xf32>
    %248 = arith.mulf %246, %247 : vector<8x32xf32>
    %249 = vector.broadcast %228 : vector<1x32xf32> to vector<8x32xf32>
    %250 = arith.addf %248, %249 : vector<8x32xf32>
    %c1_113 = arith.constant 1 : index
    %c0_114 = arith.constant 0 : index
    %c0_115 = arith.constant 0 : index
    %251 = vector.load %arg11[%c1_113, %c0_114, %c0_115] : memref<2x32x64xf32, #tpu.memory_space<vmem>>, vector<1x32x64xf32>
    %252 = vector.shape_cast %251 : vector<1x32x64xf32> to vector<32x64xf32>
    %cst_116 = arith.constant dense<0.000000e+00> : vector<8x64xf32>
    %253 = tpu.matmul %250, %252, %cst_116 {dimension_numbers = #tpu.dot_dimension_numbers<[1], [0], [0], [1], [0, 0, 1, 1], [], []>} : vector<8x32xf32>, vector<32x64xf32>, vector<8x64xf32> -> vector<8x64xf32>
    %c1_117 = arith.constant 1 : index
    %c0_118 = arith.constant 0 : index
    %c0_119 = arith.constant 0 : index
    %254 = vector.load %arg12[%c1_117, %c0_118, %c0_119] : memref<2x1x64xf32, #tpu.memory_space<vmem>>, vector<1x1x64xf32>
    %255 = vector.shape_cast %254 : vector<1x1x64xf32> to vector<1x64xf32>
    %256 = vector.broadcast %255 : vector<1x64xf32> to vector<8x64xf32>
    %257 = arith.addf %253, %256 : vector<8x64xf32>
    %cst_120 = arith.constant 0.000000e+00 : f32
    %258 = vector.broadcast %cst_120 : f32 to vector<8x64xf32>
    %259 = arith.maximumf %257, %258 : vector<8x64xf32>
    %c1_121 = arith.constant 1 : index
    %c0_122 = arith.constant 0 : index
    %c0_123 = arith.constant 0 : index
    %260 = vector.load %arg13[%c1_121, %c0_122, %c0_123] : memref<2x64x32xf32, #tpu.memory_space<vmem>>, vector<1x64x32xf32>
    %261 = vector.shape_cast %260 : vector<1x64x32xf32> to vector<64x32xf32>
    %cst_124 = arith.constant dense<0.000000e+00> : vector<8x32xf32>
    %262 = tpu.matmul %259, %261, %cst_124 {dimension_numbers = #tpu.dot_dimension_numbers<[1], [0], [0], [1], [0, 0, 1, 1], [], []>} : vector<8x64xf32>, vector<64x32xf32>, vector<8x32xf32> -> vector<8x32xf32>
    %c1_125 = arith.constant 1 : index
    %c0_126 = arith.constant 0 : index
    %c0_127 = arith.constant 0 : index
    %263 = vector.load %arg14[%c1_125, %c0_126, %c0_127] : memref<2x1x32xf32, #tpu.memory_space<vmem>>, vector<1x1x32xf32>
    %264 = vector.shape_cast %263 : vector<1x1x32xf32> to vector<1x32xf32>
    %265 = vector.broadcast %264 : vector<1x32xf32> to vector<8x32xf32>
    %266 = arith.addf %262, %265 : vector<8x32xf32>
    %267 = arith.addf %250, %266 : vector<8x32xf32>
    %c1_128 = arith.constant 1 : index
    %c0_129 = arith.constant 0 : index
    %c0_130 = arith.constant 0 : index
    %268 = vector.load %arg17[%c1_128, %c0_129, %c0_130] : memref<2x1x32xf32, #tpu.memory_space<vmem>>, vector<1x1x32xf32>
    %269 = vector.shape_cast %268 : vector<1x1x32xf32> to vector<1x32xf32>
    %c1_131 = arith.constant 1 : index
    %c0_132 = arith.constant 0 : index
    %c0_133 = arith.constant 0 : index
    %270 = vector.load %arg18[%c1_131, %c0_132, %c0_133] : memref<2x1x32xf32, #tpu.memory_space<vmem>>, vector<1x1x32xf32>
    %271 = vector.shape_cast %270 : vector<1x1x32xf32> to vector<1x32xf32>
    %cst_134 = arith.constant dense<0.000000e+00> : vector<8xf32>
    %272 = vector.multi_reduction <add>, %267, %cst_134 [1] : vector<8x32xf32> to vector<8xf32>
    %273 = vector.shape_cast %272 : vector<8xf32> to vector<8x1xf32>
    %cst_135 = arith.constant 3.200000e+01 : f32
    %274 = vector.broadcast %cst_135 : f32 to vector<8x1xf32>
    %275 = arith.divf %273, %274 : vector<8x1xf32>
    %276 = vector.broadcast %275 : vector<8x1xf32> to vector<8x32xf32>
    %277 = arith.subf %267, %276 : vector<8x32xf32>
    %278 = arith.mulf %277, %277 : vector<8x32xf32>
    %cst_136 = arith.constant dense<0.000000e+00> : vector<8xf32>
    %279 = vector.multi_reduction <add>, %278, %cst_136 [1] : vector<8x32xf32> to vector<8xf32>
    %280 = vector.shape_cast %279 : vector<8xf32> to vector<8x1xf32>
    %cst_137 = arith.constant 3.200000e+01 : f32
    %281 = vector.broadcast %cst_137 : f32 to vector<8x1xf32>
    %282 = arith.divf %280, %281 : vector<8x1xf32>
    %283 = vector.broadcast %275 : vector<8x1xf32> to vector<8x32xf32>
    %284 = arith.subf %267, %283 : vector<8x32xf32>
    %cst_138 = arith.constant 9.99999974E-6 : f32
    %285 = vector.broadcast %cst_138 : f32 to vector<8x1xf32>
    %286 = arith.addf %282, %285 : vector<8x1xf32>
    %287 = math.rsqrt %286 : vector<8x1xf32>
    %288 = vector.broadcast %287 : vector<8x1xf32> to vector<8x32xf32>
    %289 = arith.mulf %284, %288 : vector<8x32xf32>
    %290 = vector.broadcast %269 : vector<1x32xf32> to vector<8x32xf32>
    %291 = arith.mulf %289, %290 : vector<8x32xf32>
    %292 = vector.broadcast %271 : vector<1x32xf32> to vector<8x32xf32>
    %293 = arith.addf %291, %292 : vector<8x32xf32>
    %c0_139 = arith.constant 0 : index
    %c0_140 = arith.constant 0 : index
    %294 = vector.load %arg19[%c0_139, %c0_140] : memref<8x32xf32, #tpu.memory_space<vmem>>, vector<8x32xf32>
    tpu.vector_store %arg19[%c0_139, %c0_140], %293 {strides = array<i32>} : memref<8x32xf32, #tpu.memory_space<vmem>>, vector<8x32xf32>,
    return
  }
  func.func @transform_0(%arg0: i32) -> (i32, i32) {
    %c0_i32 = arith.constant 0 : i32
    %c0_i32_0 = arith.constant 0 : i32
    return %arg0, %c0_i32 : i32, i32
  }
  func.func @transform_1(%arg0: i32) -> (i32, i32) {
    %c0_i32 = arith.constant 0 : i32
    %c0_i32_0 = arith.constant 0 : i32
    return %arg0, %c0_i32 : i32, i32
  }
  func.func @transform_2(%arg0: i32) -> (i32, i32, i32) {
    %c0_i32 = arith.constant 0 : i32
    %c0_i32_0 = arith.constant 0 : i32
    %c0_i32_1 = arith.constant 0 : i32
    %c0_i32_2 = arith.constant 0 : i32
    return %c0_i32, %c0_i32_0, %c0_i32_1 : i32, i32, i32
  }
  func.func @transform_3(%arg0: i32) -> (i32, i32, i32) {
    %c0_i32 = arith.constant 0 : i32
    %c0_i32_0 = arith.constant 0 : i32
    %c0_i32_1 = arith.constant 0 : i32
    %c0_i32_2 = arith.constant 0 : i32
    return %c0_i32, %c0_i32_0, %c0_i32_1 : i32, i32, i32
  }
  func.func @transform_4(%arg0: i32) -> (i32, i32, i32) {
    %c0_i32 = arith.constant 0 : i32
    %c0_i32_0 = arith.constant 0 : i32
    %c0_i32_1 = arith.constant 0 : i32
    %c0_i32_2 = arith.constant 0 : i32
    return %c0_i32, %c0_i32_0, %c0_i32_1 : i32, i32, i32
  }
  func.func @transform_5(%arg0: i32) -> (i32, i32, i32) {
    %c0_i32 = arith.constant 0 : i32
    %c0_i32_0 = arith.constant 0 : i32
    %c0_i32_1 = arith.constant 0 : i32
    %c0_i32_2 = arith.constant 0 : i32
    return %c0_i32, %c0_i32_0, %c0_i32_1 : i32, i32, i32
  }
  func.func @transform_6(%arg0: i32) -> (i32, i32, i32) {
    %c0_i32 = arith.constant 0 : i32
    %c0_i32_0 = arith.constant 0 : i32
    %c0_i32_1 = arith.constant 0 : i32
    %c0_i32_2 = arith.constant 0 : i32
    return %c0_i32, %c0_i32_0, %c0_i32_1 : i32, i32, i32
  }
  func.func @transform_7(%arg0: i32) -> (i32, i32, i32) {
    %c0_i32 = arith.constant 0 : i32
    %c0_i32_0 = arith.constant 0 : i32
    %c0_i32_1 = arith.constant 0 : i32
    %c0_i32_2 = arith.constant 0 : i32
    return %c0_i32, %c0_i32_0, %c0_i32_1 : i32, i32, i32
  }
  func.func @transform_8(%arg0: i32) -> (i32, i32, i32) {
    %c0_i32 = arith.constant 0 : i32
    %c0_i32_0 = arith.constant 0 : i32
    %c0_i32_1 = arith.constant 0 : i32
    %c0_i32_2 = arith.constant 0 : i32
    return %c0_i32, %c0_i32_0, %c0_i32_1 : i32, i32, i32
  }
  func.func @transform_9(%arg0: i32) -> (i32, i32, i32) {
    %c0_i32 = arith.constant 0 : i32
    %c0_i32_0 = arith.constant 0 : i32
    %c0_i32_1 = arith.constant 0 : i32
    %c0_i32_2 = arith.constant 0 : i32
    return %c0_i32, %c0_i32_0, %c0_i32_1 : i32, i32, i32
  }
  func.func @transform_10(%arg0: i32) -> (i32, i32, i32) {
    %c0_i32 = arith.constant 0 : i32
    %c0_i32_0 = arith.constant 0 : i32
    %c0_i32_1 = arith.constant 0 : i32
    %c0_i32_2 = arith.constant 0 : i32
    return %c0_i32, %c0_i32_0, %c0_i32_1 : i32, i32, i32
  }
  func.func @transform_11(%arg0: i32) -> (i32, i32, i32) {
    %c0_i32 = arith.constant 0 : i32
    %c0_i32_0 = arith.constant 0 : i32
    %c0_i32_1 = arith.constant 0 : i32
    %c0_i32_2 = arith.constant 0 : i32
    return %c0_i32, %c0_i32_0, %c0_i32_1 : i32, i32, i32
  }
  func.func @transform_12(%arg0: i32) -> (i32, i32, i32) {
    %c0_i32 = arith.constant 0 : i32
    %c0_i32_0 = arith.constant 0 : i32
    %c0_i32_1 = arith.constant 0 : i32
    %c0_i32_2 = arith.constant 0 : i32
    return %c0_i32, %c0_i32_0, %c0_i32_1 : i32, i32, i32
  }
  func.func @transform_13(%arg0: i32) -> (i32, i32, i32) {
    %c0_i32 = arith.constant 0 : i32
    %c0_i32_0 = arith.constant 0 : i32
    %c0_i32_1 = arith.constant 0 : i32
    %c0_i32_2 = arith.constant 0 : i32
    return %c0_i32, %c0_i32_0, %c0_i32_1 : i32, i32, i32
  }
  func.func @transform_14(%arg0: i32) -> (i32, i32, i32) {
    %c0_i32 = arith.constant 0 : i32
    %c0_i32_0 = arith.constant 0 : i32
    %c0_i32_1 = arith.constant 0 : i32
    %c0_i32_2 = arith.constant 0 : i32
    return %c0_i32, %c0_i32_0, %c0_i32_1 : i32, i32, i32
  }
  func.func @transform_15(%arg0: i32) -> (i32, i32, i32) {
    %c0_i32 = arith.constant 0 : i32
    %c0_i32_0 = arith.constant 0 : i32
    %c0_i32_1 = arith.constant 0 : i32
    %c0_i32_2 = arith.constant 0 : i32
    return %c0_i32, %c0_i32_0, %c0_i32_1 : i32, i32, i32
  }
  func.func @transform_16(%arg0: i32) -> (i32, i32, i32) {
    %c0_i32 = arith.constant 0 : i32
    %c0_i32_0 = arith.constant 0 : i32
    %c0_i32_1 = arith.constant 0 : i32
    %c0_i32_2 = arith.constant 0 : i32
    return %c0_i32, %c0_i32_0, %c0_i32_1 : i32, i32, i32
  }
  func.func @transform_17(%arg0: i32) -> (i32, i32, i32) {
    %c0_i32 = arith.constant 0 : i32
    %c0_i32_0 = arith.constant 0 : i32
    %c0_i32_1 = arith.constant 0 : i32
    %c0_i32_2 = arith.constant 0 : i32
    return %c0_i32, %c0_i32_0, %c0_i32_1 : i32, i32, i32
  }
  func.func @transform_18(%arg0: i32) -> (i32, i32) {
    %c0_i32 = arith.constant 0 : i32
    %c0_i32_0 = arith.constant 0 : i32
    return %arg0, %c0_i32 : i32, i32
  }
}

</mosaic_0001>

<llo_original>
// kernel: tpu_custom_call.1
$region0: #{tpu_custom_call.1}
  #allocation0 [shape = 'u32[]', space=smem, size = 0x4, offset = 0x4, fixed_abs, tag = 'smem constant byte address 0x4 - core index']
  #allocation1 [shape = 'u32[144,128]{1,0:T(1,128)}', space=vmem, size = 0x12000, scoped, tag = 'internal scratch']
  %s0 = inlined_call_operand.hbm [shape: f32[16,32], index: 0, kind: input, shape index: {}]
  %s1 = inlined_call_operand.hbm [shape: f32[16,32], index: 1, kind: input, shape index: {}]
  %s2 = inlined_call_operand.vmem [shape: f32[2,32,32], index: 2, kind: input, shape index: {}]
  %s3 = inlined_call_operand.vmem [shape: f32[2,1,32], index: 3, kind: input, shape index: {}]
  %s4 = inlined_call_operand.vmem [shape: f32[2,32,32], index: 4, kind: input, shape index: {}]
  %s5 = inlined_call_operand.vmem [shape: f32[2,1,32], index: 5, kind: input, shape index: {}]
  %s6 = inlined_call_operand.vmem [shape: f32[2,32,32], index: 6, kind: input, shape index: {}]
  %s7 = inlined_call_operand.vmem [shape: f32[2,1,32], index: 7, kind: input, shape index: {}]
  %s8 = inlined_call_operand.hbm [shape: f32[2,32,32], index: 8, kind: input, shape index: {}]
  %s9 = inlined_call_operand.vmem [shape: f32[2,1,32], index: 9, kind: input, shape index: {}]
  %s10 = inlined_call_operand.hbm [shape: f32[2,32,64], index: 10, kind: input, shape index: {}]
  %s11 = inlined_call_operand.vmem [shape: f32[2,1,64], index: 11, kind: input, shape index: {}]
  %s12 = inlined_call_operand.vmem [shape: f32[2,64,32], index: 12, kind: input, shape index: {}]
  %s13 = inlined_call_operand.vmem [shape: f32[2,1,32], index: 13, kind: input, shape index: {}]
  %s14 = inlined_call_operand.vmem [shape: f32[2,1,32], index: 14, kind: input, shape index: {}]
  %s15 = inlined_call_operand.vmem [shape: f32[2,1,32], index: 15, kind: input, shape index: {}]
  %s16 = inlined_call_operand.vmem [shape: f32[2,1,32], index: 16, kind: input, shape index: {}]
  %s17 = inlined_call_operand.vmem [shape: f32[2,1,32], index: 17, kind: input, shape index: {}]
  %s18 = inlined_call_operand.hbm [shape: f32[16,32], index: 18, kind: output, shape index: {}]
  %s19 = sld [smem:[#allocation0]]
  $region121: #{tpu_custom_call.1} parent=0
    _
  %s21 = ssub.s32 1, %s19
  %s22 = scalar_select 0, %s21, %s19
  $region1: #{tpu_custom_call.1} parent=0
    #allocation2 [shape = 'u8[8192]{0}', space=vmem, size = 0x2000, scoped, tag = 'input window, operand 0']
    #allocation3 [shape = 's32[2]{0}', space=sflag, size = 0x8, scoped, tag = 'scoped memory for tpu_custom_call.1']
    #allocation4 [shape = 's32[2]{0}', space=sflag, size = 0x8, scoped, tag = 'scoped memory for tpu_custom_call.1']
    #allocation5 [shape = 'u8[8192]{0}', space=vmem, size = 0x2000, scoped, tag = 'input window, operand 1']
    #allocation6 [shape = 's32[2]{0}', space=sflag, size = 0x8, scoped, tag = 'scoped memory for tpu_custom_call.1']
    #allocation7 [shape = 'u8[32768]{0}', space=vmem, size = 0x8000, scoped, tag = 'input window, operand 8, single buffered']
    #allocation8 [shape = 'u8[32768]{0}', space=vmem, size = 0x8000, scoped, tag = 'input window, operand 10, single buffered']
    #allocation9 [shape = 's32[1]{0}', space=sflag, size = 0x4, scoped, tag = 'scoped memory for tpu_custom_call.1']
    #allocation10 [shape = 'u8[8192]{0}', space=vmem, size = 0x2000, scoped, tag = 'output window, operand 0']
    %23 = vsyncpa [#allocation3], 0
    %s24 = scalar_lea.sflag [#allocation3], 1
    %25 = vsyncpa %s24, 0
    %26 = vsyncpa [#allocation6], 0
    %s27 = scalar_lea.sflag [#allocation6], 1
    %28 = vsyncpa %s27, 0
    %29 = vsyncpa [#allocation9], 0
    %30 = vsyncpa [#allocation4], 0
    %s31 = scalar_lea.sflag [#allocation4], 1
    %32 = vsyncpa %s31, 0
    loop: start=0, step=1, limit=4
    $region2: #{tpu_custom_call.1} parent=1 // loop_pre_header
      _
    $region3: #{tpu_custom_call.1} parent=1 // loop_header
      %s34 = sphi 0, %s38
      %p35 = scmp.ge.s32.totalorder %s34, 4
      %s44 = sphi 0, %s46
      %s47 = sphi 0, %s44
      %s48 = sphi 0, %s47
      %s64 = sphi 0, %s48
      %s70 = sphi 0, %s72
      %s73 = sphi 0, %s70
      %s74 = sphi 0, %s73
      %s90 = sphi 0, %s74
      %s94 = sphi 0, %s94
      %s96 = sphi 0, %s94
      %s97 = sphi 0, %s96
      %s111 = sphi 0, %s97
      %s115 = sphi 0, %s115
      %s117 = sphi 0, %s115
      %s118 = sphi 0, %s117
      %s132 = sphi 0, %s118
      %s136 = sphi 0, %s136
      %s138 = sphi 0, %s136
      %s139 = sphi 0, %s138
      %s153 = sphi 0, %s139
      %s157 = sphi 0, %s157
      %s159 = sphi 0, %s157
      %s160 = sphi 0, %s159
      %s174 = sphi 0, %s160
      %s178 = sphi 0, %s178
      %s180 = sphi 0, %s178
      %s181 = sphi 0, %s180
      %s195 = sphi 0, %s181
      %s199 = sphi 0, %s199
      %s201 = sphi 0, %s199
      %s202 = sphi 0, %s201
      %s216 = sphi 0, %s202
      %s220 = sphi 0, %s220
      %s222 = sphi 0, %s220
      %s223 = sphi 0, %s222
      %s237 = sphi 0, %s223
      %s241 = sphi 0, %s241
      %s243 = sphi 0, %s241
      %s244 = sphi 0, %s243
      %s258 = sphi 0, %s244
      %s262 = sphi 0, %s262
      %s264 = sphi 0, %s262
      %s265 = sphi 0, %s264
      %s279 = sphi 0, %s265
      %s283 = sphi 0, %s283
      %s285 = sphi 0, %s283
      %s286 = sphi 0, %s285
      %s300 = sphi 0, %s286
      %s304 = sphi 0, %s304
      %s306 = sphi 0, %s304
      %s307 = sphi 0, %s306
      %s321 = sphi 0, %s307
      %s325 = sphi 0, %s325
      %s327 = sphi 0, %s325
      %s328 = sphi 0, %s327
      %s342 = sphi 0, %s328
      %s346 = sphi 0, %s346
      %s348 = sphi 0, %s346
      %s349 = sphi 0, %s348
      %s363 = sphi 0, %s349
      %s367 = sphi 0, %s367
      %s369 = sphi 0, %s367
      %s370 = sphi 0, %s369
      %s384 = sphi 0, %s370
      %s388 = sphi 0, %s388
      %s390 = sphi 0, %s388
      %s391 = sphi 0, %s390
      %s405 = sphi 0, %s391
      %s409 = sphi 0, %s409
      %s411 = sphi 0, %s409
      %s412 = sphi 0, %s411
      %s426 = sphi 0, %s412
      %s432 = sphi 0, %s434
      %s435 = sphi 0, %s432
      %s436 = sphi 0, %s435
      %s452 = sphi 0, %s436
    $region4: #{tpu_custom_call.1} parent=1 // loop_header_branch
      %37 = sbr.rel (%p35) target = $region8
    $region5: #{tpu_custom_call.1} parent=1 // loop_body
      %s39 = ssub.s32 %s34, 1
      %s40 = ssub.s32 %s34, 2
      %s41 = sadd.s32 %s34, 1
      %s42 = ssub.s32 %s34, %s41
      %p43 = scmp.eq.s32.totalorder %s42, 0
      %s45 = sadd.s32 %s44, 1
      %s46 = scalar_select %p43, %s44, %s45
      %p49 = pneg %p43
      %p50 = scmp.eq.s32.totalorder %s34, 1
      %p51 = por %p49, %p50
      %p52 = scmp.ne.s32.totalorder %s44, %s47
      %p53 = scmp.eq.s32.totalorder %s34, 0
      %p54 = por %p52, %p53
      %p55 = scmp.ne.s32.totalorder %s44, %s47
      %p56 = scmp.eq.s32.totalorder %s39, 1
      %p57 = por %p55, %p56
      %p58 = scmp.ne.s32.totalorder %s47, %s48
      %p59 = scmp.eq.s32.totalorder %s39, 0
      %p60 = por %p58, %p59
      %p61 = scmp.ne.s32.totalorder %s47, %s48
      %p62 = scmp.eq.s32.totalorder %s40, 1
      %p63 = por %p61, %p62
      %p65 = scmp.ne.s32.totalorder %s48, %s64
      %p66 = scmp.eq.s32.totalorder %s40, 0
      %p67 = por %p65, %p66
      %s68 = ssub.s32 %s34, %s41
      %p69 = scmp.eq.s32.totalorder %s68, 0
      %s71 = sadd.s32 %s70, 1
      %s72 = scalar_select %p69, %s70, %s71
      %p75 = pneg %p69
      %p76 = scmp.eq.s32.totalorder %s34, 1
      %p77 = por %p75, %p76
      %p78 = scmp.ne.s32.totalorder %s70, %s73
      %p79 = scmp.eq.s32.totalorder %s34, 0
      %p80 = por %p78, %p79
      %p81 = scmp.ne.s32.totalorder %s70, %s73
      %p82 = scmp.eq.s32.totalorder %s39, 1
      %p83 = por %p81, %p82
      %p84 = scmp.ne.s32.totalorder %s73, %s74
      %p85 = scmp.eq.s32.totalorder %s39, 0
      %p86 = por %p84, %p85
      %p87 = scmp.ne.s32.totalorder %s73, %s74
      %p88 = scmp.eq.s32.totalorder %s40, 1
      %p89 = por %p87, %p88
      %p91 = scmp.ne.s32.totalorder %s74, %s90
      %p92 = scmp.eq.s32.totalorder %s40, 0
      %p93 = por %p91, %p92
      %s95 = sadd.s32 %s94, 1
      %p98 = scmp.eq.s32.totalorder %s34, 1
      %p99 = scmp.ne.s32.totalorder %s94, %s96
      %p100 = scmp.eq.s32.totalorder %s34, 0
      %p101 = por %p99, %p100
      %p102 = scmp.ne.s32.totalorder %s94, %s96
      %p103 = scmp.eq.s32.totalorder %s39, 1
      %p104 = por %p102, %p103
      %p105 = scmp.ne.s32.totalorder %s96, %s97
      %p106 = scmp.eq.s32.totalorder %s39, 0
      %p107 = por %p105, %p106
      %p108 = scmp.ne.s32.totalorder %s96, %s97
      %p109 = scmp.eq.s32.totalorder %s40, 1
      %p110 = por %p108, %p109
      %p112 = scmp.ne.s32.totalorder %s97, %s111
      %p113 = scmp.eq.s32.totalorder %s40, 0
      %p114 = por %p112, %p113
      %s116 = sadd.s32 %s115, 1
      %p119 = scmp.eq.s32.totalorder %s34, 1
      %p120 = scmp.ne.s32.totalorder %s115, %s117
      %p121 = scmp.eq.s32.totalorder %s34, 0
      %p122 = por %p120, %p121
      %p123 = scmp.ne.s32.totalorder %s115, %s117
      %p124 = scmp.eq.s32.totalorder %s39, 1
      %p125 = por %p123, %p124
      %p126 = scmp.ne.s32.totalorder %s117, %s118
      %p127 = scmp.eq.s32.totalorder %s39, 0
      %p128 = por %p126, %p127
      %p129 = scmp.ne.s32.totalorder %s117, %s118
      %p130 = scmp.eq.s32.totalorder %s40, 1
      %p131 = por %p129, %p130
      %p133 = scmp.ne.s32.totalorder %s118, %s132
      %p134 = scmp.eq.s32.totalorder %s40, 0
      %p135 = por %p133, %p134
      %s137 = sadd.s32 %s136, 1
      %p140 = scmp.eq.s32.totalorder %s34, 1
      %p141 = scmp.ne.s32.totalorder %s136, %s138
      %p142 = scmp.eq.s32.totalorder %s34, 0
      %p143 = por %p141, %p142
      %p144 = scmp.ne.s32.totalorder %s136, %s138
      %p145 = scmp.eq.s32.totalorder %s39, 1
      %p146 = por %p144, %p145
      %p147 = scmp.ne.s32.totalorder %s138, %s139
      %p148 = scmp.eq.s32.totalorder %s39, 0
      %p149 = por %p147, %p148
      %p150 = scmp.ne.s32.totalorder %s138, %s139
      %p151 = scmp.eq.s32.totalorder %s40, 1
      %p152 = por %p150, %p151
      %p154 = scmp.ne.s32.totalorder %s139, %s153
      %p155 = scmp.eq.s32.totalorder %s40, 0
      %p156 = por %p154, %p155
      %s158 = sadd.s32 %s157, 1
      %p161 = scmp.eq.s32.totalorder %s34, 1
      %p162 = scmp.ne.s32.totalorder %s157, %s159
      %p163 = scmp.eq.s32.totalorder %s34, 0
      %p164 = por %p162, %p163
      %p165 = scmp.ne.s32.totalorder %s157, %s159
      %p166 = scmp.eq.s32.totalorder %s39, 1
      %p167 = por %p165, %p166
      %p168 = scmp.ne.s32.totalorder %s159, %s160
      %p169 = scmp.eq.s32.totalorder %s39, 0
      %p170 = por %p168, %p169
      %p171 = scmp.ne.s32.totalorder %s159, %s160
      %p172 = scmp.eq.s32.totalorder %s40, 1
      %p173 = por %p171, %p172
      %p175 = scmp.ne.s32.totalorder %s160, %s174
      %p176 = scmp.eq.s32.totalorder %s40, 0
      %p177 = por %p175, %p176
      %s179 = sadd.s32 %s178, 1
      %p182 = scmp.eq.s32.totalorder %s34, 1
      %p183 = scmp.ne.s32.totalorder %s178, %s180
      %p184 = scmp.eq.s32.totalorder %s34, 0
      %p185 = por %p183, %p184
      %p186 = scmp.ne.s32.totalorder %s178, %s180
      %p187 = scmp.eq.s32.totalorder %s39, 1
      %p188 = por %p186, %p187
      %p189 = scmp.ne.s32.totalorder %s180, %s181
      %p190 = scmp.eq.s32.totalorder %s39, 0
      %p191 = por %p189, %p190
      %p192 = scmp.ne.s32.totalorder %s180, %s181
      %p193 = scmp.eq.s32.totalorder %s40, 1
      %p194 = por %p192, %p193
      %p196 = scmp.ne.s32.totalorder %s181, %s195
      %p197 = scmp.eq.s32.totalorder %s40, 0
      %p198 = por %p196, %p197
      %s200 = sadd.s32 %s199, 1
      %p203 = scmp.eq.s32.totalorder %s34, 1
      %p204 = scmp.ne.s32.totalorder %s199, %s201
      %p205 = scmp.eq.s32.totalorder %s34, 0
      %p206 = por %p204, %p205
      %p207 = scmp.ne.s32.totalorder %s199, %s201
      %p208 = scmp.eq.s32.totalorder %s39, 1
      %p209 = por %p207, %p208
      %p210 = scmp.ne.s32.totalorder %s201, %s202
      %p211 = scmp.eq.s32.totalorder %s39, 0
      %p212 = por %p210, %p211
      %p213 = scmp.ne.s32.totalorder %s201, %s202
      %p214 = scmp.eq.s32.totalorder %s40, 1
      %p215 = por %p213, %p214
      %p217 = scmp.ne.s32.totalorder %s202, %s216
      %p218 = scmp.eq.s32.totalorder %s40, 0
      %p219 = por %p217, %p218
      %s221 = sadd.s32 %s220, 1
      %p224 = scmp.eq.s32.totalorder %s34, 1
      %p225 = scmp.ne.s32.totalorder %s220, %s222
      %p226 = scmp.eq.s32.totalorder %s34, 0
      %p227 = por %p225, %p226
      %p228 = scmp.ne.s32.totalorder %s220, %s222
      %p229 = scmp.eq.s32.totalorder %s39, 1
      %p230 = por %p228, %p229
      %p231 = scmp.ne.s32.totalorder %s222, %s223
      %p232 = scmp.eq.s32.totalorder %s39, 0
      %p233 = por %p231, %p232
      %p234 = scmp.ne.s32.totalorder %s222, %s223
      %p235 = scmp.eq.s32.totalorder %s40, 1
      %p236 = por %p234, %p235
      %p238 = scmp.ne.s32.totalorder %s223, %s237
      %p239 = scmp.eq.s32.totalorder %s40, 0
      %p240 = por %p238, %p239
      %s242 = sadd.s32 %s241, 1
      %p245 = scmp.eq.s32.totalorder %s34, 1
      %p246 = scmp.ne.s32.totalorder %s241, %s243
      %p247 = scmp.eq.s32.totalorder %s34, 0
      %p248 = por %p246, %p247
      %p249 = scmp.ne.s32.totalorder %s241, %s243
      %p250 = scmp.eq.s32.totalorder %s39, 1
      %p251 = por %p249, %p250
      %p252 = scmp.ne.s32.totalorder %s243, %s244
      %p253 = scmp.eq.s32.totalorder %s39, 0
      %p254 = por %p252, %p253
      %p255 = scmp.ne.s32.totalorder %s243, %s244
      %p256 = scmp.eq.s32.totalorder %s40, 1
      %p257 = por %p255, %p256
      %p259 = scmp.ne.s32.totalorder %s244, %s258
      %p260 = scmp.eq.s32.totalorder %s40, 0
      %p261 = por %p259, %p260
      %s263 = sadd.s32 %s262, 1
      %p266 = scmp.eq.s32.totalorder %s34, 1
      %p267 = scmp.ne.s32.totalorder %s262, %s264
      %p268 = scmp.eq.s32.totalorder %s34, 0
      %p269 = por %p267, %p268
      %p270 = scmp.ne.s32.totalorder %s262, %s264
      %p271 = scmp.eq.s32.totalorder %s39, 1
      %p272 = por %p270, %p271
      %p273 = scmp.ne.s32.totalorder %s264, %s265
      %p274 = scmp.eq.s32.totalorder %s39, 0
      %p275 = por %p273, %p274
      %p276 = scmp.ne.s32.totalorder %s264, %s265
      %p277 = scmp.eq.s32.totalorder %s40, 1
      %p278 = por %p276, %p277
      %p280 = scmp.ne.s32.totalorder %s265, %s279
      %p281 = scmp.eq.s32.totalorder %s40, 0
      %p282 = por %p280, %p281
      %s284 = sadd.s32 %s283, 1
      %p287 = scmp.eq.s32.totalorder %s34, 1
      %p288 = scmp.ne.s32.totalorder %s283, %s285
      %p289 = scmp.eq.s32.totalorder %s34, 0
      %p290 = por %p288, %p289
      %p291 = scmp.ne.s32.totalorder %s283, %s285
      %p292 = scmp.eq.s32.totalorder %s39, 1
      %p293 = por %p291, %p292
      %p294 = scmp.ne.s32.totalorder %s285, %s286
      %p295 = scmp.eq.s32.totalorder %s39, 0
      %p296 = por %p294, %p295
      %p297 = scmp.ne.s32.totalorder %s285, %s286
      %p298 = scmp.eq.s32.totalorder %s40, 1
      %p299 = por %p297, %p298
      %p301 = scmp.ne.s32.totalorder %s286, %s300
      %p302 = scmp.eq.s32.totalorder %s40, 0
      %p303 = por %p301, %p302
      %s305 = sadd.s32 %s304, 1
      %p308 = scmp.eq.s32.totalorder %s34, 1
      %p309 = scmp.ne.s32.totalorder %s304, %s306
      %p310 = scmp.eq.s32.totalorder %s34, 0
      %p311 = por %p309, %p310
      %p312 = scmp.ne.s32.totalorder %s304, %s306
      %p313 = scmp.eq.s32.totalorder %s39, 1
      %p314 = por %p312, %p313
      %p315 = scmp.ne.s32.totalorder %s306, %s307
      %p316 = scmp.eq.s32.totalorder %s39, 0
      %p317 = por %p315, %p316
      %p318 = scmp.ne.s32.totalorder %s306, %s307
      %p319 = scmp.eq.s32.totalorder %s40, 1
      %p320 = por %p318, %p319
      %p322 = scmp.ne.s32.totalorder %s307, %s321
      %p323 = scmp.eq.s32.totalorder %s40, 0
      %p324 = por %p322, %p323
      %s326 = sadd.s32 %s325, 1
      %p329 = scmp.eq.s32.totalorder %s34, 1
      %p330 = scmp.ne.s32.totalorder %s325, %s327
      %p331 = scmp.eq.s32.totalorder %s34, 0
      %p332 = por %p330, %p331
      %p333 = scmp.ne.s32.totalorder %s325, %s327
      %p334 = scmp.eq.s32.totalorder %s39, 1
      %p335 = por %p333, %p334
      %p336 = scmp.ne.s32.totalorder %s327, %s328
      %p337 = scmp.eq.s32.totalorder %s39, 0
      %p338 = por %p336, %p337
      %p339 = scmp.ne.s32.totalorder %s327, %s328
      %p340 = scmp.eq.s32.totalorder %s40, 1
      %p341 = por %p339, %p340
      %p343 = scmp.ne.s32.totalorder %s328, %s342
      %p344 = scmp.eq.s32.totalorder %s40, 0
      %p345 = por %p343, %p344
      %s347 = sadd.s32 %s346, 1
      %p350 = scmp.eq.s32.totalorder %s34, 1
      %p351 = scmp.ne.s32.totalorder %s346, %s348
      %p352 = scmp.eq.s32.totalorder %s34, 0
      %p353 = por %p351, %p352
      %p354 = scmp.ne.s32.totalorder %s346, %s348
      %p355 = scmp.eq.s32.totalorder %s39, 1
      %p356 = por %p354, %p355
      %p357 = scmp.ne.s32.totalorder %s348, %s349
      %p358 = scmp.eq.s32.totalorder %s39, 0
      %p359 = por %p357, %p358
      %p360 = scmp.ne.s32.totalorder %s348, %s349
      %p361 = scmp.eq.s32.totalorder %s40, 1
      %p362 = por %p360, %p361
      %p364 = scmp.ne.s32.totalorder %s349, %s363
      %p365 = scmp.eq.s32.totalorder %s40, 0
      %p366 = por %p364, %p365
      %s368 = sadd.s32 %s367, 1
      %p371 = scmp.eq.s32.totalorder %s34, 1
      %p372 = scmp.ne.s32.totalorder %s367, %s369
      %p373 = scmp.eq.s32.totalorder %s34, 0
      %p374 = por %p372, %p373
      %p375 = scmp.ne.s32.totalorder %s367, %s369
      %p376 = scmp.eq.s32.totalorder %s39, 1
      %p377 = por %p375, %p376
      %p378 = scmp.ne.s32.totalorder %s369, %s370
      %p379 = scmp.eq.s32.totalorder %s39, 0
      %p380 = por %p378, %p379
      %p381 = scmp.ne.s32.totalorder %s369, %s370
      %p382 = scmp.eq.s32.totalorder %s40, 1
      %p383 = por %p381, %p382
      %p385 = scmp.ne.s32.totalorder %s370, %s384
      %p386 = scmp.eq.s32.totalorder %s40, 0
      %p387 = por %p385, %p386
      %s389 = sadd.s32 %s388, 1
      %p392 = scmp.eq.s32.totalorder %s34, 1
      %p393 = scmp.ne.s32.totalorder %s388, %s390
      %p394 = scmp.eq.s32.totalorder %s34, 0
      %p395 = por %p393, %p394
      %p396 = scmp.ne.s32.totalorder %s388, %s390
      %p397 = scmp.eq.s32.totalorder %s39, 1
      %p398 = por %p396, %p397
      %p399 = scmp.ne.s32.totalorder %s390, %s391
      %p400 = scmp.eq.s32.totalorder %s39, 0
      %p401 = por %p399, %p400
      %p402 = scmp.ne.s32.totalorder %s390, %s391
      %p403 = scmp.eq.s32.totalorder %s40, 1
      %p404 = por %p402, %p403
      %p406 = scmp.ne.s32.totalorder %s391, %s405
      %p407 = scmp.eq.s32.totalorder %s40, 0
      %p408 = por %p406, %p407
      %s410 = sadd.s32 %s409, 1
      %p413 = scmp.eq.s32.totalorder %s34, 1
      %p414 = scmp.ne.s32.totalorder %s409, %s411
      %p415 = scmp.eq.s32.totalorder %s34, 0
      %p416 = por %p414, %p415
      %p417 = scmp.ne.s32.totalorder %s409, %s411
      %p418 = scmp.eq.s32.totalorder %s39, 1
      %p419 = por %p417, %p418
      %p420 = scmp.ne.s32.totalorder %s411, %s412
      %p421 = scmp.eq.s32.totalorder %s39, 0
      %p422 = por %p420, %p421
      %p423 = scmp.ne.s32.totalorder %s411, %s412
      %p424 = scmp.eq.s32.totalorder %s40, 1
      %p425 = por %p423, %p424
      %p427 = scmp.ne.s32.totalorder %s412, %s426
      %p428 = scmp.eq.s32.totalorder %s40, 0
      %p429 = por %p427, %p428
      %s430 = ssub.s32 %s34, %s41
      %p431 = scmp.eq.s32.totalorder %s430, 0
      %s433 = sadd.s32 %s432, 1
      %s434 = scalar_select %p431, %s432, %s433
      %p437 = pneg %p431
      %p438 = scmp.eq.s32.totalorder %s34, 1
      %p439 = por %p437, %p438
      %p440 = scmp.ne.s32.totalorder %s432, %s435
      %p441 = scmp.eq.s32.totalorder %s34, 0
      %p442 = por %p440, %p441
      %p443 = scmp.ne.s32.totalorder %s432, %s435
      %p444 = scmp.eq.s32.totalorder %s39, 1
      %p445 = por %p443, %p444
      %p446 = scmp.ne.s32.totalorder %s435, %s436
      %p447 = scmp.eq.s32.totalorder %s39, 0
      %p448 = por %p446, %p447
      %p449 = scmp.ne.s32.totalorder %s435, %s436
      %p450 = scmp.eq.s32.totalorder %s40, 1
      %p451 = por %p449, %p450
      %p453 = scmp.ne.s32.totalorder %s436, %s452
      %p454 = scmp.eq.s32.totalorder %s40, 0
      %p455 = por %p453, %p454
      %p456 = scmp.le.s32.totalorder 1, %s34
      %p457 = scmp.lt.s32.totalorder %s34, 3
      %p458 = pnand %p456, %p457
      %p459 = pneg %p458
      // Predicated region
      $region9: #{tpu_custom_call.1} parent=5 // pred_check
        _
      $region10: #{tpu_custom_call.1} parent=5 // pred_check_branch
        %461 = sbr.rel (%p458) target = $region12
      $region11: #{tpu_custom_call.1} parent=5 // pred_region
        %s462 = ssub.s32 %s34, 1
        // Predicated region
        $region13: #{tpu_custom_call.1} parent=11 // pred_check
          %p463 = pneg %p107
        $region14: #{tpu_custom_call.1} parent=11 // pred_check_branch
          %465 = sbr.rel (%p463) target = $region16
        $region15: #{tpu_custom_call.1} parent=11 // pred_region
          _
        $region16: #{tpu_custom_call.1} parent=11 // pred_fallthru
          _
        // Predicated region
        $region17: #{tpu_custom_call.1} parent=11 // pred_check
          %p466 = pneg %p128
        $region18: #{tpu_custom_call.1} parent=11 // pred_check_branch
          %468 = sbr.rel (%p466) target = $region20
        $region19: #{tpu_custom_call.1} parent=11 // pred_region
          _
        $region20: #{tpu_custom_call.1} parent=11 // pred_fallthru
          _
        // Predicated region
        $region21: #{tpu_custom_call.1} parent=11 // pred_check
          %p469 = pneg %p149
        $region22: #{tpu_custom_call.1} parent=11 // pred_check_branch
          %471 = sbr.rel (%p469) target = $region24
        $region23: #{tpu_custom_call.1} parent=11 // pred_region
          _
        $region24: #{tpu_custom_call.1} parent=11 // pred_fallthru
          _
        // Predicated region
        $region25: #{tpu_custom_call.1} parent=11 // pred_check
          %p472 = pneg %p170
        $region26: #{tpu_custom_call.1} parent=11 // pred_check_branch
          %474 = sbr.rel (%p472) target = $region28
        $region27: #{tpu_custom_call.1} parent=11 // pred_region
          _
        $region28: #{tpu_custom_call.1} parent=11 // pred_fallthru
          _
        // Predicated region
        $region29: #{tpu_custom_call.1} parent=11 // pred_check
          %p475 = pneg %p191
        $region30: #{tpu_custom_call.1} parent=11 // pred_check_branch
          %477 = sbr.rel (%p475) target = $region32
        $region31: #{tpu_custom_call.1} parent=11 // pred_region
          _
        $region32: #{tpu_custom_call.1} parent=11 // pred_fallthru
          _
        // Predicated region
        $region33: #{tpu_custom_call.1} parent=11 // pred_check
          %p478 = pneg %p212
        $region34: #{tpu_custom_call.1} parent=11 // pred_check_branch
          %480 = sbr.rel (%p478) target = $region36
        $region35: #{tpu_custom_call.1} parent=11 // pred_region
          _
        $region36: #{tpu_custom_call.1} parent=11 // pred_fallthru
          _
        // Predicated region
        $region37: #{tpu_custom_call.1} parent=11 // pred_check
          %p481 = pneg %p233
        $region38: #{tpu_custom_call.1} parent=11 // pred_check_branch
          %483 = sbr.rel (%p481) target = $region40
        $region39: #{tpu_custom_call.1} parent=11 // pred_region
          %s485 = ssub.s32 1024, 1024
          %486 = vsyncadd [#allocation6], %s485
          %s487 = sshll.u32 [#allocation7], 4
          %s488 = int_to_ptr.vmem [resolvable:$true] %s487
          %493 = dma.hbm_to_vmem [thread:$0]  %s8, 1024, %s488, [#allocation6], 128, 128, 8
        $region40: #{tpu_custom_call.1} parent=11 // pred_fallthru
          _
        // Predicated region
        $region41: #{tpu_custom_call.1} parent=11 // pred_check
          %p494 = pneg %p254
        $region42: #{tpu_custom_call.1} parent=11 // pred_check_branch
          %496 = sbr.rel (%p494) target = $region44
        $region43: #{tpu_custom_call.1} parent=11 // pred_region
          _
        $region44: #{tpu_custom_call.1} parent=11 // pred_fallthru
          _
        // Predicated region
        $region45: #{tpu_custom_call.1} parent=11 // pred_check
          %p497 = pneg %p275
        $region46: #{tpu_custom_call.1} parent=11 // pred_check_branch
          %499 = sbr.rel (%p497) target = $region48
        $region47: #{tpu_custom_call.1} parent=11 // pred_region
          %s501 = ssub.s32 1024, 1024
          %502 = vsyncadd [#allocation9], %s501
          %s503 = sshll.u32 [#allocation8], 4
          %s504 = int_to_ptr.vmem [resolvable:$true] %s503
          %509 = dma.hbm_to_vmem [thread:$0]  %s10, 1024, %s504, [#allocation9], 128, 128, 8
        $region48: #{tpu_custom_call.1} parent=11 // pred_fallthru
          _
        // Predicated region
        $region49: #{tpu_custom_call.1} parent=11 // pred_check
          %p510 = pneg %p296
        $region50: #{tpu_custom_call.1} parent=11 // pred_check_branch
          %512 = sbr.rel (%p510) target = $region52
        $region51: #{tpu_custom_call.1} parent=11 // pred_region
          _
        $region52: #{tpu_custom_call.1} parent=11 // pred_fallthru
          _
        // Predicated region
        $region53: #{tpu_custom_call.1} parent=11 // pred_check
          %p513 = pneg %p317
        $region54: #{tpu_custom_call.1} parent=11 // pred_check_branch
          %515 = sbr.rel (%p513) target = $region56
        $region55: #{tpu_custom_call.1} parent=11 // pred_region
          _
        $region56: #{tpu_custom_call.1} parent=11 // pred_fallthru
          _
        // Predicated region
        $region57: #{tpu_custom_call.1} parent=11 // pred_check
          %p516 = pneg %p338
        $region58: #{tpu_custom_call.1} parent=11 // pred_check_branch
          %518 = sbr.rel (%p516) target = $region60
        $region59: #{tpu_custom_call.1} parent=11 // pred_region
          _
        $region60: #{tpu_custom_call.1} parent=11 // pred_fallthru
          _
        // Predicated region
        $region61: #{tpu_custom_call.1} parent=11 // pred_check
          %p519 = pneg %p359
        $region62: #{tpu_custom_call.1} parent=11 // pred_check_branch
          %521 = sbr.rel (%p519) target = $region64
        $region63: #{tpu_custom_call.1} parent=11 // pred_region
          _
        $region64: #{tpu_custom_call.1} parent=11 // pred_fallthru
          _
        // Predicated region
        $region65: #{tpu_custom_call.1} parent=11 // pred_check
          %p522 = pneg %p380
        $region66: #{tpu_custom_call.1} parent=11 // pred_check_branch
          %524 = sbr.rel (%p522) target = $region68
        $region67: #{tpu_custom_call.1} parent=11 // pred_region
          _
        $region68: #{tpu_custom_call.1} parent=11 // pred_fallthru
          _
        // Predicated region
        $region69: #{tpu_custom_call.1} parent=11 // pred_check
          %p525 = pneg %p401
        $region70: #{tpu_custom_call.1} parent=11 // pred_check_branch
          %527 = sbr.rel (%p525) target = $region72
        $region71: #{tpu_custom_call.1} parent=11 // pred_region
          _
        $region72: #{tpu_custom_call.1} parent=11 // pred_fallthru
          _
        // Predicated region
        $region73: #{tpu_custom_call.1} parent=11 // pred_check
          %p528 = pneg %p422
        $region74: #{tpu_custom_call.1} parent=11 // pred_check_branch
          %530 = sbr.rel (%p528) target = $region76
        $region75: #{tpu_custom_call.1} parent=11 // pred_region
          _
        $region76: #{tpu_custom_call.1} parent=11 // pred_fallthru
          _
      $region12: #{tpu_custom_call.1} parent=5 // pred_fallthru
        _
      %p531 = scmp.lt.s32.totalorder %s34, 2
      // Predicated region
      $region77: #{tpu_custom_call.1} parent=5 // pred_check
        %p532 = pneg %p531
      $region78: #{tpu_custom_call.1} parent=5 // pred_check_branch
        %534 = sbr.rel (%p532) target = $region80
      $region79: #{tpu_custom_call.1} parent=5 // pred_region
        // Predicated region
        $region81: #{tpu_custom_call.1} parent=79 // pred_check
          %p535 = pneg %p54
        $region82: #{tpu_custom_call.1} parent=79 // pred_check_branch
          %537 = sbr.rel (%p535) target = $region84
        $region83: #{tpu_custom_call.1} parent=79 // pred_region
          %s538 = sand.u32 %s44, 1
          %s539 = scalar_lea.sflag [#allocation3], %s538
          %s540 = sand.u32 %s44, 1
          %s541 = smul.addr %s540, 8
          %s542 = scalar_lea.vmem [#allocation2], %s541
          %s544 = ssub.s32 128, 128
          %545 = vsyncadd %s539, %s544
          %s546 = smul.addr %s34, 128
          %s547 = scalar_lea.hbm %s0, %s546
          %s549 = sshll.u32 %s542, 4
          %s550 = int_to_ptr.vmem [resolvable:$true] %s549
          %552 = dma.hbm_to_vmem [thread:$0]  %s547, 128, %s550, %s539
        $region84: #{tpu_custom_call.1} parent=79 // pred_fallthru
          _
        // Predicated region
        $region85: #{tpu_custom_call.1} parent=79 // pred_check
          %p553 = pneg %p80
        $region86: #{tpu_custom_call.1} parent=79 // pred_check_branch
          %555 = sbr.rel (%p553) target = $region88
        $region87: #{tpu_custom_call.1} parent=79 // pred_region
          %s556 = sand.u32 %s34, 1
          %s557 = scalar_lea.sflag [#allocation6], %s556
          %s558 = sand.u32 %s70, 1
          %s559 = smul.addr %s558, 8
          %s560 = scalar_lea.vmem [#allocation5], %s559
          %s562 = ssub.s32 128, 128
          %563 = vsyncadd %s557, %s562
          %s564 = smul.addr %s34, 128
          %s565 = scalar_lea.hbm %s1, %s564
          %s567 = sshll.u32 %s560, 4
          %s568 = int_to_ptr.vmem [resolvable:$true] %s567
          %570 = dma.hbm_to_vmem [thread:$0]  %s565, 128, %s568, %s557
        $region88: #{tpu_custom_call.1} parent=79 // pred_fallthru
          _
      $region80: #{tpu_custom_call.1} parent=5 // pred_fallthru
        _
      %p571 = scmp.le.s32.totalorder 1, %s34
      %p572 = scmp.lt.s32.totalorder %s34, 3
      %p573 = pnand %p571, %p572
      %p574 = pneg %p573
      // Predicated region
      $region89: #{tpu_custom_call.1} parent=5 // pred_check
        _
      $region90: #{tpu_custom_call.1} parent=5 // pred_check_branch
        %576 = sbr.rel (%p573) target = $region92
      $region91: #{tpu_custom_call.1} parent=5 // pred_region
        %s577 = ssub.s32 %s34, 1
        %s578 = sand.u32 %s47, 1
        %s579 = scalar_lea.sflag [#allocation3], %s578
        %s580 = sand.u32 %s47, 1
        %s581 = smul.addr %s580, 8
        %s582 = scalar_lea.vmem [#allocation2], %s581
        // Predicated region
        $region93: #{tpu_custom_call.1} parent=91 // pred_check
          %p583 = pneg %p60
        $region94: #{tpu_custom_call.1} parent=91 // pred_check_branch
          %585 = sbr.rel (%p583) target = $region96
        $region95: #{tpu_custom_call.1} parent=91 // pred_region
          %586 = dma.done %s579, 128
        $region96: #{tpu_custom_call.1} parent=91 // pred_fallthru
          _
        %s587 = sand.u32 %s39, 1
        %s588 = scalar_lea.sflag [#allocation6], %s587
        %s589 = sand.u32 %s73, 1
        %s590 = smul.addr %s589, 8
        %s591 = scalar_lea.vmem [#allocation5], %s590
        // Predicated region
        $region97: #{tpu_custom_call.1} parent=91 // pred_check
          %p592 = pneg %p86
        $region98: #{tpu_custom_call.1} parent=91 // pred_check_branch
          %594 = sbr.rel (%p592) target = $region100
        $region99: #{tpu_custom_call.1} parent=91 // pred_region
          %595 = dma.done %s588, 128
        $region100: #{tpu_custom_call.1} parent=91 // pred_fallthru
          _
        // Predicated region
        $region101: #{tpu_custom_call.1} parent=91 // pred_check
          %p596 = pneg %p233
        $region102: #{tpu_custom_call.1} parent=91 // pred_check_branch
          %598 = sbr.rel (%p596) target = $region104
        $region103: #{tpu_custom_call.1} parent=91 // pred_region
          %599 = dma.done [#allocation6], 1024
        $region104: #{tpu_custom_call.1} parent=91 // pred_fallthru
          _
        // Predicated region
        $region105: #{tpu_custom_call.1} parent=91 // pred_check
          %p600 = pneg %p275
        $region106: #{tpu_custom_call.1} parent=91 // pred_check_branch
          %602 = sbr.rel (%p600) target = $region108
        $region107: #{tpu_custom_call.1} parent=91 // pred_region
          %603 = dma.done [#allocation9], 1024
        $region108: #{tpu_custom_call.1} parent=91 // pred_fallthru
          _
        %s604 = sand.u32 %s47, 1
        %s605 = scalar_lea.sflag [#allocation3], %s604
        %s606 = sand.u32 %s47, 1
        %s607 = smul.addr %s606, 8
        %s608 = scalar_lea.vmem [#allocation2], %s607
        %p609 = pneg %p60
        %p610 = pneg %p57
        %s611 = sand.u32 %s39, 1
        %s612 = scalar_lea.sflag [#allocation6], %s611
        %s613 = sand.u32 %s73, 1
        %s614 = smul.addr %s613, 8
        %s615 = scalar_lea.vmem [#allocation5], %s614
        %p616 = pneg %p86
        %p617 = pneg %p83
        %p618 = pneg %p107
        %p619 = pneg %p104
        %p620 = pneg %p128
        %p621 = pneg %p125
        %p622 = pneg %p149
        %p623 = pneg %p146
        %p624 = pneg %p170
        %p625 = pneg %p167
        %p626 = pneg %p191
        %p627 = pneg %p188
        %p628 = pneg %p212
        %p629 = pneg %p209
        %p630 = pneg %p233
        %p631 = pneg %p230
        %p632 = pneg %p254
        %p633 = pneg %p251
        %p634 = pneg %p275
        %p635 = pneg %p272
        %p636 = pneg %p296
        %p637 = pneg %p293
        %p638 = pneg %p317
        %p639 = pneg %p314
        %p640 = pneg %p338
        %p641 = pneg %p335
        %p642 = pneg %p359
        %p643 = pneg %p356
        %p644 = pneg %p380
        %p645 = pneg %p377
        %p646 = pneg %p401
        %p647 = pneg %p398
        %p648 = pneg %p422
        %p649 = pneg %p419
        %p650 = pneg %p448
        %p651 = pneg %p445
        %s652 = sand.u32 %s435, 1
        %s653 = scalar_lea.sflag [#allocation4], %s652
        %s654 = sand.u32 %s435, 1
        %s655 = smul.addr %s654, 8
        %s656 = scalar_lea.vmem [#allocation10], %s655
        %v657 = vld [vmem:[%s582] sm:$0xff]
        %v658 = vld [vmem:[%s591] sm:$0xff]
        %v659 = vadd.f32 %v657, %v658
        %v660 = vld [vmem:[%s2] sm:$0xff]
        %v661 = vld [vmem:[%s2 + $0x8] sm:$0xff]
        %v662 = vld [vmem:[%s2 + $0x10] sm:$0xff]
        %v663 = vld [vmem:[%s2 + $0x18] sm:$0xff]
        %v664 = vld [vmem:[%s3] sm:$0x1]
        %v666 = vlaneseq
        %v667 = vshrl.u32 %v666, 7
        %v668 = vsub.s32 0, %v667
        %v669 = vrot.slane %v664, %v668
        %vm671 = vcmask 261120
        %v673 = vsel %vm671, %v659, 0
        %675 = vmatprep.subr.mxu0 0.0
        %676 = vmatpush1.msra.mxu0 0.0
        %677 = vmatprep.subr.mxu0 0.0
        %678 = vmatpush1.msra.mxu0 0.0
        %679 = vmatprep.subr.mxu0 0.0
        %680 = vmatpush1.msra.mxu0 0.0
        %681 = vmatprep.subr.mxu0 0.0
        %682 = vmatpush1.msra.mxu0 0.0
        %683 = vmatprep.subr.mxu0 0.0
        %684 = vmatpush1.msra.mxu0 0.0
        %685 = vmatprep.subr.mxu0 0.0
        %686 = vmatpush1.msra.mxu0 0.0
        %687 = vmatprep.subr.mxu0 0.0
        %688 = vmatpush1.msra.mxu0 0.0
        %689 = vmatprep.subr.mxu0 0.0
        %690 = vmatpush1.msra.mxu0 0.0
        %691 = vmatprep.subr.mxu0 0.0
        %692 = vmatpush1.msra.mxu0 0.0
        %693 = vmatprep.subr.mxu0 0.0
        %694 = vmatpush1.msra.mxu0 0.0
        %695 = vmatprep.subr.mxu0 0.0
        %696 = vmatpush1.msra.mxu0 0.0
        %697 = vmatprep.subr.mxu0 0.0
        %698 = vmatpush1.msra.mxu0 0.0
        %699 = vmatprep.subr.mxu0 0.0
        %700 = vmatpush1.msra.mxu0 %v663
        %701 = vmatprep.subr.mxu0 0.0
        %702 = vmatpush1.msra.mxu0 %v662
        %703 = vmatprep.subr.mxu0 0.0
        %704 = vmatpush1.msra.mxu0 %v661
        %705 = vmatprep.subr.mxu0 0.0
        %706 = vmatpush1.msra.mxu0 %v660
        %707 = vmatprep.subr.mxu0 0.0
        %708 = vmatpush2.msra.mxu0 0.0
        %709 = vmatprep.subr.mxu0 0.0
        %710 = vmatpush2.msra.mxu0 0.0
        %711 = vmatprep.subr.mxu0 0.0
        %712 = vmatpush2.msra.mxu0 0.0
        %713 = vmatprep.subr.mxu0 0.0
        %714 = vmatpush2.msra.mxu0 0.0
        %715 = vmatprep.subr.mxu0 0.0
        %716 = vmatpush2.msra.mxu0 0.0
        %717 = vmatprep.subr.mxu0 0.0
        %718 = vmatpush2.msra.mxu0 0.0
        %719 = vmatprep.subr.mxu0 0.0
        %720 = vmatpush2.msra.mxu0 0.0
        %721 = vmatprep.subr.mxu0 0.0
        %722 = vmatpush2.msra.mxu0 0.0
        %723 = vmatprep.subr.mxu0 0.0
        %724 = vmatpush2.msra.mxu0 0.0
        %725 = vmatprep.subr.mxu0 0.0
        %726 = vmatpush2.msra.mxu0 0.0
        %727 = vmatprep.subr.mxu0 0.0
        %728 = vmatpush2.msra.mxu0 0.0
        %729 = vmatprep.subr.mxu0 0.0
        %730 = vmatpush2.msra.mxu0 0.0
        %731 = vmatprep.subr.mxu0 0.0
        %732 = vmatpush2.msra.mxu0 0.0
        %733 = vmatprep.subr.mxu0 0.0
        %734 = vmatpush2.msra.mxu0 0.0
        %735 = vmatprep.subr.mxu0 0.0
        %736 = vmatpush2.msra.mxu0 0.0
        %737 = vmatprep.subr.mxu0 0.0
        %738 = vmatpush2.msra.mxu0 0.0
        %739 = vmatprep.mubr.f32.mxu0 0.0
        %740 = vmatmul.mubr.f32.gmra.mxu0 %v673
        %v741 = vpop.f32.mrf.mxu0
        %v742 = vadd.f32 %v669, %v741
        %v743 = vpop.f32.mrf.mxu0
        %744 = vdwg.mxu0
        %v745 = vld [vmem:[%s4] sm:$0xff]
        %v746 = vld [vmem:[%s4 + $0x8] sm:$0xff]
        %v747 = vld [vmem:[%s4 + $0x10] sm:$0xff]
        %v748 = vld [vmem:[%s4 + $0x18] sm:$0xff]
        %v749 = vld [vmem:[%s5] sm:$0x1]
        %v751 = vlaneseq
        %v752 = vshrl.u32 %v751, 7
        %v753 = vsub.s32 0, %v752
        %v754 = vrot.slane %v749, %v753
        %756 = vmatprep.subr.mxu0 0.0
        %757 = vmatpush1.msra.mxu0 0.0
        %758 = vmatprep.subr.mxu0 0.0
        %759 = vmatpush1.msra.mxu0 0.0
        %760 = vmatprep.subr.mxu0 0.0
        %761 = vmatpush1.msra.mxu0 0.0
        %762 = vmatprep.subr.mxu0 0.0
        %763 = vmatpush1.msra.mxu0 0.0
        %764 = vmatprep.subr.mxu0 0.0
        %765 = vmatpush1.msra.mxu0 0.0
        %766 = vmatprep.subr.mxu0 0.0
        %767 = vmatpush1.msra.mxu0 0.0
        %768 = vmatprep.subr.mxu0 0.0
        %769 = vmatpush1.msra.mxu0 0.0
        %770 = vmatprep.subr.mxu0 0.0
        %771 = vmatpush1.msra.mxu0 0.0
        %772 = vmatprep.subr.mxu0 0.0
        %773 = vmatpush1.msra.mxu0 0.0
        %774 = vmatprep.subr.mxu0 0.0
        %775 = vmatpush1.msra.mxu0 0.0
        %776 = vmatprep.subr.mxu0 0.0
        %777 = vmatpush1.msra.mxu0 0.0
        %778 = vmatprep.subr.mxu0 0.0
        %779 = vmatpush1.msra.mxu0 0.0
        %780 = vmatprep.subr.mxu0 0.0
        %781 = vmatpush1.msra.mxu0 %v748
        %782 = vmatprep.subr.mxu0 0.0
        %783 = vmatpush1.msra.mxu0 %v747
        %784 = vmatprep.subr.mxu0 0.0
        %785 = vmatpush1.msra.mxu0 %v746
        %786 = vmatprep.subr.mxu0 0.0
        %787 = vmatpush1.msra.mxu0 %v745
        %788 = vmatprep.subr.mxu0 0.0
        %789 = vmatpush2.msra.mxu0 0.0
        %790 = vmatprep.subr.mxu0 0.0
        %791 = vmatpush2.msra.mxu0 0.0
        %792 = vmatprep.subr.mxu0 0.0
        %793 = vmatpush2.msra.mxu0 0.0
        %794 = vmatprep.subr.mxu0 0.0
        %795 = vmatpush2.msra.mxu0 0.0
        %796 = vmatprep.subr.mxu0 0.0
        %797 = vmatpush2.msra.mxu0 0.0
        %798 = vmatprep.subr.mxu0 0.0
        %799 = vmatpush2.msra.mxu0 0.0
        %800 = vmatprep.subr.mxu0 0.0
        %801 = vmatpush2.msra.mxu0 0.0
        %802 = vmatprep.subr.mxu0 0.0
        %803 = vmatpush2.msra.mxu0 0.0
        %804 = vmatprep.subr.mxu0 0.0
        %805 = vmatpush2.msra.mxu0 0.0
        %806 = vmatprep.subr.mxu0 0.0
        %807 = vmatpush2.msra.mxu0 0.0
        %808 = vmatprep.subr.mxu0 0.0
        %809 = vmatpush2.msra.mxu0 0.0
        %810 = vmatprep.subr.mxu0 0.0
        %811 = vmatpush2.msra.mxu0 0.0
        %812 = vmatprep.subr.mxu0 0.0
        %813 = vmatpush2.msra.mxu0 0.0
        %814 = vmatprep.subr.mxu0 0.0
        %815 = vmatpush2.msra.mxu0 0.0
        %816 = vmatprep.subr.mxu0 0.0
        %817 = vmatpush2.msra.mxu0 0.0
        %818 = vmatprep.subr.mxu0 0.0
        %819 = vmatpush2.msra.mxu0 0.0
        %820 = vmatprep.mubr.f32.mxu0 0.0
        %821 = vmatmul.mubr.f32.gmra.mxu0 %v673
        %v822 = vpop.f32.mrf.mxu0
        %v823 = vadd.f32 %v754, %v822
        %v824 = vpop.f32.mrf.mxu0
        %825 = vdwg.mxu0
        %v826 = vld [vmem:[%s6] sm:$0xff]
        %v827 = vld [vmem:[%s6 + $0x8] sm:$0xff]
        %v828 = vld [vmem:[%s6 + $0x10] sm:$0xff]
        %v829 = vld [vmem:[%s6 + $0x18] sm:$0xff]
        %v830 = vld [vmem:[%s7] sm:$0x1]
        %v832 = vlaneseq
        %v833 = vshrl.u32 %v832, 7
        %v834 = vsub.s32 0, %v833
        %v835 = vrot.slane %v830, %v834
        %v838 = vsel %vm671, %v657, 0
        %840 = vmatprep.subr.mxu0 0.0
        %841 = vmatpush1.msra.mxu0 0.0
        %842 = vmatprep.subr.mxu0 0.0
        %843 = vmatpush1.msra.mxu0 0.0
        %844 = vmatprep.subr.mxu0 0.0
        %845 = vmatpush1.msra.mxu0 0.0
        %846 = vmatprep.subr.mxu0 0.0
        %847 = vmatpush1.msra.mxu0 0.0
        %848 = vmatprep.subr.mxu0 0.0
        %849 = vmatpush1.msra.mxu0 0.0
        %850 = vmatprep.subr.mxu0 0.0
        %851 = vmatpush1.msra.mxu0 0.0
        %852 = vmatprep.subr.mxu0 0.0
        %853 = vmatpush1.msra.mxu0 0.0
        %854 = vmatprep.subr.mxu0 0.0
        %855 = vmatpush1.msra.mxu0 0.0
        %856 = vmatprep.subr.mxu0 0.0
        %857 = vmatpush1.msra.mxu0 0.0
        %858 = vmatprep.subr.mxu0 0.0
        %859 = vmatpush1.msra.mxu0 0.0
        %860 = vmatprep.subr.mxu0 0.0
        %861 = vmatpush1.msra.mxu0 0.0
        %862 = vmatprep.subr.mxu0 0.0
        %863 = vmatpush1.msra.mxu0 0.0
        %864 = vmatprep.subr.mxu0 0.0
        %865 = vmatpush1.msra.mxu0 %v829
        %866 = vmatprep.subr.mxu0 0.0
        %867 = vmatpush1.msra.mxu0 %v828
        %868 = vmatprep.subr.mxu0 0.0
        %869 = vmatpush1.msra.mxu0 %v827
        %870 = vmatprep.subr.mxu0 0.0
        %871 = vmatpush1.msra.mxu0 %v826
        %872 = vmatprep.subr.mxu0 0.0
        %873 = vmatpush2.msra.mxu0 0.0
        %874 = vmatprep.subr.mxu0 0.0
        %875 = vmatpush2.msra.mxu0 0.0
        %876 = vmatprep.subr.mxu0 0.0
        %877 = vmatpush2.msra.mxu0 0.0
        %878 = vmatprep.subr.mxu0 0.0
        %879 = vmatpush2.msra.mxu0 0.0
        %880 = vmatprep.subr.mxu0 0.0
        %881 = vmatpush2.msra.mxu0 0.0
        %882 = vmatprep.subr.mxu0 0.0
        %883 = vmatpush2.msra.mxu0 0.0
        %884 = vmatprep.subr.mxu0 0.0
        %885 = vmatpush2.msra.mxu0 0.0
        %886 = vmatprep.subr.mxu0 0.0
        %887 = vmatpush2.msra.mxu0 0.0
        %888 = vmatprep.subr.mxu0 0.0
        %889 = vmatpush2.msra.mxu0 0.0
        %890 = vmatprep.subr.mxu0 0.0
        %891 = vmatpush2.msra.mxu0 0.0
        %892 = vmatprep.subr.mxu0 0.0
        %893 = vmatpush2.msra.mxu0 0.0
        %894 = vmatprep.subr.mxu0 0.0
        %895 = vmatpush2.msra.mxu0 0.0
        %896 = vmatprep.subr.mxu0 0.0
        %897 = vmatpush2.msra.mxu0 0.0
        %898 = vmatprep.subr.mxu0 0.0
        %899 = vmatpush2.msra.mxu0 0.0
        %900 = vmatprep.subr.mxu0 0.0
        %901 = vmatpush2.msra.mxu0 0.0
        %902 = vmatprep.subr.mxu0 0.0
        %903 = vmatpush2.msra.mxu0 0.0
        %904 = vmatprep.mubr.f32.mxu0 0.0
        %905 = vmatmul.mubr.f32.gmra.mxu0 %v838
        %v906 = vpop.f32.mrf.mxu0
        %v907 = vadd.f32 %v835, %v906
        %v908 = vpop.f32.mrf.mxu0
        %909 = vdwg.mxu0
        %911 = vrot.lane.b32.xlu0 %v742, 120
        %v912 = vpop.permute.xlu0 %911
        %913 = vrot.lane.b32.xlu0 %v742, 112
        %v914 = vpop.permute.xlu0 %913
        %915 = vrot.lane.b32.xlu0 %v742, 104
        %v916 = vpop.permute.xlu0 %915
        %918 = vrot.lane.b32.xlu0 %v823, 120
        %v919 = vpop.permute.xlu0 %918
        %920 = vrot.lane.b32.xlu0 %v823, 112
        %v921 = vpop.permute.xlu0 %920
        %922 = vrot.lane.b32.xlu0 %v823, 104
        %v923 = vpop.permute.xlu0 %922
        %925 = vrot.lane.b32.xlu0 %v907, 120
        %v926 = vpop.permute.xlu0 %925
        %928 = vrot.lane.b32.xlu0 %v907, 112
        %v929 = vpop.permute.xlu0 %928
        %931 = vrot.lane.b32.xlu0 %v907, 104
        %v932 = vpop.permute.xlu0 %931
        %vm934 = vcmask 64512
        %v935 = vsel %vm934, %v742, 0
        %v937 = vsel %vm934, %v823, 0
        %939 = vmatprep.subr.mxu0 0.0
        %940 = vmatpush1.xpose.msra.mxu0 0.0
        %941 = vmatprep.subr.mxu0 0.0
        %942 = vmatpush1.xpose.msra.mxu0 0.0
        %943 = vmatprep.subr.mxu0 0.0
        %944 = vmatpush1.xpose.msra.mxu0 0.0
        %945 = vmatprep.subr.mxu0 0.0
        %946 = vmatpush1.xpose.msra.mxu0 0.0
        %947 = vmatprep.subr.mxu0 0.0
        %948 = vmatpush1.xpose.msra.mxu0 0.0
        %949 = vmatprep.subr.mxu0 0.0
        %950 = vmatpush1.xpose.msra.mxu0 0.0
        %951 = vmatprep.subr.mxu0 0.0
        %952 = vmatpush1.xpose.msra.mxu0 0.0
        %953 = vmatprep.subr.mxu0 0.0
        %954 = vmatpush1.xpose.msra.mxu0 0.0
        %955 = vmatprep.subr.mxu0 0.0
        %956 = vmatpush1.xpose.msra.mxu0 0.0
        %957 = vmatprep.subr.mxu0 0.0
        %958 = vmatpush1.xpose.msra.mxu0 0.0
        %959 = vmatprep.subr.mxu0 0.0
        %960 = vmatpush1.xpose.msra.mxu0 0.0
        %961 = vmatprep.subr.mxu0 0.0
        %962 = vmatpush1.xpose.msra.mxu0 0.0
        %963 = vmatprep.subr.mxu0 0.0
        %964 = vmatpush1.xpose.msra.mxu0 0.0
        %965 = vmatprep.subr.mxu0 0.0
        %966 = vmatpush1.xpose.msra.mxu0 0.0
        %967 = vmatprep.subr.mxu0 0.0
        %968 = vmatpush1.xpose.msra.mxu0 0.0
        %969 = vmatprep.subr.mxu0 0.0
        %970 = vmatpush1.xpose.msra.mxu0 %v937
        %971 = vmatprep.subr.mxu0 0.0
        %972 = vmatpush2.xpose.msra.mxu0 0.0
        %973 = vmatprep.subr.mxu0 0.0
        %974 = vmatpush2.xpose.msra.mxu0 0.0
        %975 = vmatprep.subr.mxu0 0.0
        %976 = vmatpush2.xpose.msra.mxu0 0.0
        %977 = vmatprep.subr.mxu0 0.0
        %978 = vmatpush2.xpose.msra.mxu0 0.0
        %979 = vmatprep.subr.mxu0 0.0
        %980 = vmatpush2.xpose.msra.mxu0 0.0
        %981 = vmatprep.subr.mxu0 0.0
        %982 = vmatpush2.xpose.msra.mxu0 0.0
        %983 = vmatprep.subr.mxu0 0.0
        %984 = vmatpush2.xpose.msra.mxu0 0.0
        %985 = vmatprep.subr.mxu0 0.0
        %986 = vmatpush2.xpose.msra.mxu0 0.0
        %987 = vmatprep.subr.mxu0 0.0
        %988 = vmatpush2.xpose.msra.mxu0 0.0
        %989 = vmatprep.subr.mxu0 0.0
        %990 = vmatpush2.xpose.msra.mxu0 0.0
        %991 = vmatprep.subr.mxu0 0.0
        %992 = vmatpush2.xpose.msra.mxu0 0.0
        %993 = vmatprep.subr.mxu0 0.0
        %994 = vmatpush2.xpose.msra.mxu0 0.0
        %995 = vmatprep.subr.mxu0 0.0
        %996 = vmatpush2.xpose.msra.mxu0 0.0
        %997 = vmatprep.subr.mxu0 0.0
        %998 = vmatpush2.xpose.msra.mxu0 0.0
        %999 = vmatprep.subr.mxu0 0.0
        %1000 = vmatpush2.xpose.msra.mxu0 0.0
        %1001 = vmatprep.subr.mxu0 0.0
        %1002 = vmatpush2.xpose.msra.mxu0 0.0
        %1003 = vmatprep.mubr.f32.mxu0 0.0
        %1004 = vmatmul.mubr.f32.gmra.mxu0 %v935
        %v1005 = vpop.f32.mrf.mxu0
        %v1006 = vadd.f32 0.0, %v1005
        %v1007 = vpop.f32.mrf.mxu0
        %1008 = vdwg.mxu0
        %v1009 = vsel %vm934, %v912, 0
        %v1011 = vsel %vm934, %v919, 0
        %1013 = vmatprep.subr.mxu0 0.0
        %1014 = vmatpush1.xpose.msra.mxu0 0.0
        %1015 = vmatprep.subr.mxu0 0.0
        %1016 = vmatpush1.xpose.msra.mxu0 0.0
        %1017 = vmatprep.subr.mxu0 0.0
        %1018 = vmatpush1.xpose.msra.mxu0 0.0
        %1019 = vmatprep.subr.mxu0 0.0
        %1020 = vmatpush1.xpose.msra.mxu0 0.0
        %1021 = vmatprep.subr.mxu0 0.0
        %1022 = vmatpush1.xpose.msra.mxu0 0.0
        %1023 = vmatprep.subr.mxu0 0.0
        %1024 = vmatpush1.xpose.msra.mxu0 0.0
        %1025 = vmatprep.subr.mxu0 0.0
        %1026 = vmatpush1.xpose.msra.mxu0 0.0
        %1027 = vmatprep.subr.mxu0 0.0
        %1028 = vmatpush1.xpose.msra.mxu0 0.0
        %1029 = vmatprep.subr.mxu0 0.0
        %1030 = vmatpush1.xpose.msra.mxu0 0.0
        %1031 = vmatprep.subr.mxu0 0.0
        %1032 = vmatpush1.xpose.msra.mxu0 0.0
        %1033 = vmatprep.subr.mxu0 0.0
        %1034 = vmatpush1.xpose.msra.mxu0 0.0
        %1035 = vmatprep.subr.mxu0 0.0
        %1036 = vmatpush1.xpose.msra.mxu0 0.0
        %1037 = vmatprep.subr.mxu0 0.0
        %1038 = vmatpush1.xpose.msra.mxu0 0.0
        %1039 = vmatprep.subr.mxu0 0.0
        %1040 = vmatpush1.xpose.msra.mxu0 0.0
        %1041 = vmatprep.subr.mxu0 0.0
        %1042 = vmatpush1.xpose.msra.mxu0 0.0
        %1043 = vmatprep.subr.mxu0 0.0
        %1044 = vmatpush1.xpose.msra.mxu0 %v1011
        %1045 = vmatprep.subr.mxu0 0.0
        %1046 = vmatpush2.xpose.msra.mxu0 0.0
        %1047 = vmatprep.subr.mxu0 0.0
        %1048 = vmatpush2.xpose.msra.mxu0 0.0
        %1049 = vmatprep.subr.mxu0 0.0
        %1050 = vmatpush2.xpose.msra.mxu0 0.0
        %1051 = vmatprep.subr.mxu0 0.0
        %1052 = vmatpush2.xpose.msra.mxu0 0.0
        %1053 = vmatprep.subr.mxu0 0.0
        %1054 = vmatpush2.xpose.msra.mxu0 0.0
        %1055 = vmatprep.subr.mxu0 0.0
        %1056 = vmatpush2.xpose.msra.mxu0 0.0
        %1057 = vmatprep.subr.mxu0 0.0
        %1058 = vmatpush2.xpose.msra.mxu0 0.0
        %1059 = vmatprep.subr.mxu0 0.0
        %1060 = vmatpush2.xpose.msra.mxu0 0.0
        %1061 = vmatprep.subr.mxu0 0.0
        %1062 = vmatpush2.xpose.msra.mxu0 0.0
        %1063 = vmatprep.subr.mxu0 0.0
        %1064 = vmatpush2.xpose.msra.mxu0 0.0
        %1065 = vmatprep.subr.mxu0 0.0
        %1066 = vmatpush2.xpose.msra.mxu0 0.0
        %1067 = vmatprep.subr.mxu0 0.0
        %1068 = vmatpush2.xpose.msra.mxu0 0.0
        %1069 = vmatprep.subr.mxu0 0.0
        %1070 = vmatpush2.xpose.msra.mxu0 0.0
        %1071 = vmatprep.subr.mxu0 0.0
        %1072 = vmatpush2.xpose.msra.mxu0 0.0
        %1073 = vmatprep.subr.mxu0 0.0
        %1074 = vmatpush2.xpose.msra.mxu0 0.0
        %1075 = vmatprep.subr.mxu0 0.0
        %1076 = vmatpush2.xpose.msra.mxu0 0.0
        %1077 = vmatprep.mubr.f32.mxu0 0.0
        %1078 = vmatmul.mubr.f32.gmra.mxu0 %v1009
        %v1079 = vpop.f32.mrf.mxu0
        %v1080 = vadd.f32 0.0, %v1079
        %v1081 = vpop.f32.mrf.mxu0
        %1082 = vdwg.mxu0
        %v1083 = vsel %vm934, %v914, 0
        %v1085 = vsel %vm934, %v921, 0
        %1087 = vmatprep.subr.mxu0 0.0
        %1088 = vmatpush1.xpose.msra.mxu0 0.0
        %1089 = vmatprep.subr.mxu0 0.0
        %1090 = vmatpush1.xpose.msra.mxu0 0.0
        %1091 = vmatprep.subr.mxu0 0.0
        %1092 = vmatpush1.xpose.msra.mxu0 0.0
        %1093 = vmatprep.subr.mxu0 0.0
        %1094 = vmatpush1.xpose.msra.mxu0 0.0
        %1095 = vmatprep.subr.mxu0 0.0
        %1096 = vmatpush1.xpose.msra.mxu0 0.0
        %1097 = vmatprep.subr.mxu0 0.0
        %1098 = vmatpush1.xpose.msra.mxu0 0.0
        %1099 = vmatprep.subr.mxu0 0.0
        %1100 = vmatpush1.xpose.msra.mxu0 0.0
        %1101 = vmatprep.subr.mxu0 0.0
        %1102 = vmatpush1.xpose.msra.mxu0 0.0
        %1103 = vmatprep.subr.mxu0 0.0
        %1104 = vmatpush1.xpose.msra.mxu0 0.0
        %1105 = vmatprep.subr.mxu0 0.0
        %1106 = vmatpush1.xpose.msra.mxu0 0.0
        %1107 = vmatprep.subr.mxu0 0.0
        %1108 = vmatpush1.xpose.msra.mxu0 0.0
        %1109 = vmatprep.subr.mxu0 0.0
        %1110 = vmatpush1.xpose.msra.mxu0 0.0
        %1111 = vmatprep.subr.mxu0 0.0
        %1112 = vmatpush1.xpose.msra.mxu0 0.0
        %1113 = vmatprep.subr.mxu0 0.0
        %1114 = vmatpush1.xpose.msra.mxu0 0.0
        %1115 = vmatprep.subr.mxu0 0.0
        %1116 = vmatpush1.xpose.msra.mxu0 0.0
        %1117 = vmatprep.subr.mxu0 0.0
        %1118 = vmatpush1.xpose.msra.mxu0 %v1085
        %1119 = vmatprep.subr.mxu0 0.0
        %1120 = vmatpush2.xpose.msra.mxu0 0.0
        %1121 = vmatprep.subr.mxu0 0.0
        %1122 = vmatpush2.xpose.msra.mxu0 0.0
        %1123 = vmatprep.subr.mxu0 0.0
        %1124 = vmatpush2.xpose.msra.mxu0 0.0
        %1125 = vmatprep.subr.mxu0 0.0
        %1126 = vmatpush2.xpose.msra.mxu0 0.0
        %1127 = vmatprep.subr.mxu0 0.0
        %1128 = vmatpush2.xpose.msra.mxu0 0.0
        %1129 = vmatprep.subr.mxu0 0.0
        %1130 = vmatpush2.xpose.msra.mxu0 0.0
        %1131 = vmatprep.subr.mxu0 0.0
        %1132 = vmatpush2.xpose.msra.mxu0 0.0
        %1133 = vmatprep.subr.mxu0 0.0
        %1134 = vmatpush2.xpose.msra.mxu0 0.0
        %1135 = vmatprep.subr.mxu0 0.0
        %1136 = vmatpush2.xpose.msra.mxu0 0.0
        %1137 = vmatprep.subr.mxu0 0.0
        %1138 = vmatpush2.xpose.msra.mxu0 0.0
        %1139 = vmatprep.subr.mxu0 0.0
        %1140 = vmatpush2.xpose.msra.mxu0 0.0
        %1141 = vmatprep.subr.mxu0 0.0
        %1142 = vmatpush2.xpose.msra.mxu0 0.0
        %1143 = vmatprep.subr.mxu0 0.0
        %1144 = vmatpush2.xpose.msra.mxu0 0.0
        %1145 = vmatprep.subr.mxu0 0.0
        %1146 = vmatpush2.xpose.msra.mxu0 0.0
        %1147 = vmatprep.subr.mxu0 0.0
        %1148 = vmatpush2.xpose.msra.mxu0 0.0
        %1149 = vmatprep.subr.mxu0 0.0
        %1150 = vmatpush2.xpose.msra.mxu0 0.0
        %1151 = vmatprep.mubr.f32.mxu0 0.0
        %1152 = vmatmul.mubr.f32.gmra.mxu0 %v1083
        %v1153 = vpop.f32.mrf.mxu0
        %v1154 = vadd.f32 0.0, %v1153
        %v1155 = vpop.f32.mrf.mxu0
        %1156 = vdwg.mxu0
        %v1157 = vsel %vm934, %v916, 0
        %v1159 = vsel %vm934, %v923, 0
        %1161 = vmatprep.subr.mxu0 0.0
        %1162 = vmatpush1.xpose.msra.mxu0 0.0
        %1163 = vmatprep.subr.mxu0 0.0
        %1164 = vmatpush1.xpose.msra.mxu0 0.0
        %1165 = vmatprep.subr.mxu0 0.0
        %1166 = vmatpush1.xpose.msra.mxu0 0.0
        %1167 = vmatprep.subr.mxu0 0.0
        %1168 = vmatpush1.xpose.msra.mxu0 0.0
        %1169 = vmatprep.subr.mxu0 0.0
        %1170 = vmatpush1.xpose.msra.mxu0 0.0
        %1171 = vmatprep.subr.mxu0 0.0
        %1172 = vmatpush1.xpose.msra.mxu0 0.0
        %1173 = vmatprep.subr.mxu0 0.0
        %1174 = vmatpush1.xpose.msra.mxu0 0.0
        %1175 = vmatprep.subr.mxu0 0.0
        %1176 = vmatpush1.xpose.msra.mxu0 0.0
        %1177 = vmatprep.subr.mxu0 0.0
        %1178 = vmatpush1.xpose.msra.mxu0 0.0
        %1179 = vmatprep.subr.mxu0 0.0
        %1180 = vmatpush1.xpose.msra.mxu0 0.0
        %1181 = vmatprep.subr.mxu0 0.0
        %1182 = vmatpush1.xpose.msra.mxu0 0.0
        %1183 = vmatprep.subr.mxu0 0.0
        %1184 = vmatpush1.xpose.msra.mxu0 0.0
        %1185 = vmatprep.subr.mxu0 0.0
        %1186 = vmatpush1.xpose.msra.mxu0 0.0
        %1187 = vmatprep.subr.mxu0 0.0
        %1188 = vmatpush1.xpose.msra.mxu0 0.0
        %1189 = vmatprep.subr.mxu0 0.0
        %1190 = vmatpush1.xpose.msra.mxu0 0.0
        %1191 = vmatprep.subr.mxu0 0.0
        %1192 = vmatpush1.xpose.msra.mxu0 %v1159
        %1193 = vmatprep.subr.mxu0 0.0
        %1194 = vmatpush2.xpose.msra.mxu0 0.0
        %1195 = vmatprep.subr.mxu0 0.0
        %1196 = vmatpush2.xpose.msra.mxu0 0.0
        %1197 = vmatprep.subr.mxu0 0.0
        %1198 = vmatpush2.xpose.msra.mxu0 0.0
        %1199 = vmatprep.subr.mxu0 0.0
        %1200 = vmatpush2.xpose.msra.mxu0 0.0
        %1201 = vmatprep.subr.mxu0 0.0
        %1202 = vmatpush2.xpose.msra.mxu0 0.0
        %1203 = vmatprep.subr.mxu0 0.0
        %1204 = vmatpush2.xpose.msra.mxu0 0.0
        %1205 = vmatprep.subr.mxu0 0.0
        %1206 = vmatpush2.xpose.msra.mxu0 0.0
        %1207 = vmatprep.subr.mxu0 0.0
        %1208 = vmatpush2.xpose.msra.mxu0 0.0
        %1209 = vmatprep.subr.mxu0 0.0
        %1210 = vmatpush2.xpose.msra.mxu0 0.0
        %1211 = vmatprep.subr.mxu0 0.0
        %1212 = vmatpush2.xpose.msra.mxu0 0.0
        %1213 = vmatprep.subr.mxu0 0.0
        %1214 = vmatpush2.xpose.msra.mxu0 0.0
        %1215 = vmatprep.subr.mxu0 0.0
        %1216 = vmatpush2.xpose.msra.mxu0 0.0
        %1217 = vmatprep.subr.mxu0 0.0
        %1218 = vmatpush2.xpose.msra.mxu0 0.0
        %1219 = vmatprep.subr.mxu0 0.0
        %1220 = vmatpush2.xpose.msra.mxu0 0.0
        %1221 = vmatprep.subr.mxu0 0.0
        %1222 = vmatpush2.xpose.msra.mxu0 0.0
        %1223 = vmatprep.subr.mxu0 0.0
        %1224 = vmatpush2.xpose.msra.mxu0 0.0
        %1225 = vmatprep.mubr.f32.mxu0 0.0
        %1226 = vmatmul.mubr.f32.gmra.mxu0 %v1157
        %v1227 = vpop.f32.mrf.mxu0
        %v1228 = vadd.f32 0.0, %v1227
        %v1229 = vpop.f32.mrf.mxu0
        %1230 = vdwg.mxu0
        %v1231 = vsel %vm934, %v1006, -inf
        %1232 = vmax.xlane.f32.xlu0 %v1231
        %v1233 = vpop.xlane.xlu0 %1232
        %v1234 = vsel %vm934, %v1080, -inf
        %1235 = vmax.xlane.f32.xlu0 %v1234
        %v1236 = vpop.xlane.xlu0 %1235
        %v1237 = vsel %vm934, %v1154, -inf
        %1238 = vmax.xlane.f32.xlu0 %v1237
        %v1239 = vpop.xlane.xlu0 %1238
        %v1240 = vsel %vm934, %v1228, -inf
        %1241 = vmax.xlane.f32.xlu0 %v1240
        %v1242 = vpop.xlane.xlu0 %1241
        %v1243 = vsub.f32 %v1006, %v1233
        %v1244 = vsub.f32 %v1080, %v1236
        %v1245 = vsub.f32 %v1154, %v1239
        %v1246 = vsub.f32 %v1228, %v1242
        %v1247 = vmul.f32 %v1243, 1.442695
        %v1248 = vpow.pop %v1247
        %v1249 = vmul.f32 %v1244, 1.442695
        %v1250 = vpow.pop %v1249
        %v1251 = vmul.f32 %v1245, 1.442695
        %v1252 = vpow.pop %v1251
        %v1253 = vmul.f32 %v1246, 1.442695
        %v1254 = vpow.pop %v1253
        %v1255 = vsel %vm934, %v1248, 0.0
        %1256 = vadd.xlane.f32.xlu0 %v1255
        %v1257 = vpop.xlane.xlu0 %1256
        %v1258 = vsel %vm934, %v1250, 0.0
        %1259 = vadd.xlane.f32.xlu0 %v1258
        %v1260 = vpop.xlane.xlu0 %1259
        %v1261 = vsel %vm934, %v1252, 0.0
        %1262 = vadd.xlane.f32.xlu0 %v1261
        %v1263 = vpop.xlane.xlu0 %1262
        %v1264 = vsel %vm934, %v1254, 0.0
        %1265 = vadd.xlane.f32.xlu0 %v1264
        %v1266 = vpop.xlane.xlu0 %1265
        %v1267 = vrcp.pop %v1257
        %v1268 = vmul.f32 %v1248, %v1267
        %v1269 = vrcp.pop %v1260
        %v1270 = vmul.f32 %v1250, %v1269
        %v1271 = vrcp.pop %v1263
        %v1272 = vmul.f32 %v1252, %v1271
        %v1273 = vrcp.pop %v1266
        %v1274 = vmul.f32 %v1254, %v1273
        %v1276 = vsel %vm934, %v1268, 0
        %1278 = vmatprep.subr.mxu0 0.0
        %1279 = vmatpush1.msra.mxu0 0.0
        %1280 = vmatprep.subr.mxu0 0.0
        %1281 = vmatpush1.msra.mxu0 0.0
        %1282 = vmatprep.subr.mxu0 0.0
        %1283 = vmatpush1.msra.mxu0 0.0
        %1284 = vmatprep.subr.mxu0 0.0
        %1285 = vmatpush1.msra.mxu0 0.0
        %1286 = vmatprep.subr.mxu0 0.0
        %1287 = vmatpush1.msra.mxu0 0.0
        %1288 = vmatprep.subr.mxu0 0.0
        %1289 = vmatpush1.msra.mxu0 0.0
        %1290 = vmatprep.subr.mxu0 0.0
        %1291 = vmatpush1.msra.mxu0 0.0
        %1292 = vmatprep.subr.mxu0 0.0
        %1293 = vmatpush1.msra.mxu0 0.0
        %1294 = vmatprep.subr.mxu0 0.0
        %1295 = vmatpush1.msra.mxu0 0.0
        %1296 = vmatprep.subr.mxu0 0.0
        %1297 = vmatpush1.msra.mxu0 0.0
        %1298 = vmatprep.subr.mxu0 0.0
        %1299 = vmatpush1.msra.mxu0 0.0
        %1300 = vmatprep.subr.mxu0 0.0
        %1301 = vmatpush1.msra.mxu0 0.0
        %1302 = vmatprep.subr.mxu0 0.0
        %1303 = vmatpush1.msra.mxu0 0.0
        %1304 = vmatprep.subr.mxu0 0.0
        %1305 = vmatpush1.msra.mxu0 0.0
        %1306 = vmatprep.subr.mxu0 0.0
        %1307 = vmatpush1.msra.mxu0 0.0
        %1308 = vmatprep.subr.mxu0 0.0
        %1309 = vmatpush1.msra.mxu0 %v907
        %1310 = vmatprep.subr.mxu0 0.0
        %1311 = vmatpush2.msra.mxu0 0.0
        %1312 = vmatprep.subr.mxu0 0.0
        %1313 = vmatpush2.msra.mxu0 0.0
        %1314 = vmatprep.subr.mxu0 0.0
        %1315 = vmatpush2.msra.mxu0 0.0
        %1316 = vmatprep.subr.mxu0 0.0
        %1317 = vmatpush2.msra.mxu0 0.0
        %1318 = vmatprep.subr.mxu0 0.0
        %1319 = vmatpush2.msra.mxu0 0.0
        %1320 = vmatprep.subr.mxu0 0.0
        %1321 = vmatpush2.msra.mxu0 0.0
        %1322 = vmatprep.subr.mxu0 0.0
        %1323 = vmatpush2.msra.mxu0 0.0
        %1324 = vmatprep.subr.mxu0 0.0
        %1325 = vmatpush2.msra.mxu0 0.0
        %1326 = vmatprep.subr.mxu0 0.0
        %1327 = vmatpush2.msra.mxu0 0.0
        %1328 = vmatprep.subr.mxu0 0.0
        %1329 = vmatpush2.msra.mxu0 0.0
        %1330 = vmatprep.subr.mxu0 0.0
        %1331 = vmatpush2.msra.mxu0 0.0
        %1332 = vmatprep.subr.mxu0 0.0
        %1333 = vmatpush2.msra.mxu0 0.0
        %1334 = vmatprep.subr.mxu0 0.0
        %1335 = vmatpush2.msra.mxu0 0.0
        %1336 = vmatprep.subr.mxu0 0.0
        %1337 = vmatpush2.msra.mxu0 0.0
        %1338 = vmatprep.subr.mxu0 0.0
        %1339 = vmatpush2.msra.mxu0 0.0
        %1340 = vmatprep.subr.mxu0 0.0
        %1341 = vmatpush2.msra.mxu0 0.0
        %1342 = vmatprep.mubr.f32.mxu0 0.0
        %1343 = vmatmul.mubr.f32.gmra.mxu0 %v1276
        %v1344 = vpop.f32.mrf.mxu0
        %v1345 = vadd.f32 0.0, %v1344
        %v1346 = vpop.f32.mrf.mxu0
        %1347 = vdwg.mxu0
        %v1349 = vsel %vm934, %v1270, 0
        %1351 = vmatprep.subr.mxu0 0.0
        %1352 = vmatpush1.msra.mxu0 0.0
        %1353 = vmatprep.subr.mxu0 0.0
        %1354 = vmatpush1.msra.mxu0 0.0
        %1355 = vmatprep.subr.mxu0 0.0
        %1356 = vmatpush1.msra.mxu0 0.0
        %1357 = vmatprep.subr.mxu0 0.0
        %1358 = vmatpush1.msra.mxu0 0.0
        %1359 = vmatprep.subr.mxu0 0.0
        %1360 = vmatpush1.msra.mxu0 0.0
        %1361 = vmatprep.subr.mxu0 0.0
        %1362 = vmatpush1.msra.mxu0 0.0
        %1363 = vmatprep.subr.mxu0 0.0
        %1364 = vmatpush1.msra.mxu0 0.0
        %1365 = vmatprep.subr.mxu0 0.0
        %1366 = vmatpush1.msra.mxu0 0.0
        %1367 = vmatprep.subr.mxu0 0.0
        %1368 = vmatpush1.msra.mxu0 0.0
        %1369 = vmatprep.subr.mxu0 0.0
        %1370 = vmatpush1.msra.mxu0 0.0
        %1371 = vmatprep.subr.mxu0 0.0
        %1372 = vmatpush1.msra.mxu0 0.0
        %1373 = vmatprep.subr.mxu0 0.0
        %1374 = vmatpush1.msra.mxu0 0.0
        %1375 = vmatprep.subr.mxu0 0.0
        %1376 = vmatpush1.msra.mxu0 0.0
        %1377 = vmatprep.subr.mxu0 0.0
        %1378 = vmatpush1.msra.mxu0 0.0
        %1379 = vmatprep.subr.mxu0 0.0
        %1380 = vmatpush1.msra.mxu0 0.0
        %1381 = vmatprep.subr.mxu0 0.0
        %1382 = vmatpush1.msra.mxu0 %v926
        %1383 = vmatprep.subr.mxu0 0.0
        %1384 = vmatpush2.msra.mxu0 0.0
        %1385 = vmatprep.subr.mxu0 0.0
        %1386 = vmatpush2.msra.mxu0 0.0
        %1387 = vmatprep.subr.mxu0 0.0
        %1388 = vmatpush2.msra.mxu0 0.0
        %1389 = vmatprep.subr.mxu0 0.0
        %1390 = vmatpush2.msra.mxu0 0.0
        %1391 = vmatprep.subr.mxu0 0.0
        %1392 = vmatpush2.msra.mxu0 0.0
        %1393 = vmatprep.subr.mxu0 0.0
        %1394 = vmatpush2.msra.mxu0 0.0
        %1395 = vmatprep.subr.mxu0 0.0
        %1396 = vmatpush2.msra.mxu0 0.0
        %1397 = vmatprep.subr.mxu0 0.0
        %1398 = vmatpush2.msra.mxu0 0.0
        %1399 = vmatprep.subr.mxu0 0.0
        %1400 = vmatpush2.msra.mxu0 0.0
        %1401 = vmatprep.subr.mxu0 0.0
        %1402 = vmatpush2.msra.mxu0 0.0
        %1403 = vmatprep.subr.mxu0 0.0
        %1404 = vmatpush2.msra.mxu0 0.0
        %1405 = vmatprep.subr.mxu0 0.0
        %1406 = vmatpush2.msra.mxu0 0.0
        %1407 = vmatprep.subr.mxu0 0.0
        %1408 = vmatpush2.msra.mxu0 0.0
        %1409 = vmatprep.subr.mxu0 0.0
        %1410 = vmatpush2.msra.mxu0 0.0
        %1411 = vmatprep.subr.mxu0 0.0
        %1412 = vmatpush2.msra.mxu0 0.0
        %1413 = vmatprep.subr.mxu0 0.0
        %1414 = vmatpush2.msra.mxu0 0.0
        %1415 = vmatprep.mubr.f32.mxu0 0.0
        %1416 = vmatmul.mubr.f32.gmra.mxu0 %v1349
        %v1417 = vpop.f32.mrf.mxu0
        %v1418 = vadd.f32 0.0, %v1417
        %v1419 = vpop.f32.mrf.mxu0
        %1420 = vdwg.mxu0
        %v1422 = vsel %vm934, %v1272, 0
        %1424 = vmatprep.subr.mxu0 0.0
        %1425 = vmatpush1.msra.mxu0 0.0
        %1426 = vmatprep.subr.mxu0 0.0
        %1427 = vmatpush1.msra.mxu0 0.0
        %1428 = vmatprep.subr.mxu0 0.0
        %1429 = vmatpush1.msra.mxu0 0.0
        %1430 = vmatprep.subr.mxu0 0.0
        %1431 = vmatpush1.msra.mxu0 0.0
        %1432 = vmatprep.subr.mxu0 0.0
        %1433 = vmatpush1.msra.mxu0 0.0
        %1434 = vmatprep.subr.mxu0 0.0
        %1435 = vmatpush1.msra.mxu0 0.0
        %1436 = vmatprep.subr.mxu0 0.0
        %1437 = vmatpush1.msra.mxu0 0.0
        %1438 = vmatprep.subr.mxu0 0.0
        %1439 = vmatpush1.msra.mxu0 0.0
        %1440 = vmatprep.subr.mxu0 0.0
        %1441 = vmatpush1.msra.mxu0 0.0
        %1442 = vmatprep.subr.mxu0 0.0
        %1443 = vmatpush1.msra.mxu0 0.0
        %1444 = vmatprep.subr.mxu0 0.0
        %1445 = vmatpush1.msra.mxu0 0.0
        %1446 = vmatprep.subr.mxu0 0.0
        %1447 = vmatpush1.msra.mxu0 0.0
        %1448 = vmatprep.subr.mxu0 0.0
        %1449 = vmatpush1.msra.mxu0 0.0
        %1450 = vmatprep.subr.mxu0 0.0
        %1451 = vmatpush1.msra.mxu0 0.0
        %1452 = vmatprep.subr.mxu0 0.0
        %1453 = vmatpush1.msra.mxu0 0.0
        %1454 = vmatprep.subr.mxu0 0.0
        %1455 = vmatpush1.msra.mxu0 %v929
        %1456 = vmatprep.subr.mxu0 0.0
        %1457 = vmatpush2.msra.mxu0 0.0
        %1458 = vmatprep.subr.mxu0 0.0
        %1459 = vmatpush2.msra.mxu0 0.0
        %1460 = vmatprep.subr.mxu0 0.0
        %1461 = vmatpush2.msra.mxu0 0.0
        %1462 = vmatprep.subr.mxu0 0.0
        %1463 = vmatpush2.msra.mxu0 0.0
        %1464 = vmatprep.subr.mxu0 0.0
        %1465 = vmatpush2.msra.mxu0 0.0
        %1466 = vmatprep.subr.mxu0 0.0
        %1467 = vmatpush2.msra.mxu0 0.0
        %1468 = vmatprep.subr.mxu0 0.0
        %1469 = vmatpush2.msra.mxu0 0.0
        %1470 = vmatprep.subr.mxu0 0.0
        %1471 = vmatpush2.msra.mxu0 0.0
        %1472 = vmatprep.subr.mxu0 0.0
        %1473 = vmatpush2.msra.mxu0 0.0
        %1474 = vmatprep.subr.mxu0 0.0
        %1475 = vmatpush2.msra.mxu0 0.0
        %1476 = vmatprep.subr.mxu0 0.0
        %1477 = vmatpush2.msra.mxu0 0.0
        %1478 = vmatprep.subr.mxu0 0.0
        %1479 = vmatpush2.msra.mxu0 0.0
        %1480 = vmatprep.subr.mxu0 0.0
        %1481 = vmatpush2.msra.mxu0 0.0
        %1482 = vmatprep.subr.mxu0 0.0
        %1483 = vmatpush2.msra.mxu0 0.0
        %1484 = vmatprep.subr.mxu0 0.0
        %1485 = vmatpush2.msra.mxu0 0.0
        %1486 = vmatprep.subr.mxu0 0.0
        %1487 = vmatpush2.msra.mxu0 0.0
        %1488 = vmatprep.mubr.f32.mxu0 0.0
        %1489 = vmatmul.mubr.f32.gmra.mxu0 %v1422
        %v1490 = vpop.f32.mrf.mxu0
        %v1491 = vadd.f32 0.0, %v1490
        %v1492 = vpop.f32.mrf.mxu0
        %1493 = vdwg.mxu0
        %v1495 = vsel %vm934, %v1274, 0
        %1497 = vmatprep.subr.mxu0 0.0
        %1498 = vmatpush1.msra.mxu0 0.0
        %1499 = vmatprep.subr.mxu0 0.0
        %1500 = vmatpush1.msra.mxu0 0.0
        %1501 = vmatprep.subr.mxu0 0.0
        %1502 = vmatpush1.msra.mxu0 0.0
        %1503 = vmatprep.subr.mxu0 0.0
        %1504 = vmatpush1.msra.mxu0 0.0
        %1505 = vmatprep.subr.mxu0 0.0
        %1506 = vmatpush1.msra.mxu0 0.0
        %1507 = vmatprep.subr.mxu0 0.0
        %1508 = vmatpush1.msra.mxu0 0.0
        %1509 = vmatprep.subr.mxu0 0.0
        %1510 = vmatpush1.msra.mxu0 0.0
        %1511 = vmatprep.subr.mxu0 0.0
        %1512 = vmatpush1.msra.mxu0 0.0
        %1513 = vmatprep.subr.mxu0 0.0
        %1514 = vmatpush1.msra.mxu0 0.0
        %1515 = vmatprep.subr.mxu0 0.0
        %1516 = vmatpush1.msra.mxu0 0.0
        %1517 = vmatprep.subr.mxu0 0.0
        %1518 = vmatpush1.msra.mxu0 0.0
        %1519 = vmatprep.subr.mxu0 0.0
        %1520 = vmatpush1.msra.mxu0 0.0
        %1521 = vmatprep.subr.mxu0 0.0
        %1522 = vmatpush1.msra.mxu0 0.0
        %1523 = vmatprep.subr.mxu0 0.0
        %1524 = vmatpush1.msra.mxu0 0.0
        %1525 = vmatprep.subr.mxu0 0.0
        %1526 = vmatpush1.msra.mxu0 0.0
        %1527 = vmatprep.subr.mxu0 0.0
        %1528 = vmatpush1.msra.mxu0 %v932
        %1529 = vmatprep.subr.mxu0 0.0
        %1530 = vmatpush2.msra.mxu0 0.0
        %1531 = vmatprep.subr.mxu0 0.0
        %1532 = vmatpush2.msra.mxu0 0.0
        %1533 = vmatprep.subr.mxu0 0.0
        %1534 = vmatpush2.msra.mxu0 0.0
        %1535 = vmatprep.subr.mxu0 0.0
        %1536 = vmatpush2.msra.mxu0 0.0
        %1537 = vmatprep.subr.mxu0 0.0
        %1538 = vmatpush2.msra.mxu0 0.0
        %1539 = vmatprep.subr.mxu0 0.0
        %1540 = vmatpush2.msra.mxu0 0.0
        %1541 = vmatprep.subr.mxu0 0.0
        %1542 = vmatpush2.msra.mxu0 0.0
        %1543 = vmatprep.subr.mxu0 0.0
        %1544 = vmatpush2.msra.mxu0 0.0
        %1545 = vmatprep.subr.mxu0 0.0
        %1546 = vmatpush2.msra.mxu0 0.0
        %1547 = vmatprep.subr.mxu0 0.0
        %1548 = vmatpush2.msra.mxu0 0.0
        %1549 = vmatprep.subr.mxu0 0.0
        %1550 = vmatpush2.msra.mxu0 0.0
        %1551 = vmatprep.subr.mxu0 0.0
        %1552 = vmatpush2.msra.mxu0 0.0
        %1553 = vmatprep.subr.mxu0 0.0
        %1554 = vmatpush2.msra.mxu0 0.0
        %1555 = vmatprep.subr.mxu0 0.0
        %1556 = vmatpush2.msra.mxu0 0.0
        %1557 = vmatprep.subr.mxu0 0.0
        %1558 = vmatpush2.msra.mxu0 0.0
        %1559 = vmatprep.subr.mxu0 0.0
        %1560 = vmatpush2.msra.mxu0 0.0
        %1561 = vmatprep.mubr.f32.mxu0 0.0
        %1562 = vmatmul.mubr.f32.gmra.mxu0 %v1495
        %v1563 = vpop.f32.mrf.mxu0
        %v1564 = vadd.f32 0.0, %v1563
        %v1565 = vpop.f32.mrf.mxu0
        %1566 = vdwg.mxu0
        %1568 = vrot.lane.b32.xlu0 %v1418, 8
        %v1569 = vpop.permute.xlu0 %1568
        %1572 = vrot.lane.b32.xlu0 %v1491, 16
        %v1573 = vpop.permute.xlu0 %1572
        %1576 = vrot.lane.b32.xlu0 %v1564, 24
        %v1577 = vpop.permute.xlu0 %1576
        %v1579 = vsel %vm934, %v1345, %v1569
        %vm1580 = vcmask 130048
        %v1581 = vsel %vm1580, %v1579, %v1573
        %vm1582 = vcmask 195584
        %v1583 = vsel %vm1582, %v1581, %v1577
        %v1584 = vld [vmem:[#allocation7] sm:$0xff]
        %v1585 = vld [vmem:[#allocation7 + $0x8] sm:$0xff]
        %v1586 = vld [vmem:[#allocation7 + $0x10] sm:$0xff]
        %v1587 = vld [vmem:[#allocation7 + $0x18] sm:$0xff]
        %v1588 = vld [vmem:[%s9] sm:$0x1]
        %v1590 = vlaneseq
        %v1591 = vshrl.u32 %v1590, 7
        %v1592 = vsub.s32 0, %v1591
        %v1593 = vrot.slane %v1588, %v1592
        %v1596 = vsel %vm671, %v1583, 0
        %1598 = vmatprep.subr.mxu0 0.0
        %1599 = vmatpush1.msra.mxu0 0.0
        %1600 = vmatprep.subr.mxu0 0.0
        %1601 = vmatpush1.msra.mxu0 0.0
        %1602 = vmatprep.subr.mxu0 0.0
        %1603 = vmatpush1.msra.mxu0 0.0
        %1604 = vmatprep.subr.mxu0 0.0
        %1605 = vmatpush1.msra.mxu0 0.0
        %1606 = vmatprep.subr.mxu0 0.0
        %1607 = vmatpush1.msra.mxu0 0.0
        %1608 = vmatprep.subr.mxu0 0.0
        %1609 = vmatpush1.msra.mxu0 0.0
        %1610 = vmatprep.subr.mxu0 0.0
        %1611 = vmatpush1.msra.mxu0 0.0
        %1612 = vmatprep.subr.mxu0 0.0
        %1613 = vmatpush1.msra.mxu0 0.0
        %1614 = vmatprep.subr.mxu0 0.0
        %1615 = vmatpush1.msra.mxu0 0.0
        %1616 = vmatprep.subr.mxu0 0.0
        %1617 = vmatpush1.msra.mxu0 0.0
        %1618 = vmatprep.subr.mxu0 0.0
        %1619 = vmatpush1.msra.mxu0 0.0
        %1620 = vmatprep.subr.mxu0 0.0
        %1621 = vmatpush1.msra.mxu0 0.0
        %1622 = vmatprep.subr.mxu0 0.0
        %1623 = vmatpush1.msra.mxu0 %v1587
        %1624 = vmatprep.subr.mxu0 0.0
        %1625 = vmatpush1.msra.mxu0 %v1586
        %1626 = vmatprep.subr.mxu0 0.0
        %1627 = vmatpush1.msra.mxu0 %v1585
        %1628 = vmatprep.subr.mxu0 0.0
        %1629 = vmatpush1.msra.mxu0 %v1584
        %1630 = vmatprep.subr.mxu0 0.0
        %1631 = vmatpush2.msra.mxu0 0.0
        %1632 = vmatprep.subr.mxu0 0.0
        %1633 = vmatpush2.msra.mxu0 0.0
        %1634 = vmatprep.subr.mxu0 0.0
        %1635 = vmatpush2.msra.mxu0 0.0
        %1636 = vmatprep.subr.mxu0 0.0
        %1637 = vmatpush2.msra.mxu0 0.0
        %1638 = vmatprep.subr.mxu0 0.0
        %1639 = vmatpush2.msra.mxu0 0.0
        %1640 = vmatprep.subr.mxu0 0.0
        %1641 = vmatpush2.msra.mxu0 0.0
        %1642 = vmatprep.subr.mxu0 0.0
        %1643 = vmatpush2.msra.mxu0 0.0
        %1644 = vmatprep.subr.mxu0 0.0
        %1645 = vmatpush2.msra.mxu0 0.0
        %1646 = vmatprep.subr.mxu0 0.0
        %1647 = vmatpush2.msra.mxu0 0.0
        %1648 = vmatprep.subr.mxu0 0.0
        %1649 = vmatpush2.msra.mxu0 0.0
        %1650 = vmatprep.subr.mxu0 0.0
        %1651 = vmatpush2.msra.mxu0 0.0
        %1652 = vmatprep.subr.mxu0 0.0
        %1653 = vmatpush2.msra.mxu0 0.0
        %1654 = vmatprep.subr.mxu0 0.0
        %1655 = vmatpush2.msra.mxu0 0.0
        %1656 = vmatprep.subr.mxu0 0.0
        %1657 = vmatpush2.msra.mxu0 0.0
        %1658 = vmatprep.subr.mxu0 0.0
        %1659 = vmatpush2.msra.mxu0 0.0
        %1660 = vmatprep.subr.mxu0 0.0
        %1661 = vmatpush2.msra.mxu0 0.0
        %1662 = vmatprep.mubr.f32.mxu0 0.0
        %1663 = vmatmul.mubr.f32.gmra.mxu0 %v1596
        %v1664 = vpop.f32.mrf.mxu0
        %v1665 = vadd.f32 %v1593, %v1664
        %v1666 = vpop.f32.mrf.mxu0
        %1667 = vdwg.mxu0
        %v1668 = vadd.f32 %v657, %v1665
        %v1669 = vld [vmem:[%s14] sm:$0x1]
        %v1670 = vld [vmem:[%s15] sm:$0x1]
        %v1671 = vsel %vm671, %v1668, 0.0
        %1672 = vadd.xlane.f32.xlu0 %v1671
        %v1673 = vpop.xlane.xlu0 %1672
        %v1674 = vrcp.pop 32.0
        %v1675 = vmul.f32 %v1673, %v1674
        %v1676 = vsub.f32 %v1668, %v1675
        %v1677 = vmul.f32 %v1676, %v1676
        %v1678 = vsel %vm671, %v1677, 0.0
        %1679 = vadd.xlane.f32.xlu0 %v1678
        %v1680 = vpop.xlane.xlu0 %1679
        %v1681 = vmul.f32 %v1680, %v1674
        %v1682 = vadd.f32 %v1681, 1e-05
        %v1683 = vrsqrt.pop %v1682
        %v1684 = vmul.f32 %v1676, %v1683
        %v1686 = vlaneseq
        %v1687 = vshrl.u32 %v1686, 7
        %v1688 = vsub.s32 0, %v1687
        %v1689 = vrot.slane %v1669, %v1688
        %v1691 = vmul.f32 %v1684, %v1689
        %v1693 = vlaneseq
        %v1694 = vshrl.u32 %v1693, 7
        %v1695 = vsub.s32 0, %v1694
        %v1696 = vrot.slane %v1670, %v1695
        %v1698 = vadd.f32 %v1691, %v1696
        %v1699 = vld [vmem:[#allocation8] sm:$0xff]
        %v1700 = vld [vmem:[#allocation8 + $0x8] sm:$0xff]
        %v1701 = vld [vmem:[#allocation8 + $0x10] sm:$0xff]
        %v1702 = vld [vmem:[#allocation8 + $0x18] sm:$0xff]
        %v1703 = vld [vmem:[%s11] sm:$0x1]
        %v1705 = vlaneseq
        %v1706 = vshrl.u32 %v1705, 7
        %v1707 = vsub.s32 0, %v1706
        %v1708 = vrot.slane %v1703, %v1707
        %v1711 = vsel %vm671, %v1698, 0
        %1713 = vmatprep.subr.mxu0 0.0
        %1714 = vmatpush1.msra.mxu0 0.0
        %1715 = vmatprep.subr.mxu0 0.0
        %1716 = vmatpush1.msra.mxu0 0.0
        %1717 = vmatprep.subr.mxu0 0.0
        %1718 = vmatpush1.msra.mxu0 0.0
        %1719 = vmatprep.subr.mxu0 0.0
        %1720 = vmatpush1.msra.mxu0 0.0
        %1721 = vmatprep.subr.mxu0 0.0
        %1722 = vmatpush1.msra.mxu0 0.0
        %1723 = vmatprep.subr.mxu0 0.0
        %1724 = vmatpush1.msra.mxu0 0.0
        %1725 = vmatprep.subr.mxu0 0.0
        %1726 = vmatpush1.msra.mxu0 0.0
        %1727 = vmatprep.subr.mxu0 0.0
        %1728 = vmatpush1.msra.mxu0 0.0
        %1729 = vmatprep.subr.mxu0 0.0
        %1730 = vmatpush1.msra.mxu0 0.0
        %1731 = vmatprep.subr.mxu0 0.0
        %1732 = vmatpush1.msra.mxu0 0.0
        %1733 = vmatprep.subr.mxu0 0.0
        %1734 = vmatpush1.msra.mxu0 0.0
        %1735 = vmatprep.subr.mxu0 0.0
        %1736 = vmatpush1.msra.mxu0 0.0
        %1737 = vmatprep.subr.mxu0 0.0
        %1738 = vmatpush1.msra.mxu0 %v1702
        %1739 = vmatprep.subr.mxu0 0.0
        %1740 = vmatpush1.msra.mxu0 %v1701
        %1741 = vmatprep.subr.mxu0 0.0
        %1742 = vmatpush1.msra.mxu0 %v1700
        %1743 = vmatprep.subr.mxu0 0.0
        %1744 = vmatpush1.msra.mxu0 %v1699
        %1745 = vmatprep.subr.mxu0 0.0
        %1746 = vmatpush2.msra.mxu0 0.0
        %1747 = vmatprep.subr.mxu0 0.0
        %1748 = vmatpush2.msra.mxu0 0.0
        %1749 = vmatprep.subr.mxu0 0.0
        %1750 = vmatpush2.msra.mxu0 0.0
        %1751 = vmatprep.subr.mxu0 0.0
        %1752 = vmatpush2.msra.mxu0 0.0
        %1753 = vmatprep.subr.mxu0 0.0
        %1754 = vmatpush2.msra.mxu0 0.0
        %1755 = vmatprep.subr.mxu0 0.0
        %1756 = vmatpush2.msra.mxu0 0.0
        %1757 = vmatprep.subr.mxu0 0.0
        %1758 = vmatpush2.msra.mxu0 0.0
        %1759 = vmatprep.subr.mxu0 0.0
        %1760 = vmatpush2.msra.mxu0 0.0
        %1761 = vmatprep.subr.mxu0 0.0
        %1762 = vmatpush2.msra.mxu0 0.0
        %1763 = vmatprep.subr.mxu0 0.0
        %1764 = vmatpush2.msra.mxu0 0.0
        %1765 = vmatprep.subr.mxu0 0.0
        %1766 = vmatpush2.msra.mxu0 0.0
        %1767 = vmatprep.subr.mxu0 0.0
        %1768 = vmatpush2.msra.mxu0 0.0
        %1769 = vmatprep.subr.mxu0 0.0
        %1770 = vmatpush2.msra.mxu0 0.0
        %1771 = vmatprep.subr.mxu0 0.0
        %1772 = vmatpush2.msra.mxu0 0.0
        %1773 = vmatprep.subr.mxu0 0.0
        %1774 = vmatpush2.msra.mxu0 0.0
        %1775 = vmatprep.subr.mxu0 0.0
        %1776 = vmatpush2.msra.mxu0 0.0
        %1777 = vmatprep.mubr.f32.mxu0 0.0
        %1778 = vmatmul.mubr.f32.gmra.mxu0 %v1711
        %v1779 = vpop.f32.mrf.mxu0
        %v1780 = vadd.f32 %v1708, %v1779
        %v1781 = vpop.f32.mrf.mxu0
        %1782 = vdwg.mxu0
        %v1783 = vmax.f32 %v1780, 0.0
        %v1784 = vld [vmem:[%s12] sm:$0xff]
        %v1785 = vld [vmem:[%s12 + $0x8] sm:$0xff]
        %v1786 = vld [vmem:[%s12 + $0x10] sm:$0xff]
        %v1787 = vld [vmem:[%s12 + $0x18] sm:$0xff]
        %v1788 = vld [vmem:[%s12 + $0x20] sm:$0xff]
        %v1789 = vld [vmem:[%s12 + $0x28] sm:$0xff]
        %v1790 = vld [vmem:[%s12 + $0x30] sm:$0xff]
        %v1791 = vld [vmem:[%s12 + $0x38] sm:$0xff]
        %v1792 = vld [vmem:[%s13] sm:$0x1]
        %v1794 = vlaneseq
        %v1795 = vshrl.u32 %v1794, 7
        %v1796 = vsub.s32 0, %v1795
        %v1797 = vrot.slane %v1792, %v1796
        %vm1799 = vcmask 523264
        %v1801 = vsel %vm1799, %v1783, 0
        %1803 = vmatprep.subr.mxu0 0.0
        %1804 = vmatpush1.msra.mxu0 0.0
        %1805 = vmatprep.subr.mxu0 0.0
        %1806 = vmatpush1.msra.mxu0 0.0
        %1807 = vmatprep.subr.mxu0 0.0
        %1808 = vmatpush1.msra.mxu0 0.0
        %1809 = vmatprep.subr.mxu0 0.0
        %1810 = vmatpush1.msra.mxu0 0.0
        %1811 = vmatprep.subr.mxu0 0.0
        %1812 = vmatpush1.msra.mxu0 0.0
        %1813 = vmatprep.subr.mxu0 0.0
        %1814 = vmatpush1.msra.mxu0 0.0
        %1815 = vmatprep.subr.mxu0 0.0
        %1816 = vmatpush1.msra.mxu0 0.0
        %1817 = vmatprep.subr.mxu0 0.0
        %1818 = vmatpush1.msra.mxu0 0.0
        %1819 = vmatprep.subr.mxu0 0.0
        %1820 = vmatpush1.msra.mxu0 %v1791
        %1821 = vmatprep.subr.mxu0 0.0
        %1822 = vmatpush1.msra.mxu0 %v1790
        %1823 = vmatprep.subr.mxu0 0.0
        %1824 = vmatpush1.msra.mxu0 %v1789
        %1825 = vmatprep.subr.mxu0 0.0
        %1826 = vmatpush1.msra.mxu0 %v1788
        %1827 = vmatprep.subr.mxu0 0.0
        %1828 = vmatpush1.msra.mxu0 %v1787
        %1829 = vmatprep.subr.mxu0 0.0
        %1830 = vmatpush1.msra.mxu0 %v1786
        %1831 = vmatprep.subr.mxu0 0.0
        %1832 = vmatpush1.msra.mxu0 %v1785
        %1833 = vmatprep.subr.mxu0 0.0
        %1834 = vmatpush1.msra.mxu0 %v1784
        %1835 = vmatprep.subr.mxu0 0.0
        %1836 = vmatpush2.msra.mxu0 0.0
        %1837 = vmatprep.subr.mxu0 0.0
        %1838 = vmatpush2.msra.mxu0 0.0
        %1839 = vmatprep.subr.mxu0 0.0
        %1840 = vmatpush2.msra.mxu0 0.0
        %1841 = vmatprep.subr.mxu0 0.0
        %1842 = vmatpush2.msra.mxu0 0.0
        %1843 = vmatprep.subr.mxu0 0.0
        %1844 = vmatpush2.msra.mxu0 0.0
        %1845 = vmatprep.subr.mxu0 0.0
        %1846 = vmatpush2.msra.mxu0 0.0
        %1847 = vmatprep.subr.mxu0 0.0
        %1848 = vmatpush2.msra.mxu0 0.0
        %1849 = vmatprep.subr.mxu0 0.0
        %1850 = vmatpush2.msra.mxu0 0.0
        %1851 = vmatprep.subr.mxu0 0.0
        %1852 = vmatpush2.msra.mxu0 0.0
        %1853 = vmatprep.subr.mxu0 0.0
        %1854 = vmatpush2.msra.mxu0 0.0
        %1855 = vmatprep.subr.mxu0 0.0
        %1856 = vmatpush2.msra.mxu0 0.0
        %1857 = vmatprep.subr.mxu0 0.0
        %1858 = vmatpush2.msra.mxu0 0.0
        %1859 = vmatprep.subr.mxu0 0.0
        %1860 = vmatpush2.msra.mxu0 0.0
        %1861 = vmatprep.subr.mxu0 0.0
        %1862 = vmatpush2.msra.mxu0 0.0
        %1863 = vmatprep.subr.mxu0 0.0
        %1864 = vmatpush2.msra.mxu0 0.0
        %1865 = vmatprep.subr.mxu0 0.0
        %1866 = vmatpush2.msra.mxu0 0.0
        %1867 = vmatprep.mubr.f32.mxu0 0.0
        %1868 = vmatmul.mubr.f32.gmra.mxu0 %v1801
        %v1869 = vpop.f32.mrf.mxu0
        %v1870 = vadd.f32 %v1797, %v1869
        %v1871 = vpop.f32.mrf.mxu0
        %1872 = vdwg.mxu0
        %v1873 = vadd.f32 %v1698, %v1870
        %v1874 = vld [vmem:[%s16] sm:$0x1]
        %v1875 = vld [vmem:[%s17] sm:$0x1]
        %v1876 = vsel %vm671, %v1873, 0.0
        %1877 = vadd.xlane.f32.xlu0 %v1876
        %v1878 = vpop.xlane.xlu0 %1877
        %v1879 = vmul.f32 %v1878, %v1674
        %v1880 = vsub.f32 %v1873, %v1879
        %v1881 = vmul.f32 %v1880, %v1880
        %v1882 = vsel %vm671, %v1881, 0.0
        %1883 = vadd.xlane.f32.xlu0 %v1882
        %v1884 = vpop.xlane.xlu0 %1883
        %v1885 = vmul.f32 %v1884, %v1674
        %v1886 = vadd.f32 %v1885, 1e-05
        %v1887 = vrsqrt.pop %v1886
        %v1888 = vmul.f32 %v1880, %v1887
        %v1890 = vlaneseq
        %v1891 = vshrl.u32 %v1890, 7
        %v1892 = vsub.s32 0, %v1891
        %v1893 = vrot.slane %v1874, %v1892
        %v1895 = vmul.f32 %v1888, %v1893
        %v1897 = vlaneseq
        %v1898 = vshrl.u32 %v1897, 7
        %v1899 = vsub.s32 0, %v1898
        %v1900 = vrot.slane %v1875, %v1899
        %v1902 = vadd.f32 %v1895, %v1900
        %v1903 = vadd.f32 %v1902, %v658
        %s1904 = scalar_lea.vmem %s2, 32
        %v1905 = vld [vmem:[%s1904] sm:$0xff]
        %v1906 = vld [vmem:[%s1904 + $0x8] sm:$0xff]
        %v1907 = vld [vmem:[%s1904 + $0x10] sm:$0xff]
        %v1908 = vld [vmem:[%s1904 + $0x18] sm:$0xff]
        %s1909 = scalar_lea.vmem %s3, 1
        %v1910 = vld [vmem:[%s1909] sm:$0x1]
        %v1912 = vlaneseq
        %v1913 = vshrl.u32 %v1912, 7
        %v1914 = vsub.s32 0, %v1913
        %v1915 = vrot.slane %v1910, %v1914
        %v1918 = vsel %vm671, %v1903, 0
        %1920 = vmatprep.subr.mxu0 0.0
        %1921 = vmatpush1.msra.mxu0 0.0
        %1922 = vmatprep.subr.mxu0 0.0
        %1923 = vmatpush1.msra.mxu0 0.0
        %1924 = vmatprep.subr.mxu0 0.0
        %1925 = vmatpush1.msra.mxu0 0.0
        %1926 = vmatprep.subr.mxu0 0.0
        %1927 = vmatpush1.msra.mxu0 0.0
        %1928 = vmatprep.subr.mxu0 0.0
        %1929 = vmatpush1.msra.mxu0 0.0
        %1930 = vmatprep.subr.mxu0 0.0
        %1931 = vmatpush1.msra.mxu0 0.0
        %1932 = vmatprep.subr.mxu0 0.0
        %1933 = vmatpush1.msra.mxu0 0.0
        %1934 = vmatprep.subr.mxu0 0.0
        %1935 = vmatpush1.msra.mxu0 0.0
        %1936 = vmatprep.subr.mxu0 0.0
        %1937 = vmatpush1.msra.mxu0 0.0
        %1938 = vmatprep.subr.mxu0 0.0
        %1939 = vmatpush1.msra.mxu0 0.0
        %1940 = vmatprep.subr.mxu0 0.0
        %1941 = vmatpush1.msra.mxu0 0.0
        %1942 = vmatprep.subr.mxu0 0.0
        %1943 = vmatpush1.msra.mxu0 0.0
        %1944 = vmatprep.subr.mxu0 0.0
        %1945 = vmatpush1.msra.mxu0 %v1908
        %1946 = vmatprep.subr.mxu0 0.0
        %1947 = vmatpush1.msra.mxu0 %v1907
        %1948 = vmatprep.subr.mxu0 0.0
        %1949 = vmatpush1.msra.mxu0 %v1906
        %1950 = vmatprep.subr.mxu0 0.0
        %1951 = vmatpush1.msra.mxu0 %v1905
        %1952 = vmatprep.subr.mxu0 0.0
        %1953 = vmatpush2.msra.mxu0 0.0
        %1954 = vmatprep.subr.mxu0 0.0
        %1955 = vmatpush2.msra.mxu0 0.0
        %1956 = vmatprep.subr.mxu0 0.0
        %1957 = vmatpush2.msra.mxu0 0.0
        %1958 = vmatprep.subr.mxu0 0.0
        %1959 = vmatpush2.msra.mxu0 0.0
        %1960 = vmatprep.subr.mxu0 0.0
        %1961 = vmatpush2.msra.mxu0 0.0
        %1962 = vmatprep.subr.mxu0 0.0
        %1963 = vmatpush2.msra.mxu0 0.0
        %1964 = vmatprep.subr.mxu0 0.0
        %1965 = vmatpush2.msra.mxu0 0.0
        %1966 = vmatprep.subr.mxu0 0.0
        %1967 = vmatpush2.msra.mxu0 0.0
        %1968 = vmatprep.subr.mxu0 0.0
        %1969 = vmatpush2.msra.mxu0 0.0
        %1970 = vmatprep.subr.mxu0 0.0
        %1971 = vmatpush2.msra.mxu0 0.0
        %1972 = vmatprep.subr.mxu0 0.0
        %1973 = vmatpush2.msra.mxu0 0.0
        %1974 = vmatprep.subr.mxu0 0.0
        %1975 = vmatpush2.msra.mxu0 0.0
        %1976 = vmatprep.subr.mxu0 0.0
        %1977 = vmatpush2.msra.mxu0 0.0
        %1978 = vmatprep.subr.mxu0 0.0
        %1979 = vmatpush2.msra.mxu0 0.0
        %1980 = vmatprep.subr.mxu0 0.0
        %1981 = vmatpush2.msra.mxu0 0.0
        %1982 = vmatprep.subr.mxu0 0.0
        %1983 = vmatpush2.msra.mxu0 0.0
        %1984 = vmatprep.mubr.f32.mxu0 0.0
        %1985 = vmatmul.mubr.f32.gmra.mxu0 %v1918
        %v1986 = vpop.f32.mrf.mxu0
        %v1987 = vadd.f32 %v1915, %v1986
        %v1988 = vpop.f32.mrf.mxu0
        %1989 = vdwg.mxu0
        %s1990 = scalar_lea.vmem %s4, 32
        %v1991 = vld [vmem:[%s1990] sm:$0xff]
        %v1992 = vld [vmem:[%s1990 + $0x8] sm:$0xff]
        %v1993 = vld [vmem:[%s1990 + $0x10] sm:$0xff]
        %v1994 = vld [vmem:[%s1990 + $0x18] sm:$0xff]
        %s1995 = scalar_lea.vmem %s5, 1
        %v1996 = vld [vmem:[%s1995] sm:$0x1]
        %v1998 = vlaneseq
        %v1999 = vshrl.u32 %v1998, 7
        %v2000 = vsub.s32 0, %v1999
        %v2001 = vrot.slane %v1996, %v2000
        %2003 = vmatprep.subr.mxu0 0.0
        %2004 = vmatpush1.msra.mxu0 0.0
        %2005 = vmatprep.subr.mxu0 0.0
        %2006 = vmatpush1.msra.mxu0 0.0
        %2007 = vmatprep.subr.mxu0 0.0
        %2008 = vmatpush1.msra.mxu0 0.0
        %2009 = vmatprep.subr.mxu0 0.0
        %2010 = vmatpush1.msra.mxu0 0.0
        %2011 = vmatprep.subr.mxu0 0.0
        %2012 = vmatpush1.msra.mxu0 0.0
        %2013 = vmatprep.subr.mxu0 0.0
        %2014 = vmatpush1.msra.mxu0 0.0
        %2015 = vmatprep.subr.mxu0 0.0
        %2016 = vmatpush1.msra.mxu0 0.0
        %2017 = vmatprep.subr.mxu0 0.0
        %2018 = vmatpush1.msra.mxu0 0.0
        %2019 = vmatprep.subr.mxu0 0.0
        %2020 = vmatpush1.msra.mxu0 0.0
        %2021 = vmatprep.subr.mxu0 0.0
        %2022 = vmatpush1.msra.mxu0 0.0
        %2023 = vmatprep.subr.mxu0 0.0
        %2024 = vmatpush1.msra.mxu0 0.0
        %2025 = vmatprep.subr.mxu0 0.0
        %2026 = vmatpush1.msra.mxu0 0.0
        %2027 = vmatprep.subr.mxu0 0.0
        %2028 = vmatpush1.msra.mxu0 %v1994
        %2029 = vmatprep.subr.mxu0 0.0
        %2030 = vmatpush1.msra.mxu0 %v1993
        %2031 = vmatprep.subr.mxu0 0.0
        %2032 = vmatpush1.msra.mxu0 %v1992
        %2033 = vmatprep.subr.mxu0 0.0
        %2034 = vmatpush1.msra.mxu0 %v1991
        %2035 = vmatprep.subr.mxu0 0.0
        %2036 = vmatpush2.msra.mxu0 0.0
        %2037 = vmatprep.subr.mxu0 0.0
        %2038 = vmatpush2.msra.mxu0 0.0
        %2039 = vmatprep.subr.mxu0 0.0
        %2040 = vmatpush2.msra.mxu0 0.0
        %2041 = vmatprep.subr.mxu0 0.0
        %2042 = vmatpush2.msra.mxu0 0.0
        %2043 = vmatprep.subr.mxu0 0.0
        %2044 = vmatpush2.msra.mxu0 0.0
        %2045 = vmatprep.subr.mxu0 0.0
        %2046 = vmatpush2.msra.mxu0 0.0
        %2047 = vmatprep.subr.mxu0 0.0
        %2048 = vmatpush2.msra.mxu0 0.0
        %2049 = vmatprep.subr.mxu0 0.0
        %2050 = vmatpush2.msra.mxu0 0.0
        %2051 = vmatprep.subr.mxu0 0.0
        %2052 = vmatpush2.msra.mxu0 0.0
        %2053 = vmatprep.subr.mxu0 0.0
        %2054 = vmatpush2.msra.mxu0 0.0
        %2055 = vmatprep.subr.mxu0 0.0
        %2056 = vmatpush2.msra.mxu0 0.0
        %2057 = vmatprep.subr.mxu0 0.0
        %2058 = vmatpush2.msra.mxu0 0.0
        %2059 = vmatprep.subr.mxu0 0.0
        %2060 = vmatpush2.msra.mxu0 0.0
        %2061 = vmatprep.subr.mxu0 0.0
        %2062 = vmatpush2.msra.mxu0 0.0
        %2063 = vmatprep.subr.mxu0 0.0
        %2064 = vmatpush2.msra.mxu0 0.0
        %2065 = vmatprep.subr.mxu0 0.0
        %2066 = vmatpush2.msra.mxu0 0.0
        %2067 = vmatprep.mubr.f32.mxu0 0.0
        %2068 = vmatmul.mubr.f32.gmra.mxu0 %v1918
        %v2069 = vpop.f32.mrf.mxu0
        %v2070 = vadd.f32 %v2001, %v2069
        %v2071 = vpop.f32.mrf.mxu0
        %2072 = vdwg.mxu0
        %s2073 = scalar_lea.vmem %s6, 32
        %v2074 = vld [vmem:[%s2073] sm:$0xff]
        %v2075 = vld [vmem:[%s2073 + $0x8] sm:$0xff]
        %v2076 = vld [vmem:[%s2073 + $0x10] sm:$0xff]
        %v2077 = vld [vmem:[%s2073 + $0x18] sm:$0xff]
        %s2078 = scalar_lea.vmem %s7, 1
        %v2079 = vld [vmem:[%s2078] sm:$0x1]
        %v2081 = vlaneseq
        %v2082 = vshrl.u32 %v2081, 7
        %v2083 = vsub.s32 0, %v2082
        %v2084 = vrot.slane %v2079, %v2083
        %v2087 = vsel %vm671, %v1902, 0
        %2089 = vmatprep.subr.mxu0 0.0
        %2090 = vmatpush1.msra.mxu0 0.0
        %2091 = vmatprep.subr.mxu0 0.0
        %2092 = vmatpush1.msra.mxu0 0.0
        %2093 = vmatprep.subr.mxu0 0.0
        %2094 = vmatpush1.msra.mxu0 0.0
        %2095 = vmatprep.subr.mxu0 0.0
        %2096 = vmatpush1.msra.mxu0 0.0
        %2097 = vmatprep.subr.mxu0 0.0
        %2098 = vmatpush1.msra.mxu0 0.0
        %2099 = vmatprep.subr.mxu0 0.0
        %2100 = vmatpush1.msra.mxu0 0.0
        %2101 = vmatprep.subr.mxu0 0.0
        %2102 = vmatpush1.msra.mxu0 0.0
        %2103 = vmatprep.subr.mxu0 0.0
        %2104 = vmatpush1.msra.mxu0 0.0
        %2105 = vmatprep.subr.mxu0 0.0
        %2106 = vmatpush1.msra.mxu0 0.0
        %2107 = vmatprep.subr.mxu0 0.0
        %2108 = vmatpush1.msra.mxu0 0.0
        %2109 = vmatprep.subr.mxu0 0.0
        %2110 = vmatpush1.msra.mxu0 0.0
        %2111 = vmatprep.subr.mxu0 0.0
        %2112 = vmatpush1.msra.mxu0 0.0
        %2113 = vmatprep.subr.mxu0 0.0
        %2114 = vmatpush1.msra.mxu0 %v2077
        %2115 = vmatprep.subr.mxu0 0.0
        %2116 = vmatpush1.msra.mxu0 %v2076
        %2117 = vmatprep.subr.mxu0 0.0
        %2118 = vmatpush1.msra.mxu0 %v2075
        %2119 = vmatprep.subr.mxu0 0.0
        %2120 = vmatpush1.msra.mxu0 %v2074
        %2121 = vmatprep.subr.mxu0 0.0
        %2122 = vmatpush2.msra.mxu0 0.0
        %2123 = vmatprep.subr.mxu0 0.0
        %2124 = vmatpush2.msra.mxu0 0.0
        %2125 = vmatprep.subr.mxu0 0.0
        %2126 = vmatpush2.msra.mxu0 0.0
        %2127 = vmatprep.subr.mxu0 0.0
        %2128 = vmatpush2.msra.mxu0 0.0
        %2129 = vmatprep.subr.mxu0 0.0
        %2130 = vmatpush2.msra.mxu0 0.0
        %2131 = vmatprep.subr.mxu0 0.0
        %2132 = vmatpush2.msra.mxu0 0.0
        %2133 = vmatprep.subr.mxu0 0.0
        %2134 = vmatpush2.msra.mxu0 0.0
        %2135 = vmatprep.subr.mxu0 0.0
        %2136 = vmatpush2.msra.mxu0 0.0
        %2137 = vmatprep.subr.mxu0 0.0
        %2138 = vmatpush2.msra.mxu0 0.0
        %2139 = vmatprep.subr.mxu0 0.0
        %2140 = vmatpush2.msra.mxu0 0.0
        %2141 = vmatprep.subr.mxu0 0.0
        %2142 = vmatpush2.msra.mxu0 0.0
        %2143 = vmatprep.subr.mxu0 0.0
        %2144 = vmatpush2.msra.mxu0 0.0
        %2145 = vmatprep.subr.mxu0 0.0
        %2146 = vmatpush2.msra.mxu0 0.0
        %2147 = vmatprep.subr.mxu0 0.0
        %2148 = vmatpush2.msra.mxu0 0.0
        %2149 = vmatprep.subr.mxu0 0.0
        %2150 = vmatpush2.msra.mxu0 0.0
        %2151 = vmatprep.subr.mxu0 0.0
        %2152 = vmatpush2.msra.mxu0 0.0
        %2153 = vmatprep.mubr.f32.mxu0 0.0
        %2154 = vmatmul.mubr.f32.gmra.mxu0 %v2087
        %v2155 = vpop.f32.mrf.mxu0
        %v2156 = vadd.f32 %v2084, %v2155
        %v2157 = vpop.f32.mrf.mxu0
        %2158 = vdwg.mxu0
        %2160 = vrot.lane.b32.xlu0 %v1987, 120
        %v2161 = vpop.permute.xlu0 %2160
        %2162 = vrot.lane.b32.xlu0 %v1987, 112
        %v2163 = vpop.permute.xlu0 %2162
        %2164 = vrot.lane.b32.xlu0 %v1987, 104
        %v2165 = vpop.permute.xlu0 %2164
        %2167 = vrot.lane.b32.xlu0 %v2070, 120
        %v2168 = vpop.permute.xlu0 %2167
        %2169 = vrot.lane.b32.xlu0 %v2070, 112
        %v2170 = vpop.permute.xlu0 %2169
        %2171 = vrot.lane.b32.xlu0 %v2070, 104
        %v2172 = vpop.permute.xlu0 %2171
        %2174 = vrot.lane.b32.xlu0 %v2156, 120
        %v2175 = vpop.permute.xlu0 %2174
        %2177 = vrot.lane.b32.xlu0 %v2156, 112
        %v2178 = vpop.permute.xlu0 %2177
        %2180 = vrot.lane.b32.xlu0 %v2156, 104
        %v2181 = vpop.permute.xlu0 %2180
        %v2183 = vsel %vm934, %v1987, 0
        %v2185 = vsel %vm934, %v2070, 0
        %2187 = vmatprep.subr.mxu0 0.0
        %2188 = vmatpush1.xpose.msra.mxu0 0.0
        %2189 = vmatprep.subr.mxu0 0.0
        %2190 = vmatpush1.xpose.msra.mxu0 0.0
        %2191 = vmatprep.subr.mxu0 0.0
        %2192 = vmatpush1.xpose.msra.mxu0 0.0
        %2193 = vmatprep.subr.mxu0 0.0
        %2194 = vmatpush1.xpose.msra.mxu0 0.0
        %2195 = vmatprep.subr.mxu0 0.0
        %2196 = vmatpush1.xpose.msra.mxu0 0.0
        %2197 = vmatprep.subr.mxu0 0.0
        %2198 = vmatpush1.xpose.msra.mxu0 0.0
        %2199 = vmatprep.subr.mxu0 0.0
        %2200 = vmatpush1.xpose.msra.mxu0 0.0
        %2201 = vmatprep.subr.mxu0 0.0
        %2202 = vmatpush1.xpose.msra.mxu0 0.0
        %2203 = vmatprep.subr.mxu0 0.0
        %2204 = vmatpush1.xpose.msra.mxu0 0.0
        %2205 = vmatprep.subr.mxu0 0.0
        %2206 = vmatpush1.xpose.msra.mxu0 0.0
        %2207 = vmatprep.subr.mxu0 0.0
        %2208 = vmatpush1.xpose.msra.mxu0 0.0
        %2209 = vmatprep.subr.mxu0 0.0
        %2210 = vmatpush1.xpose.msra.mxu0 0.0
        %2211 = vmatprep.subr.mxu0 0.0
        %2212 = vmatpush1.xpose.msra.mxu0 0.0
        %2213 = vmatprep.subr.mxu0 0.0
        %2214 = vmatpush1.xpose.msra.mxu0 0.0
        %2215 = vmatprep.subr.mxu0 0.0
        %2216 = vmatpush1.xpose.msra.mxu0 0.0
        %2217 = vmatprep.subr.mxu0 0.0
        %2218 = vmatpush1.xpose.msra.mxu0 %v2185
        %2219 = vmatprep.subr.mxu0 0.0
        %2220 = vmatpush2.xpose.msra.mxu0 0.0
        %2221 = vmatprep.subr.mxu0 0.0
        %2222 = vmatpush2.xpose.msra.mxu0 0.0
        %2223 = vmatprep.subr.mxu0 0.0
        %2224 = vmatpush2.xpose.msra.mxu0 0.0
        %2225 = vmatprep.subr.mxu0 0.0
        %2226 = vmatpush2.xpose.msra.mxu0 0.0
        %2227 = vmatprep.subr.mxu0 0.0
        %2228 = vmatpush2.xpose.msra.mxu0 0.0
        %2229 = vmatprep.subr.mxu0 0.0
        %2230 = vmatpush2.xpose.msra.mxu0 0.0
        %2231 = vmatprep.subr.mxu0 0.0
        %2232 = vmatpush2.xpose.msra.mxu0 0.0
        %2233 = vmatprep.subr.mxu0 0.0
        %2234 = vmatpush2.xpose.msra.mxu0 0.0
        %2235 = vmatprep.subr.mxu0 0.0
        %2236 = vmatpush2.xpose.msra.mxu0 0.0
        %2237 = vmatprep.subr.mxu0 0.0
        %2238 = vmatpush2.xpose.msra.mxu0 0.0
        %2239 = vmatprep.subr.mxu0 0.0
        %2240 = vmatpush2.xpose.msra.mxu0 0.0
        %2241 = vmatprep.subr.mxu0 0.0
        %2242 = vmatpush2.xpose.msra.mxu0 0.0
        %2243 = vmatprep.subr.mxu0 0.0
        %2244 = vmatpush2.xpose.msra.mxu0 0.0
        %2245 = vmatprep.subr.mxu0 0.0
        %2246 = vmatpush2.xpose.msra.mxu0 0.0
        %2247 = vmatprep.subr.mxu0 0.0
        %2248 = vmatpush2.xpose.msra.mxu0 0.0
        %2249 = vmatprep.subr.mxu0 0.0
        %2250 = vmatpush2.xpose.msra.mxu0 0.0
        %2251 = vmatprep.mubr.f32.mxu0 0.0
        %2252 = vmatmul.mubr.f32.gmra.mxu0 %v2183
        %v2253 = vpop.f32.mrf.mxu0
        %v2254 = vadd.f32 0.0, %v2253
        %v2255 = vpop.f32.mrf.mxu0
        %2256 = vdwg.mxu0
        %v2257 = vsel %vm934, %v2161, 0
        %v2259 = vsel %vm934, %v2168, 0
        %2261 = vmatprep.subr.mxu0 0.0
        %2262 = vmatpush1.xpose.msra.mxu0 0.0
        %2263 = vmatprep.subr.mxu0 0.0
        %2264 = vmatpush1.xpose.msra.mxu0 0.0
        %2265 = vmatprep.subr.mxu0 0.0
        %2266 = vmatpush1.xpose.msra.mxu0 0.0
        %2267 = vmatprep.subr.mxu0 0.0
        %2268 = vmatpush1.xpose.msra.mxu0 0.0
        %2269 = vmatprep.subr.mxu0 0.0
        %2270 = vmatpush1.xpose.msra.mxu0 0.0
        %2271 = vmatprep.subr.mxu0 0.0
        %2272 = vmatpush1.xpose.msra.mxu0 0.0
        %2273 = vmatprep.subr.mxu0 0.0
        %2274 = vmatpush1.xpose.msra.mxu0 0.0
        %2275 = vmatprep.subr.mxu0 0.0
        %2276 = vmatpush1.xpose.msra.mxu0 0.0
        %2277 = vmatprep.subr.mxu0 0.0
        %2278 = vmatpush1.xpose.msra.mxu0 0.0
        %2279 = vmatprep.subr.mxu0 0.0
        %2280 = vmatpush1.xpose.msra.mxu0 0.0
        %2281 = vmatprep.subr.mxu0 0.0
        %2282 = vmatpush1.xpose.msra.mxu0 0.0
        %2283 = vmatprep.subr.mxu0 0.0
        %2284 = vmatpush1.xpose.msra.mxu0 0.0
        %2285 = vmatprep.subr.mxu0 0.0
        %2286 = vmatpush1.xpose.msra.mxu0 0.0
        %2287 = vmatprep.subr.mxu0 0.0
        %2288 = vmatpush1.xpose.msra.mxu0 0.0
        %2289 = vmatprep.subr.mxu0 0.0
        %2290 = vmatpush1.xpose.msra.mxu0 0.0
        %2291 = vmatprep.subr.mxu0 0.0
        %2292 = vmatpush1.xpose.msra.mxu0 %v2259
        %2293 = vmatprep.subr.mxu0 0.0
        %2294 = vmatpush2.xpose.msra.mxu0 0.0
        %2295 = vmatprep.subr.mxu0 0.0
        %2296 = vmatpush2.xpose.msra.mxu0 0.0
        %2297 = vmatprep.subr.mxu0 0.0
        %2298 = vmatpush2.xpose.msra.mxu0 0.0
        %2299 = vmatprep.subr.mxu0 0.0
        %2300 = vmatpush2.xpose.msra.mxu0 0.0
        %2301 = vmatprep.subr.mxu0 0.0
        %2302 = vmatpush2.xpose.msra.mxu0 0.0
        %2303 = vmatprep.subr.mxu0 0.0
        %2304 = vmatpush2.xpose.msra.mxu0 0.0
        %2305 = vmatprep.subr.mxu0 0.0
        %2306 = vmatpush2.xpose.msra.mxu0 0.0
        %2307 = vmatprep.subr.mxu0 0.0
        %2308 = vmatpush2.xpose.msra.mxu0 0.0
        %2309 = vmatprep.subr.mxu0 0.0
        %2310 = vmatpush2.xpose.msra.mxu0 0.0
        %2311 = vmatprep.subr.mxu0 0.0
        %2312 = vmatpush2.xpose.msra.mxu0 0.0
        %2313 = vmatprep.subr.mxu0 0.0
        %2314 = vmatpush2.xpose.msra.mxu0 0.0
        %2315 = vmatprep.subr.mxu0 0.0
        %2316 = vmatpush2.xpose.msra.mxu0 0.0
        %2317 = vmatprep.subr.mxu0 0.0
        %2318 = vmatpush2.xpose.msra.mxu0 0.0
        %2319 = vmatprep.subr.mxu0 0.0
        %2320 = vmatpush2.xpose.msra.mxu0 0.0
        %2321 = vmatprep.subr.mxu0 0.0
        %2322 = vmatpush2.xpose.msra.mxu0 0.0
        %2323 = vmatprep.subr.mxu0 0.0
        %2324 = vmatpush2.xpose.msra.mxu0 0.0
        %2325 = vmatprep.mubr.f32.mxu0 0.0
        %2326 = vmatmul.mubr.f32.gmra.mxu0 %v2257
        %v2327 = vpop.f32.mrf.mxu0
        %v2328 = vadd.f32 0.0, %v2327
        %v2329 = vpop.f32.mrf.mxu0
        %2330 = vdwg.mxu0
        %v2331 = vsel %vm934, %v2163, 0
        %v2333 = vsel %vm934, %v2170, 0
        %2335 = vmatprep.subr.mxu0 0.0
        %2336 = vmatpush1.xpose.msra.mxu0 0.0
        %2337 = vmatprep.subr.mxu0 0.0
        %2338 = vmatpush1.xpose.msra.mxu0 0.0
        %2339 = vmatprep.subr.mxu0 0.0
        %2340 = vmatpush1.xpose.msra.mxu0 0.0
        %2341 = vmatprep.subr.mxu0 0.0
        %2342 = vmatpush1.xpose.msra.mxu0 0.0
        %2343 = vmatprep.subr.mxu0 0.0
        %2344 = vmatpush1.xpose.msra.mxu0 0.0
        %2345 = vmatprep.subr.mxu0 0.0
        %2346 = vmatpush1.xpose.msra.mxu0 0.0
        %2347 = vmatprep.subr.mxu0 0.0
        %2348 = vmatpush1.xpose.msra.mxu0 0.0
        %2349 = vmatprep.subr.mxu0 0.0
        %2350 = vmatpush1.xpose.msra.mxu0 0.0
        %2351 = vmatprep.subr.mxu0 0.0
        %2352 = vmatpush1.xpose.msra.mxu0 0.0
        %2353 = vmatprep.subr.mxu0 0.0
        %2354 = vmatpush1.xpose.msra.mxu0 0.0
        %2355 = vmatprep.subr.mxu0 0.0
        %2356 = vmatpush1.xpose.msra.mxu0 0.0
        %2357 = vmatprep.subr.mxu0 0.0
        %2358 = vmatpush1.xpose.msra.mxu0 0.0
        %2359 = vmatprep.subr.mxu0 0.0
        %2360 = vmatpush1.xpose.msra.mxu0 0.0
        %2361 = vmatprep.subr.mxu0 0.0
        %2362 = vmatpush1.xpose.msra.mxu0 0.0
        %2363 = vmatprep.subr.mxu0 0.0
        %2364 = vmatpush1.xpose.msra.mxu0 0.0
        %2365 = vmatprep.subr.mxu0 0.0
        %2366 = vmatpush1.xpose.msra.mxu0 %v2333
        %2367 = vmatprep.subr.mxu0 0.0
        %2368 = vmatpush2.xpose.msra.mxu0 0.0
        %2369 = vmatprep.subr.mxu0 0.0
        %2370 = vmatpush2.xpose.msra.mxu0 0.0
        %2371 = vmatprep.subr.mxu0 0.0
        %2372 = vmatpush2.xpose.msra.mxu0 0.0
        %2373 = vmatprep.subr.mxu0 0.0
        %2374 = vmatpush2.xpose.msra.mxu0 0.0
        %2375 = vmatprep.subr.mxu0 0.0
        %2376 = vmatpush2.xpose.msra.mxu0 0.0
        %2377 = vmatprep.subr.mxu0 0.0
        %2378 = vmatpush2.xpose.msra.mxu0 0.0
        %2379 = vmatprep.subr.mxu0 0.0
        %2380 = vmatpush2.xpose.msra.mxu0 0.0
        %2381 = vmatprep.subr.mxu0 0.0
        %2382 = vmatpush2.xpose.msra.mxu0 0.0
        %2383 = vmatprep.subr.mxu0 0.0
        %2384 = vmatpush2.xpose.msra.mxu0 0.0
        %2385 = vmatprep.subr.mxu0 0.0
        %2386 = vmatpush2.xpose.msra.mxu0 0.0
        %2387 = vmatprep.subr.mxu0 0.0
        %2388 = vmatpush2.xpose.msra.mxu0 0.0
        %2389 = vmatprep.subr.mxu0 0.0
        %2390 = vmatpush2.xpose.msra.mxu0 0.0
        %2391 = vmatprep.subr.mxu0 0.0
        %2392 = vmatpush2.xpose.msra.mxu0 0.0
        %2393 = vmatprep.subr.mxu0 0.0
        %2394 = vmatpush2.xpose.msra.mxu0 0.0
        %2395 = vmatprep.subr.mxu0 0.0
        %2396 = vmatpush2.xpose.msra.mxu0 0.0
        %2397 = vmatprep.subr.mxu0 0.0
        %2398 = vmatpush2.xpose.msra.mxu0 0.0
        %2399 = vmatprep.mubr.f32.mxu0 0.0
        %2400 = vmatmul.mubr.f32.gmra.mxu0 %v2331
        %v2401 = vpop.f32.mrf.mxu0
        %v2402 = vadd.f32 0.0, %v2401
        %v2403 = vpop.f32.mrf.mxu0
        %2404 = vdwg.mxu0
        %v2405 = vsel %vm934, %v2165, 0
        %v2407 = vsel %vm934, %v2172, 0
        %2409 = vmatprep.subr.mxu0 0.0
        %2410 = vmatpush1.xpose.msra.mxu0 0.0
        %2411 = vmatprep.subr.mxu0 0.0
        %2412 = vmatpush1.xpose.msra.mxu0 0.0
        %2413 = vmatprep.subr.mxu0 0.0
        %2414 = vmatpush1.xpose.msra.mxu0 0.0
        %2415 = vmatprep.subr.mxu0 0.0
        %2416 = vmatpush1.xpose.msra.mxu0 0.0
        %2417 = vmatprep.subr.mxu0 0.0
        %2418 = vmatpush1.xpose.msra.mxu0 0.0
        %2419 = vmatprep.subr.mxu0 0.0
        %2420 = vmatpush1.xpose.msra.mxu0 0.0
        %2421 = vmatprep.subr.mxu0 0.0
        %2422 = vmatpush1.xpose.msra.mxu0 0.0
        %2423 = vmatprep.subr.mxu0 0.0
        %2424 = vmatpush1.xpose.msra.mxu0 0.0
        %2425 = vmatprep.subr.mxu0 0.0
        %2426 = vmatpush1.xpose.msra.mxu0 0.0
        %2427 = vmatprep.subr.mxu0 0.0
        %2428 = vmatpush1.xpose.msra.mxu0 0.0
        %2429 = vmatprep.subr.mxu0 0.0
        %2430 = vmatpush1.xpose.msra.mxu0 0.0
        %2431 = vmatprep.subr.mxu0 0.0
        %2432 = vmatpush1.xpose.msra.mxu0 0.0
        %2433 = vmatprep.subr.mxu0 0.0
        %2434 = vmatpush1.xpose.msra.mxu0 0.0
        %2435 = vmatprep.subr.mxu0 0.0
        %2436 = vmatpush1.xpose.msra.mxu0 0.0
        %2437 = vmatprep.subr.mxu0 0.0
        %2438 = vmatpush1.xpose.msra.mxu0 0.0
        %2439 = vmatprep.subr.mxu0 0.0
        %2440 = vmatpush1.xpose.msra.mxu0 %v2407
        %2441 = vmatprep.subr.mxu0 0.0
        %2442 = vmatpush2.xpose.msra.mxu0 0.0
        %2443 = vmatprep.subr.mxu0 0.0
        %2444 = vmatpush2.xpose.msra.mxu0 0.0
        %2445 = vmatprep.subr.mxu0 0.0
        %2446 = vmatpush2.xpose.msra.mxu0 0.0
        %2447 = vmatprep.subr.mxu0 0.0
        %2448 = vmatpush2.xpose.msra.mxu0 0.0
        %2449 = vmatprep.subr.mxu0 0.0
        %2450 = vmatpush2.xpose.msra.mxu0 0.0
        %2451 = vmatprep.subr.mxu0 0.0
        %2452 = vmatpush2.xpose.msra.mxu0 0.0
        %2453 = vmatprep.subr.mxu0 0.0
        %2454 = vmatpush2.xpose.msra.mxu0 0.0
        %2455 = vmatprep.subr.mxu0 0.0
        %2456 = vmatpush2.xpose.msra.mxu0 0.0
        %2457 = vmatprep.subr.mxu0 0.0
        %2458 = vmatpush2.xpose.msra.mxu0 0.0
        %2459 = vmatprep.subr.mxu0 0.0
        %2460 = vmatpush2.xpose.msra.mxu0 0.0
        %2461 = vmatprep.subr.mxu0 0.0
        %2462 = vmatpush2.xpose.msra.mxu0 0.0
        %2463 = vmatprep.subr.mxu0 0.0
        %2464 = vmatpush2.xpose.msra.mxu0 0.0
        %2465 = vmatprep.subr.mxu0 0.0
        %2466 = vmatpush2.xpose.msra.mxu0 0.0
        %2467 = vmatprep.subr.mxu0 0.0
        %2468 = vmatpush2.xpose.msra.mxu0 0.0
        %2469 = vmatprep.subr.mxu0 0.0
        %2470 = vmatpush2.xpose.msra.mxu0 0.0
        %2471 = vmatprep.subr.mxu0 0.0
        %2472 = vmatpush2.xpose.msra.mxu0 0.0
        %2473 = vmatprep.mubr.f32.mxu0 0.0
        %2474 = vmatmul.mubr.f32.gmra.mxu0 %v2405
        %v2475 = vpop.f32.mrf.mxu0
        %v2476 = vadd.f32 0.0, %v2475
        %v2477 = vpop.f32.mrf.mxu0
        %2478 = vdwg.mxu0
        %v2479 = vsel %vm934, %v2254, -inf
        %2480 = vmax.xlane.f32.xlu0 %v2479
        %v2481 = vpop.xlane.xlu0 %2480
        %v2482 = vsel %vm934, %v2328, -inf
        %2483 = vmax.xlane.f32.xlu0 %v2482
        %v2484 = vpop.xlane.xlu0 %2483
        %v2485 = vsel %vm934, %v2402, -inf
        %2486 = vmax.xlane.f32.xlu0 %v2485
        %v2487 = vpop.xlane.xlu0 %2486
        %v2488 = vsel %vm934, %v2476, -inf
        %2489 = vmax.xlane.f32.xlu0 %v2488
        %v2490 = vpop.xlane.xlu0 %2489
        %v2491 = vsub.f32 %v2254, %v2481
        %v2492 = vsub.f32 %v2328, %v2484
        %v2493 = vsub.f32 %v2402, %v2487
        %v2494 = vsub.f32 %v2476, %v2490
        %v2495 = vmul.f32 %v2491, 1.442695
        %v2496 = vpow.pop %v2495
        %v2497 = vmul.f32 %v2492, 1.442695
        %v2498 = vpow.pop %v2497
        %v2499 = vmul.f32 %v2493, 1.442695
        %v2500 = vpow.pop %v2499
        %v2501 = vmul.f32 %v2494, 1.442695
        %v2502 = vpow.pop %v2501
        %v2503 = vsel %vm934, %v2496, 0.0
        %2504 = vadd.xlane.f32.xlu0 %v2503
        %v2505 = vpop.xlane.xlu0 %2504
        %v2506 = vsel %vm934, %v2498, 0.0
        %2507 = vadd.xlane.f32.xlu0 %v2506
        %v2508 = vpop.xlane.xlu0 %2507
        %v2509 = vsel %vm934, %v2500, 0.0
        %2510 = vadd.xlane.f32.xlu0 %v2509
        %v2511 = vpop.xlane.xlu0 %2510
        %v2512 = vsel %vm934, %v2502, 0.0
        %2513 = vadd.xlane.f32.xlu0 %v2512
        %v2514 = vpop.xlane.xlu0 %2513
        %v2515 = vrcp.pop %v2505
        %v2516 = vmul.f32 %v2496, %v2515
        %v2517 = vrcp.pop %v2508
        %v2518 = vmul.f32 %v2498, %v2517
        %v2519 = vrcp.pop %v2511
        %v2520 = vmul.f32 %v2500, %v2519
        %v2521 = vrcp.pop %v2514
        %v2522 = vmul.f32 %v2502, %v2521
        %v2524 = vsel %vm934, %v2516, 0
        %2526 = vmatprep.subr.mxu0 0.0
        %2527 = vmatpush1.msra.mxu0 0.0
        %2528 = vmatprep.subr.mxu0 0.0
        %2529 = vmatpush1.msra.mxu0 0.0
        %2530 = vmatprep.subr.mxu0 0.0
        %2531 = vmatpush1.msra.mxu0 0.0
        %2532 = vmatprep.subr.mxu0 0.0
        %2533 = vmatpush1.msra.mxu0 0.0
        %2534 = vmatprep.subr.mxu0 0.0
        %2535 = vmatpush1.msra.mxu0 0.0
        %2536 = vmatprep.subr.mxu0 0.0
        %2537 = vmatpush1.msra.mxu0 0.0
        %2538 = vmatprep.subr.mxu0 0.0
        %2539 = vmatpush1.msra.mxu0 0.0
        %2540 = vmatprep.subr.mxu0 0.0
        %2541 = vmatpush1.msra.mxu0 0.0
        %2542 = vmatprep.subr.mxu0 0.0
        %2543 = vmatpush1.msra.mxu0 0.0
        %2544 = vmatprep.subr.mxu0 0.0
        %2545 = vmatpush1.msra.mxu0 0.0
        %2546 = vmatprep.subr.mxu0 0.0
        %2547 = vmatpush1.msra.mxu0 0.0
        %2548 = vmatprep.subr.mxu0 0.0
        %2549 = vmatpush1.msra.mxu0 0.0
        %2550 = vmatprep.subr.mxu0 0.0
        %2551 = vmatpush1.msra.mxu0 0.0
        %2552 = vmatprep.subr.mxu0 0.0
        %2553 = vmatpush1.msra.mxu0 0.0
        %2554 = vmatprep.subr.mxu0 0.0
        %2555 = vmatpush1.msra.mxu0 0.0
        %2556 = vmatprep.subr.mxu0 0.0
        %2557 = vmatpush1.msra.mxu0 %v2156
        %2558 = vmatprep.subr.mxu0 0.0
        %2559 = vmatpush2.msra.mxu0 0.0
        %2560 = vmatprep.subr.mxu0 0.0
        %2561 = vmatpush2.msra.mxu0 0.0
        %2562 = vmatprep.subr.mxu0 0.0
        %2563 = vmatpush2.msra.mxu0 0.0
        %2564 = vmatprep.subr.mxu0 0.0
        %2565 = vmatpush2.msra.mxu0 0.0
        %2566 = vmatprep.subr.mxu0 0.0
        %2567 = vmatpush2.msra.mxu0 0.0
        %2568 = vmatprep.subr.mxu0 0.0
        %2569 = vmatpush2.msra.mxu0 0.0
        %2570 = vmatprep.subr.mxu0 0.0
        %2571 = vmatpush2.msra.mxu0 0.0
        %2572 = vmatprep.subr.mxu0 0.0
        %2573 = vmatpush2.msra.mxu0 0.0
        %2574 = vmatprep.subr.mxu0 0.0
        %2575 = vmatpush2.msra.mxu0 0.0
        %2576 = vmatprep.subr.mxu0 0.0
        %2577 = vmatpush2.msra.mxu0 0.0
        %2578 = vmatprep.subr.mxu0 0.0
        %2579 = vmatpush2.msra.mxu0 0.0
        %2580 = vmatprep.subr.mxu0 0.0
        %2581 = vmatpush2.msra.mxu0 0.0
        %2582 = vmatprep.subr.mxu0 0.0
        %2583 = vmatpush2.msra.mxu0 0.0
        %2584 = vmatprep.subr.mxu0 0.0
        %2585 = vmatpush2.msra.mxu0 0.0
        %2586 = vmatprep.subr.mxu0 0.0
        %2587 = vmatpush2.msra.mxu0 0.0
        %2588 = vmatprep.subr.mxu0 0.0
        %2589 = vmatpush2.msra.mxu0 0.0
        %2590 = vmatprep.mubr.f32.mxu0 0.0
        %2591 = vmatmul.mubr.f32.gmra.mxu0 %v2524
        %v2592 = vpop.f32.mrf.mxu0
        %v2593 = vadd.f32 0.0, %v2592
        %v2594 = vpop.f32.mrf.mxu0
        %2595 = vdwg.mxu0
        %v2597 = vsel %vm934, %v2518, 0
        %2599 = vmatprep.subr.mxu0 0.0
        %2600 = vmatpush1.msra.mxu0 0.0
        %2601 = vmatprep.subr.mxu0 0.0
        %2602 = vmatpush1.msra.mxu0 0.0
        %2603 = vmatprep.subr.mxu0 0.0
        %2604 = vmatpush1.msra.mxu0 0.0
        %2605 = vmatprep.subr.mxu0 0.0
        %2606 = vmatpush1.msra.mxu0 0.0
        %2607 = vmatprep.subr.mxu0 0.0
        %2608 = vmatpush1.msra.mxu0 0.0
        %2609 = vmatprep.subr.mxu0 0.0
        %2610 = vmatpush1.msra.mxu0 0.0
        %2611 = vmatprep.subr.mxu0 0.0
        %2612 = vmatpush1.msra.mxu0 0.0
        %2613 = vmatprep.subr.mxu0 0.0
        %2614 = vmatpush1.msra.mxu0 0.0
        %2615 = vmatprep.subr.mxu0 0.0
        %2616 = vmatpush1.msra.mxu0 0.0
        %2617 = vmatprep.subr.mxu0 0.0
        %2618 = vmatpush1.msra.mxu0 0.0
        %2619 = vmatprep.subr.mxu0 0.0
        %2620 = vmatpush1.msra.mxu0 0.0
        %2621 = vmatprep.subr.mxu0 0.0
        %2622 = vmatpush1.msra.mxu0 0.0
        %2623 = vmatprep.subr.mxu0 0.0
        %2624 = vmatpush1.msra.mxu0 0.0
        %2625 = vmatprep.subr.mxu0 0.0
        %2626 = vmatpush1.msra.mxu0 0.0
        %2627 = vmatprep.subr.mxu0 0.0
        %2628 = vmatpush1.msra.mxu0 0.0
        %2629 = vmatprep.subr.mxu0 0.0
        %2630 = vmatpush1.msra.mxu0 %v2175
        %2631 = vmatprep.subr.mxu0 0.0
        %2632 = vmatpush2.msra.mxu0 0.0
        %2633 = vmatprep.subr.mxu0 0.0
        %2634 = vmatpush2.msra.mxu0 0.0
        %2635 = vmatprep.subr.mxu0 0.0
        %2636 = vmatpush2.msra.mxu0 0.0
        %2637 = vmatprep.subr.mxu0 0.0
        %2638 = vmatpush2.msra.mxu0 0.0
        %2639 = vmatprep.subr.mxu0 0.0
        %2640 = vmatpush2.msra.mxu0 0.0
        %2641 = vmatprep.subr.mxu0 0.0
        %2642 = vmatpush2.msra.mxu0 0.0
        %2643 = vmatprep.subr.mxu0 0.0
        %2644 = vmatpush2.msra.mxu0 0.0
        %2645 = vmatprep.subr.mxu0 0.0
        %2646 = vmatpush2.msra.mxu0 0.0
        %2647 = vmatprep.subr.mxu0 0.0
        %2648 = vmatpush2.msra.mxu0 0.0
        %2649 = vmatprep.subr.mxu0 0.0
        %2650 = vmatpush2.msra.mxu0 0.0
        %2651 = vmatprep.subr.mxu0 0.0
        %2652 = vmatpush2.msra.mxu0 0.0
        %2653 = vmatprep.subr.mxu0 0.0
        %2654 = vmatpush2.msra.mxu0 0.0
        %2655 = vmatprep.subr.mxu0 0.0
        %2656 = vmatpush2.msra.mxu0 0.0
        %2657 = vmatprep.subr.mxu0 0.0
        %2658 = vmatpush2.msra.mxu0 0.0
        %2659 = vmatprep.subr.mxu0 0.0
        %2660 = vmatpush2.msra.mxu0 0.0
        %2661 = vmatprep.subr.mxu0 0.0
        %2662 = vmatpush2.msra.mxu0 0.0
        %2663 = vmatprep.mubr.f32.mxu0 0.0
        %2664 = vmatmul.mubr.f32.gmra.mxu0 %v2597
        %v2665 = vpop.f32.mrf.mxu0
        %v2666 = vadd.f32 0.0, %v2665
        %v2667 = vpop.f32.mrf.mxu0
        %2668 = vdwg.mxu0
        %v2670 = vsel %vm934, %v2520, 0
        %2672 = vmatprep.subr.mxu0 0.0
        %2673 = vmatpush1.msra.mxu0 0.0
        %2674 = vmatprep.subr.mxu0 0.0
        %2675 = vmatpush1.msra.mxu0 0.0
        %2676 = vmatprep.subr.mxu0 0.0
        %2677 = vmatpush1.msra.mxu0 0.0
        %2678 = vmatprep.subr.mxu0 0.0
        %2679 = vmatpush1.msra.mxu0 0.0
        %2680 = vmatprep.subr.mxu0 0.0
        %2681 = vmatpush1.msra.mxu0 0.0
        %2682 = vmatprep.subr.mxu0 0.0
        %2683 = vmatpush1.msra.mxu0 0.0
        %2684 = vmatprep.subr.mxu0 0.0
        %2685 = vmatpush1.msra.mxu0 0.0
        %2686 = vmatprep.subr.mxu0 0.0
        %2687 = vmatpush1.msra.mxu0 0.0
        %2688 = vmatprep.subr.mxu0 0.0
        %2689 = vmatpush1.msra.mxu0 0.0
        %2690 = vmatprep.subr.mxu0 0.0
        %2691 = vmatpush1.msra.mxu0 0.0
        %2692 = vmatprep.subr.mxu0 0.0
        %2693 = vmatpush1.msra.mxu0 0.0
        %2694 = vmatprep.subr.mxu0 0.0
        %2695 = vmatpush1.msra.mxu0 0.0
        %2696 = vmatprep.subr.mxu0 0.0
        %2697 = vmatpush1.msra.mxu0 0.0
        %2698 = vmatprep.subr.mxu0 0.0
        %2699 = vmatpush1.msra.mxu0 0.0
        %2700 = vmatprep.subr.mxu0 0.0
        %2701 = vmatpush1.msra.mxu0 0.0
        %2702 = vmatprep.subr.mxu0 0.0
        %2703 = vmatpush1.msra.mxu0 %v2178
        %2704 = vmatprep.subr.mxu0 0.0
        %2705 = vmatpush2.msra.mxu0 0.0
        %2706 = vmatprep.subr.mxu0 0.0
        %2707 = vmatpush2.msra.mxu0 0.0
        %2708 = vmatprep.subr.mxu0 0.0
        %2709 = vmatpush2.msra.mxu0 0.0
        %2710 = vmatprep.subr.mxu0 0.0
        %2711 = vmatpush2.msra.mxu0 0.0
        %2712 = vmatprep.subr.mxu0 0.0
        %2713 = vmatpush2.msra.mxu0 0.0
        %2714 = vmatprep.subr.mxu0 0.0
        %2715 = vmatpush2.msra.mxu0 0.0
        %2716 = vmatprep.subr.mxu0 0.0
        %2717 = vmatpush2.msra.mxu0 0.0
        %2718 = vmatprep.subr.mxu0 0.0
        %2719 = vmatpush2.msra.mxu0 0.0
        %2720 = vmatprep.subr.mxu0 0.0
        %2721 = vmatpush2.msra.mxu0 0.0
        %2722 = vmatprep.subr.mxu0 0.0
        %2723 = vmatpush2.msra.mxu0 0.0
        %2724 = vmatprep.subr.mxu0 0.0
        %2725 = vmatpush2.msra.mxu0 0.0
        %2726 = vmatprep.subr.mxu0 0.0
        %2727 = vmatpush2.msra.mxu0 0.0
        %2728 = vmatprep.subr.mxu0 0.0
        %2729 = vmatpush2.msra.mxu0 0.0
        %2730 = vmatprep.subr.mxu0 0.0
        %2731 = vmatpush2.msra.mxu0 0.0
        %2732 = vmatprep.subr.mxu0 0.0
        %2733 = vmatpush2.msra.mxu0 0.0
        %2734 = vmatprep.subr.mxu0 0.0
        %2735 = vmatpush2.msra.mxu0 0.0
        %2736 = vmatprep.mubr.f32.mxu0 0.0
        %2737 = vmatmul.mubr.f32.gmra.mxu0 %v2670
        %v2738 = vpop.f32.mrf.mxu0
        %v2739 = vadd.f32 0.0, %v2738
        %v2740 = vpop.f32.mrf.mxu0
        %2741 = vdwg.mxu0
        %v2743 = vsel %vm934, %v2522, 0
        %2745 = vmatprep.subr.mxu0 0.0
        %2746 = vmatpush1.msra.mxu0 0.0
        %2747 = vmatprep.subr.mxu0 0.0
        %2748 = vmatpush1.msra.mxu0 0.0
        %2749 = vmatprep.subr.mxu0 0.0
        %2750 = vmatpush1.msra.mxu0 0.0
        %2751 = vmatprep.subr.mxu0 0.0
        %2752 = vmatpush1.msra.mxu0 0.0
        %2753 = vmatprep.subr.mxu0 0.0
        %2754 = vmatpush1.msra.mxu0 0.0
        %2755 = vmatprep.subr.mxu0 0.0
        %2756 = vmatpush1.msra.mxu0 0.0
        %2757 = vmatprep.subr.mxu0 0.0
        %2758 = vmatpush1.msra.mxu0 0.0
        %2759 = vmatprep.subr.mxu0 0.0
        %2760 = vmatpush1.msra.mxu0 0.0
        %2761 = vmatprep.subr.mxu0 0.0
        %2762 = vmatpush1.msra.mxu0 0.0
        %2763 = vmatprep.subr.mxu0 0.0
        %2764 = vmatpush1.msra.mxu0 0.0
        %2765 = vmatprep.subr.mxu0 0.0
        %2766 = vmatpush1.msra.mxu0 0.0
        %2767 = vmatprep.subr.mxu0 0.0
        %2768 = vmatpush1.msra.mxu0 0.0
        %2769 = vmatprep.subr.mxu0 0.0
        %2770 = vmatpush1.msra.mxu0 0.0
        %2771 = vmatprep.subr.mxu0 0.0
        %2772 = vmatpush1.msra.mxu0 0.0
        %2773 = vmatprep.subr.mxu0 0.0
        %2774 = vmatpush1.msra.mxu0 0.0
        %2775 = vmatprep.subr.mxu0 0.0
        %2776 = vmatpush1.msra.mxu0 %v2181
        %2777 = vmatprep.subr.mxu0 0.0
        %2778 = vmatpush2.msra.mxu0 0.0
        %2779 = vmatprep.subr.mxu0 0.0
        %2780 = vmatpush2.msra.mxu0 0.0
        %2781 = vmatprep.subr.mxu0 0.0
        %2782 = vmatpush2.msra.mxu0 0.0
        %2783 = vmatprep.subr.mxu0 0.0
        %2784 = vmatpush2.msra.mxu0 0.0
        %2785 = vmatprep.subr.mxu0 0.0
        %2786 = vmatpush2.msra.mxu0 0.0
        %2787 = vmatprep.subr.mxu0 0.0
        %2788 = vmatpush2.msra.mxu0 0.0
        %2789 = vmatprep.subr.mxu0 0.0
        %2790 = vmatpush2.msra.mxu0 0.0
        %2791 = vmatprep.subr.mxu0 0.0
        %2792 = vmatpush2.msra.mxu0 0.0
        %2793 = vmatprep.subr.mxu0 0.0
        %2794 = vmatpush2.msra.mxu0 0.0
        %2795 = vmatprep.subr.mxu0 0.0
        %2796 = vmatpush2.msra.mxu0 0.0
        %2797 = vmatprep.subr.mxu0 0.0
        %2798 = vmatpush2.msra.mxu0 0.0
        %2799 = vmatprep.subr.mxu0 0.0
        %2800 = vmatpush2.msra.mxu0 0.0
        %2801 = vmatprep.subr.mxu0 0.0
        %2802 = vmatpush2.msra.mxu0 0.0
        %2803 = vmatprep.subr.mxu0 0.0
        %2804 = vmatpush2.msra.mxu0 0.0
        %2805 = vmatprep.subr.mxu0 0.0
        %2806 = vmatpush2.msra.mxu0 0.0
        %2807 = vmatprep.subr.mxu0 0.0
        %2808 = vmatpush2.msra.mxu0 0.0
        %2809 = vmatprep.mubr.f32.mxu0 0.0
        %2810 = vmatmul.mubr.f32.gmra.mxu0 %v2743
        %v2811 = vpop.f32.mrf.mxu0
        %v2812 = vadd.f32 0.0, %v2811
        %v2813 = vpop.f32.mrf.mxu0
        %2814 = vdwg.mxu0
        %2816 = vrot.lane.b32.xlu0 %v2666, 8
        %v2817 = vpop.permute.xlu0 %2816
        %2820 = vrot.lane.b32.xlu0 %v2739, 16
        %v2821 = vpop.permute.xlu0 %2820
        %2824 = vrot.lane.b32.xlu0 %v2812, 24
        %v2825 = vpop.permute.xlu0 %2824
        %v2827 = vsel %vm934, %v2593, %v2817
        %v2828 = vsel %vm1580, %v2827, %v2821
        %v2829 = vsel %vm1582, %v2828, %v2825
        %s2830 = scalar_lea.vmem [#allocation7], 32
        %v2831 = vld [vmem:[%s2830] sm:$0xff]
        %v2832 = vld [vmem:[%s2830 + $0x8] sm:$0xff]
        %v2833 = vld [vmem:[%s2830 + $0x10] sm:$0xff]
        %v2834 = vld [vmem:[%s2830 + $0x18] sm:$0xff]
        %s2835 = scalar_lea.vmem %s9, 1
        %v2836 = vld [vmem:[%s2835] sm:$0x1]
        %v2838 = vlaneseq
        %v2839 = vshrl.u32 %v2838, 7
        %v2840 = vsub.s32 0, %v2839
        %v2841 = vrot.slane %v2836, %v2840
        %v2844 = vsel %vm671, %v2829, 0
        %2846 = vmatprep.subr.mxu0 0.0
        %2847 = vmatpush1.msra.mxu0 0.0
        %2848 = vmatprep.subr.mxu0 0.0
        %2849 = vmatpush1.msra.mxu0 0.0
        %2850 = vmatprep.subr.mxu0 0.0
        %2851 = vmatpush1.msra.mxu0 0.0
        %2852 = vmatprep.subr.mxu0 0.0
        %2853 = vmatpush1.msra.mxu0 0.0
        %2854 = vmatprep.subr.mxu0 0.0
        %2855 = vmatpush1.msra.mxu0 0.0
        %2856 = vmatprep.subr.mxu0 0.0
        %2857 = vmatpush1.msra.mxu0 0.0
        %2858 = vmatprep.subr.mxu0 0.0
        %2859 = vmatpush1.msra.mxu0 0.0
        %2860 = vmatprep.subr.mxu0 0.0
        %2861 = vmatpush1.msra.mxu0 0.0
        %2862 = vmatprep.subr.mxu0 0.0
        %2863 = vmatpush1.msra.mxu0 0.0
        %2864 = vmatprep.subr.mxu0 0.0
        %2865 = vmatpush1.msra.mxu0 0.0
        %2866 = vmatprep.subr.mxu0 0.0
        %2867 = vmatpush1.msra.mxu0 0.0
        %2868 = vmatprep.subr.mxu0 0.0
        %2869 = vmatpush1.msra.mxu0 0.0
        %2870 = vmatprep.subr.mxu0 0.0
        %2871 = vmatpush1.msra.mxu0 %v2834
        %2872 = vmatprep.subr.mxu0 0.0
        %2873 = vmatpush1.msra.mxu0 %v2833
        %2874 = vmatprep.subr.mxu0 0.0
        %2875 = vmatpush1.msra.mxu0 %v2832
        %2876 = vmatprep.subr.mxu0 0.0
        %2877 = vmatpush1.msra.mxu0 %v2831
        %2878 = vmatprep.subr.mxu0 0.0
        %2879 = vmatpush2.msra.mxu0 0.0
        %2880 = vmatprep.subr.mxu0 0.0
        %2881 = vmatpush2.msra.mxu0 0.0
        %2882 = vmatprep.subr.mxu0 0.0
        %2883 = vmatpush2.msra.mxu0 0.0
        %2884 = vmatprep.subr.mxu0 0.0
        %2885 = vmatpush2.msra.mxu0 0.0
        %2886 = vmatprep.subr.mxu0 0.0
        %2887 = vmatpush2.msra.mxu0 0.0
        %2888 = vmatprep.subr.mxu0 0.0
        %2889 = vmatpush2.msra.mxu0 0.0
        %2890 = vmatprep.subr.mxu0 0.0
        %2891 = vmatpush2.msra.mxu0 0.0
        %2892 = vmatprep.subr.mxu0 0.0
        %2893 = vmatpush2.msra.mxu0 0.0
        %2894 = vmatprep.subr.mxu0 0.0
        %2895 = vmatpush2.msra.mxu0 0.0
        %2896 = vmatprep.subr.mxu0 0.0
        %2897 = vmatpush2.msra.mxu0 0.0
        %2898 = vmatprep.subr.mxu0 0.0
        %2899 = vmatpush2.msra.mxu0 0.0
        %2900 = vmatprep.subr.mxu0 0.0
        %2901 = vmatpush2.msra.mxu0 0.0
        %2902 = vmatprep.subr.mxu0 0.0
        %2903 = vmatpush2.msra.mxu0 0.0
        %2904 = vmatprep.subr.mxu0 0.0
        %2905 = vmatpush2.msra.mxu0 0.0
        %2906 = vmatprep.subr.mxu0 0.0
        %2907 = vmatpush2.msra.mxu0 0.0
        %2908 = vmatprep.subr.mxu0 0.0
        %2909 = vmatpush2.msra.mxu0 0.0
        %2910 = vmatprep.mubr.f32.mxu0 0.0
        %2911 = vmatmul.mubr.f32.gmra.mxu0 %v2844
        %v2912 = vpop.f32.mrf.mxu0
        %v2913 = vadd.f32 %v2841, %v2912
        %v2914 = vpop.f32.mrf.mxu0
        %2915 = vdwg.mxu0
        %v2916 = vadd.f32 %v1902, %v2913
        %s2917 = scalar_lea.vmem %s14, 1
        %v2918 = vld [vmem:[%s2917] sm:$0x1]
        %s2919 = scalar_lea.vmem %s15, 1
        %v2920 = vld [vmem:[%s2919] sm:$0x1]
        %v2921 = vsel %vm671, %v2916, 0.0
        %2922 = vadd.xlane.f32.xlu0 %v2921
        %v2923 = vpop.xlane.xlu0 %2922
        %v2924 = vmul.f32 %v2923, %v1674
        %v2925 = vsub.f32 %v2916, %v2924
        %v2926 = vmul.f32 %v2925, %v2925
        %v2927 = vsel %vm671, %v2926, 0.0
        %2928 = vadd.xlane.f32.xlu0 %v2927
        %v2929 = vpop.xlane.xlu0 %2928
        %v2930 = vmul.f32 %v2929, %v1674
        %v2931 = vadd.f32 %v2930, 1e-05
        %v2932 = vrsqrt.pop %v2931
        %v2933 = vmul.f32 %v2925, %v2932
        %v2935 = vlaneseq
        %v2936 = vshrl.u32 %v2935, 7
        %v2937 = vsub.s32 0, %v2936
        %v2938 = vrot.slane %v2918, %v2937
        %v2940 = vmul.f32 %v2933, %v2938
        %v2942 = vlaneseq
        %v2943 = vshrl.u32 %v2942, 7
        %v2944 = vsub.s32 0, %v2943
        %v2945 = vrot.slane %v2920, %v2944
        %v2947 = vadd.f32 %v2940, %v2945
        %s2948 = scalar_lea.vmem [#allocation8], 32
        %v2949 = vld [vmem:[%s2948] sm:$0xff]
        %v2950 = vld [vmem:[%s2948 + $0x8] sm:$0xff]
        %v2951 = vld [vmem:[%s2948 + $0x10] sm:$0xff]
        %v2952 = vld [vmem:[%s2948 + $0x18] sm:$0xff]
        %s2953 = scalar_lea.vmem %s11, 1
        %v2954 = vld [vmem:[%s2953] sm:$0x1]
        %v2956 = vlaneseq
        %v2957 = vshrl.u32 %v2956, 7
        %v2958 = vsub.s32 0, %v2957
        %v2959 = vrot.slane %v2954, %v2958
        %v2962 = vsel %vm671, %v2947, 0
        %2964 = vmatprep.subr.mxu0 0.0
        %2965 = vmatpush1.msra.mxu0 0.0
        %2966 = vmatprep.subr.mxu0 0.0
        %2967 = vmatpush1.msra.mxu0 0.0
        %2968 = vmatprep.subr.mxu0 0.0
        %2969 = vmatpush1.msra.mxu0 0.0
        %2970 = vmatprep.subr.mxu0 0.0
        %2971 = vmatpush1.msra.mxu0 0.0
        %2972 = vmatprep.subr.mxu0 0.0
        %2973 = vmatpush1.msra.mxu0 0.0
        %2974 = vmatprep.subr.mxu0 0.0
        %2975 = vmatpush1.msra.mxu0 0.0
        %2976 = vmatprep.subr.mxu0 0.0
        %2977 = vmatpush1.msra.mxu0 0.0
        %2978 = vmatprep.subr.mxu0 0.0
        %2979 = vmatpush1.msra.mxu0 0.0
        %2980 = vmatprep.subr.mxu0 0.0
        %2981 = vmatpush1.msra.mxu0 0.0
        %2982 = vmatprep.subr.mxu0 0.0
        %2983 = vmatpush1.msra.mxu0 0.0
        %2984 = vmatprep.subr.mxu0 0.0
        %2985 = vmatpush1.msra.mxu0 0.0
        %2986 = vmatprep.subr.mxu0 0.0
        %2987 = vmatpush1.msra.mxu0 0.0
        %2988 = vmatprep.subr.mxu0 0.0
        %2989 = vmatpush1.msra.mxu0 %v2952
        %2990 = vmatprep.subr.mxu0 0.0
        %2991 = vmatpush1.msra.mxu0 %v2951
        %2992 = vmatprep.subr.mxu0 0.0
        %2993 = vmatpush1.msra.mxu0 %v2950
        %2994 = vmatprep.subr.mxu0 0.0
        %2995 = vmatpush1.msra.mxu0 %v2949
        %2996 = vmatprep.subr.mxu0 0.0
        %2997 = vmatpush2.msra.mxu0 0.0
        %2998 = vmatprep.subr.mxu0 0.0
        %2999 = vmatpush2.msra.mxu0 0.0
        %3000 = vmatprep.subr.mxu0 0.0
        %3001 = vmatpush2.msra.mxu0 0.0
        %3002 = vmatprep.subr.mxu0 0.0
        %3003 = vmatpush2.msra.mxu0 0.0
        %3004 = vmatprep.subr.mxu0 0.0
        %3005 = vmatpush2.msra.mxu0 0.0
        %3006 = vmatprep.subr.mxu0 0.0
        %3007 = vmatpush2.msra.mxu0 0.0
        %3008 = vmatprep.subr.mxu0 0.0
        %3009 = vmatpush2.msra.mxu0 0.0
        %3010 = vmatprep.subr.mxu0 0.0
        %3011 = vmatpush2.msra.mxu0 0.0
        %3012 = vmatprep.subr.mxu0 0.0
        %3013 = vmatpush2.msra.mxu0 0.0
        %3014 = vmatprep.subr.mxu0 0.0
        %3015 = vmatpush2.msra.mxu0 0.0
        %3016 = vmatprep.subr.mxu0 0.0
        %3017 = vmatpush2.msra.mxu0 0.0
        %3018 = vmatprep.subr.mxu0 0.0
        %3019 = vmatpush2.msra.mxu0 0.0
        %3020 = vmatprep.subr.mxu0 0.0
        %3021 = vmatpush2.msra.mxu0 0.0
        %3022 = vmatprep.subr.mxu0 0.0
        %3023 = vmatpush2.msra.mxu0 0.0
        %3024 = vmatprep.subr.mxu0 0.0
        %3025 = vmatpush2.msra.mxu0 0.0
        %3026 = vmatprep.subr.mxu0 0.0
        %3027 = vmatpush2.msra.mxu0 0.0
        %3028 = vmatprep.mubr.f32.mxu0 0.0
        %3029 = vmatmul.mubr.f32.gmra.mxu0 %v2962
        %v3030 = vpop.f32.mrf.mxu0
        %v3031 = vadd.f32 %v2959, %v3030
        %v3032 = vpop.f32.mrf.mxu0
        %3033 = vdwg.mxu0
        %v3034 = vmax.f32 %v3031, 0.0
        %s3035 = scalar_lea.vmem %s12, 64
        %v3036 = vld [vmem:[%s3035] sm:$0xff]
        %v3037 = vld [vmem:[%s3035 + $0x8] sm:$0xff]
        %v3038 = vld [vmem:[%s3035 + $0x10] sm:$0xff]
        %v3039 = vld [vmem:[%s3035 + $0x18] sm:$0xff]
        %v3040 = vld [vmem:[%s3035 + $0x20] sm:$0xff]
        %v3041 = vld [vmem:[%s3035 + $0x28] sm:$0xff]
        %v3042 = vld [vmem:[%s3035 + $0x30] sm:$0xff]
        %v3043 = vld [vmem:[%s3035 + $0x38] sm:$0xff]
        %s3044 = scalar_lea.vmem %s13, 1
        %v3045 = vld [vmem:[%s3044] sm:$0x1]
        %v3047 = vlaneseq
        %v3048 = vshrl.u32 %v3047, 7
        %v3049 = vsub.s32 0, %v3048
        %v3050 = vrot.slane %v3045, %v3049
        %v3053 = vsel %vm1799, %v3034, 0
        %3055 = vmatprep.subr.mxu0 0.0
        %3056 = vmatpush1.msra.mxu0 0.0
        %3057 = vmatprep.subr.mxu0 0.0
        %3058 = vmatpush1.msra.mxu0 0.0
        %3059 = vmatprep.subr.mxu0 0.0
        %3060 = vmatpush1.msra.mxu0 0.0
        %3061 = vmatprep.subr.mxu0 0.0
        %3062 = vmatpush1.msra.mxu0 0.0
        %3063 = vmatprep.subr.mxu0 0.0
        %3064 = vmatpush1.msra.mxu0 0.0
        %3065 = vmatprep.subr.mxu0 0.0
        %3066 = vmatpush1.msra.mxu0 0.0
        %3067 = vmatprep.subr.mxu0 0.0
        %3068 = vmatpush1.msra.mxu0 0.0
        %3069 = vmatprep.subr.mxu0 0.0
        %3070 = vmatpush1.msra.mxu0 0.0
        %3071 = vmatprep.subr.mxu0 0.0
        %3072 = vmatpush1.msra.mxu0 %v3043
        %3073 = vmatprep.subr.mxu0 0.0
        %3074 = vmatpush1.msra.mxu0 %v3042
        %3075 = vmatprep.subr.mxu0 0.0
        %3076 = vmatpush1.msra.mxu0 %v3041
        %3077 = vmatprep.subr.mxu0 0.0
        %3078 = vmatpush1.msra.mxu0 %v3040
        %3079 = vmatprep.subr.mxu0 0.0
        %3080 = vmatpush1.msra.mxu0 %v3039
        %3081 = vmatprep.subr.mxu0 0.0
        %3082 = vmatpush1.msra.mxu0 %v3038
        %3083 = vmatprep.subr.mxu0 0.0
        %3084 = vmatpush1.msra.mxu0 %v3037
        %3085 = vmatprep.subr.mxu0 0.0
        %3086 = vmatpush1.msra.mxu0 %v3036
        %3087 = vmatprep.subr.mxu0 0.0
        %3088 = vmatpush2.msra.mxu0 0.0
        %3089 = vmatprep.subr.mxu0 0.0
        %3090 = vmatpush2.msra.mxu0 0.0
        %3091 = vmatprep.subr.mxu0 0.0
        %3092 = vmatpush2.msra.mxu0 0.0
        %3093 = vmatprep.subr.mxu0 0.0
        %3094 = vmatpush2.msra.mxu0 0.0
        %3095 = vmatprep.subr.mxu0 0.0
        %3096 = vmatpush2.msra.mxu0 0.0
        %3097 = vmatprep.subr.mxu0 0.0
        %3098 = vmatpush2.msra.mxu0 0.0
        %3099 = vmatprep.subr.mxu0 0.0
        %3100 = vmatpush2.msra.mxu0 0.0
        %3101 = vmatprep.subr.mxu0 0.0
        %3102 = vmatpush2.msra.mxu0 0.0
        %3103 = vmatprep.subr.mxu0 0.0
        %3104 = vmatpush2.msra.mxu0 0.0
        %3105 = vmatprep.subr.mxu0 0.0
        %3106 = vmatpush2.msra.mxu0 0.0
        %3107 = vmatprep.subr.mxu0 0.0
        %3108 = vmatpush2.msra.mxu0 0.0
        %3109 = vmatprep.subr.mxu0 0.0
        %3110 = vmatpush2.msra.mxu0 0.0
        %3111 = vmatprep.subr.mxu0 0.0
        %3112 = vmatpush2.msra.mxu0 0.0
        %3113 = vmatprep.subr.mxu0 0.0
        %3114 = vmatpush2.msra.mxu0 0.0
        %3115 = vmatprep.subr.mxu0 0.0
        %3116 = vmatpush2.msra.mxu0 0.0
        %3117 = vmatprep.subr.mxu0 0.0
        %3118 = vmatpush2.msra.mxu0 0.0
        %3119 = vmatprep.mubr.f32.mxu0 0.0
        %3120 = vmatmul.mubr.f32.gmra.mxu0 %v3053
        %v3121 = vpop.f32.mrf.mxu0
        %v3122 = vadd.f32 %v3050, %v3121
        %v3123 = vpop.f32.mrf.mxu0
        %3124 = vdwg.mxu0
        %v3125 = vadd.f32 %v2947, %v3122
        %s3126 = scalar_lea.vmem %s16, 1
        %v3127 = vld [vmem:[%s3126] sm:$0x1]
        %s3128 = scalar_lea.vmem %s17, 1
        %v3129 = vld [vmem:[%s3128] sm:$0x1]
        %v3130 = vsel %vm671, %v3125, 0.0
        %3131 = vadd.xlane.f32.xlu0 %v3130
        %v3132 = vpop.xlane.xlu0 %3131
        %v3133 = vmul.f32 %v3132, %v1674
        %v3134 = vsub.f32 %v3125, %v3133
        %v3135 = vmul.f32 %v3134, %v3134
        %v3136 = vsel %vm671, %v3135, 0.0
        %3137 = vadd.xlane.f32.xlu0 %v3136
        %v3138 = vpop.xlane.xlu0 %3137
        %v3139 = vmul.f32 %v3138, %v1674
        %v3140 = vadd.f32 %v3139, 1e-05
        %v3141 = vrsqrt.pop %v3140
        %v3142 = vmul.f32 %v3134, %v3141
        %v3144 = vlaneseq
        %v3145 = vshrl.u32 %v3144, 7
        %v3146 = vsub.s32 0, %v3145
        %v3147 = vrot.slane %v3127, %v3146
        %v3149 = vmul.f32 %v3142, %v3147
        %v3151 = vlaneseq
        %v3152 = vshrl.u32 %v3151, 7
        %v3153 = vsub.s32 0, %v3152
        %v3154 = vrot.slane %v3129, %v3153
        %v3156 = vadd.f32 %v3149, %v3154
        %3157 = vst.msk [vmem:[%s656] sm:$0xff] %vm671, %v3156
        %s3158 = sand.u32 %s435, 1
        %s3159 = scalar_lea.sflag [#allocation4], %s3158
        %s3160 = sand.u32 %s435, 1
        %s3161 = smul.addr %s3160, 8
        %s3162 = scalar_lea.vmem [#allocation10], %s3161
        // Predicated region
        $region109: #{tpu_custom_call.1} parent=91 // pred_check
          %p3163 = pneg %p445
        $region110: #{tpu_custom_call.1} parent=91 // pred_check_branch
          %3165 = sbr.rel (%p3163) target = $region112
        $region111: #{tpu_custom_call.1} parent=91 // pred_region
          %s3167 = ssub.s32 128, 128
          %3168 = vsyncadd %s3159, %s3167
          %s3169 = smul.addr %s39, 128
          %s3170 = scalar_lea.hbm %s18, %s3169
          %s3172 = sshll.u32 %s3162, 4
          %s3173 = int_to_ptr.vmem [resolvable:$true] %s3172
          %3175 = dma.vmem_to_hbm [thread:$0]  %s3173, 128, %s3170, %s3159
        $region112: #{tpu_custom_call.1} parent=91 // pred_fallthru
          _
      $region92: #{tpu_custom_call.1} parent=5 // pred_fallthru
        _
      %p3176 = scmp.le.s32.totalorder 2, %s34
      // Predicated region
      $region113: #{tpu_custom_call.1} parent=5 // pred_check
        %p3177 = pneg %p3176
      $region114: #{tpu_custom_call.1} parent=5 // pred_check_branch
        %3179 = sbr.rel (%p3177) target = $region116
      $region115: #{tpu_custom_call.1} parent=5 // pred_region
        %s3180 = ssub.s32 %s34, 2
        // Predicated region
        $region117: #{tpu_custom_call.1} parent=115 // pred_check
          %p3181 = pneg %p451
        $region118: #{tpu_custom_call.1} parent=115 // pred_check_branch
          %3183 = sbr.rel (%p3181) target = $region120
        $region119: #{tpu_custom_call.1} parent=115 // pred_region
          %s3184 = sand.u32 %s436, 1
          %s3185 = scalar_lea.sflag [#allocation4], %s3184
          %s3186 = sand.u32 %s436, 1
          %s3187 = smul.addr %s3186, 8
          %s3188 = scalar_lea.vmem [#allocation10], %s3187
          %3189 = dma.done %s3185, 128
        $region120: #{tpu_custom_call.1} parent=115 // pred_fallthru
          _
      $region116: #{tpu_custom_call.1} parent=5 // pred_fallthru
        _
    $region6: #{tpu_custom_call.1} parent=1 // loop_footer
      %s38 = sadd.s32 1, %s34
    $region7: #{tpu_custom_call.1} parent=1 // loop_footer_branch
      %33 = sbr.rel target = $region3
    $region8: #{tpu_custom_call.1} parent=1 // loop_exit
      _
    %3190 = vsyncpa [#allocation3], 1
    %s3191 = scalar_lea.sflag [#allocation3], 1
    %3192 = vsyncpa %s3191, 1
    %3193 = vsyncpa [#allocation6], 1
    %s3194 = scalar_lea.sflag [#allocation6], 1
    %3195 = vsyncpa %s3194, 1
    %3196 = vsyncpa [#allocation9], 1
    %3197 = vsyncpa [#allocation4], 1
    %s3198 = scalar_lea.sflag [#allocation4], 1
    %3199 = vsyncpa %s3198, 1

</llo_original>
